<compile_context>
chip_gen: v7x
topology: tpu7x:2x2x1
jax: 0.10.0
libtpu: 0.0.40
codegen_flags: <defaults>
</compile_context>

<pallas_src>
import jax
import jax.numpy as jnp
import numpy as np
from jax import lax
from jax.experimental import pallas as pl
from jax.experimental.pallas import tpu as pltpu

_HP = jax.lax.Precision.HIGHEST  # exact f32 on the MXU (matches the reference)


# ---------------------------------------------------------------------------
# Fused chunked-cross-attention kernel: one (chunk, batch) pair per grid step
# ---------------------------------------------------------------------------

def _ccattn_kernel(xq_ref, xkv_ref, wq_ref, wkv_ref, wo_ref, pe_ref, o_ref):
    # xq_ref : (n, d_x_q)             query chunk for this (chunk, batch)
    # xkv_ref: (K*m, d_x_kv)          retrieved keys/values, neighbour-major
    # wq_ref : (d_x_q, H*d_qk)        pre-transposed projection weights
    # wkv_ref: (d_x_kv, H*(d_qk+d_v))
    # wo_ref : (H*d_v, d_out)
    # pe_ref : (H, n, K*m, d_qk)      relative pos-enc, pre-tiled over neighbours
    # o_ref  : (n, d_out)
    H, n, Km, d_qk = pe_ref.shape
    d_kvh = wkv_ref.shape[1] // H
    d_v = d_kvh - d_qk

    # Input projections for all heads at once (lane-dense, MXU, exact f32).
    q_all = jnp.dot(xq_ref[...], wq_ref[...],
                    preferred_element_type=jnp.float32, precision=_HP)
    kv_all = jnp.dot(xkv_ref[...], wkv_ref[...],
                     preferred_element_type=jnp.float32, precision=_HP)

    head_out = []
    for h in range(H):  # small H, unrolled; per-head views are static slices
        q_h = q_all[:, h * d_qk:(h + 1) * d_qk]              # (n, d_qk)
        k_h = kv_all[:, h * d_kvh:h * d_kvh + d_qk]          # (K*m, d_qk)
        v_h = kv_all[:, h * d_kvh + d_qk:(h + 1) * d_kvh]    # (K*m, d_v)

        # content logits: (n, K*m) on the MXU.
        content = lax.dot_general(q_h, k_h, (((1,), (1,)), ((), ())),
                                  preferred_element_type=jnp.float32,
                                  precision=_HP)

        # positional logits: tiny per-query contraction, VPU multiply +
        # last-axis reduce on the pre-tiled (n, K*m, d_qk) table.
        pe_h = pe_ref[h]                                      # (n, K*m, d_qk)
        pos = jnp.sum(q_h[:, None, :] * pe_h, axis=-1)        # (n, K*m)

        # NOTE: the module applies NO 1/sqrt(d_qk) rescale (rescale_logits=False).
        logits = content + pos

        # softmax over all K*m keys (exact normalisation).
        mmax = jnp.max(logits, axis=-1, keepdims=True)
        e = jnp.exp(logits - mmax)
        denom = jnp.sum(e, axis=-1, keepdims=True)
        acc = jnp.dot(e, v_h, preferred_element_type=jnp.float32,
                      precision=_HP)                          # (n, d_v)
        head_out.append(acc / denom)

    attn = jnp.concatenate(head_out, axis=1)                  # (n, H*d_v)
    o_ref[...] = jnp.dot(attn, wo_ref[...],
                         preferred_element_type=jnp.float32, precision=_HP)


def ccattn_core(xq_c, xkv_c, wq, wkv, wo, pe):
    G, n, d_x_q = xq_c.shape
    Mk, d_x_kv = xkv_c.shape[1], xkv_c.shape[2]
    H, _, Km, d_qk = pe.shape
    d_out = wo.shape[1]
    return pl.pallas_call(
        _ccattn_kernel,
        out_shape=jax.ShapeDtypeStruct((G, n, d_out), jnp.float32),
        grid=(G,),
        in_specs=[
            pl.BlockSpec((None, n, d_x_q), lambda g: (g, 0, 0)),
            pl.BlockSpec((None, Mk, d_x_kv), lambda g: (g, 0, 0)),
            # weights / pe: constant block index -> fetched once, VMEM-resident
            pl.BlockSpec((d_x_q, wq.shape[1]), lambda g: (0, 0)),
            pl.BlockSpec((d_x_kv, wkv.shape[1]), lambda g: (0, 0)),
            pl.BlockSpec((wo.shape[0], d_out), lambda g: (0, 0)),
            pl.BlockSpec((H, n, Km, d_qk), lambda g: (0, 0, 0, 0)),
        ],
        out_specs=pl.BlockSpec((None, n, d_out), lambda g: (g, 0, 0)),
        compiler_params=pltpu.CompilerParams(
            dimension_semantics=("parallel",)),
    )(xq_c, xkv_c, wq, wkv, wo, pe)


# ---------------------------------------------------------------------------
# Parameters, positional encoding, and the block forward (glue in plain JAX)
# ---------------------------------------------------------------------------

def init_block_params(key, chunk_size, d, d_kv, num_heads=1):
    assert d % num_heads == 0
    d_qk = d_v = d // num_heads
    k1, k2, k3, k4 = jax.random.split(key, 4)
    to_q = jax.random.normal(k1, (num_heads, d_qk, d), jnp.float32)
    to_kv = jax.random.normal(k2, (num_heads, d_qk + d_v, d_kv), jnp.float32)
    for_pos_enc = jax.random.normal(k3, (num_heads, d_qk, d_kv), jnp.float32)
    to_o = jax.random.normal(k4, (d, num_heads, d_v), jnp.float32)
    return {
        # raw parameters (PyTorch layout, used by the pure-JAX reference)
        "to_q": to_q, "to_kv": to_kv, "for_pos_enc": for_pos_enc, "to_o": to_o,
        # kernel weights, pre-transposed ONCE (no per-call .T / HBM copies)
        "wq": jnp.transpose(to_q.reshape(num_heads * d_qk, d)),
        "wkv": jnp.transpose(to_kv.reshape(num_heads * (d_qk + d_v), d_kv)),
        "wo": jnp.transpose(to_o.reshape(d, num_heads * d_v)),
        # RMSNorm scale exists on the module, but its forward() never uses it.
        "norm_scale": jnp.ones((d,), jnp.float32),
        "chunk_size": chunk_size, "d": d, "d_kv": d_kv,
        "num_heads": num_heads, "d_qk": d_qk, "d_v": d_v,
        "offset": chunk_size - 1,
    }


def _relative_pos_enc(for_pos_enc, sz_q, sz_k, offset, d_x_kv):
    """Attention.get_pos_enc (dropout p=0 -> identity) -> (sz_q, sz_k, H, d_qk)."""
    dists = jnp.arange(sz_q)[:, None] - jnp.arange(sz_k)[None, :] + offset
    dmin = offset - (sz_k - 1)
    dmax = offset + sz_q - 1
    r = jnp.arange(dmin, dmax + 1).astype(jnp.float32)
    inv_freq = 1.0 / (10000.0 ** (jnp.arange(0.0, d_x_kv, 2.0) / d_x_kv))
    phases = r[:, None] * inv_freq[None, :]
    sincos = jnp.concatenate([jnp.sin(phases), jnp.cos(phases)], axis=-1)
    pos_enc = jnp.einsum('hdb,nb->nhd', for_pos_enc, sincos)          # (L, H, d_qk)
    return pos_enc[dists - dmin]                                      # (n, m, H, d_qk)


def _get_stuff(pos, length, chunk_size):
    """Mirrors ChunkedCrossAttentionBlock.get_stuff."""
    omit = min(max(0, chunk_size - 1 - pos), length)
    keep = length - omit
    len_pad = chunk_size * ((pos + length) // chunk_size
                            - max(0, pos - (chunk_size - 1)) // chunk_size)
    i1_xq = omit
    i1_pad = (omit + pos + 1) % chunk_size
    i2_pad = i1_pad + keep
    i1_z = i1_xq
    i2_z = i1_z + keep
    return len_pad, i1_xq, i1_pad, i2_pad, i1_z, i2_z


def chunked_cross_attention_forward(params, x_q, x_kv):
    """ChunkedCrossAttentionBlock.forward with a fresh cache (pos = 0).

    x_q : (L, B, d)            query sequence (seq-first, like PyTorch)
    x_kv: (m, K, C, B, d_kv)   retrieved neighbours per chunk
    """
    # TODO(synk): ModuleWithCache kv-cache / pos-cache bookkeeping across calls
    # is Python-side state and is not represented in this stateless kernel.
    cs = params["chunk_size"]
    d, d_kv, offset = params["d"], params["d_kv"], params["offset"]
    L, B, _ = x_q.shape
    m, K = x_kv.shape[0], x_kv.shape[1]

    len_pad, i1_xq, i1_pad, i2_pad, i1_z, i2_z = _get_stuff(0, L, cs)
    C = len_pad // cs
    if C == 0:                              # no full chunk -> identity (module path)
        return x_q
    assert x_kv.shape[2] == C and x_kv.shape[3] == B

    # pad + chunk the queries: (L, B, d) -> (C*B, cs, d)
    x_q_padded = jnp.zeros((len_pad, B, d), x_q.dtype)
    x_q_padded = x_q_padded.at[i1_pad:i2_pad].set(x_q[i1_xq:])
    xq_c = (x_q_padded.reshape(C, cs, B, d)
            .transpose(0, 2, 1, 3).reshape(C * B, cs, d))

    # retrieved keys/values: (m, K, C, B, d_kv) -> (C*B, K*m, d_kv), neighbour-major
    xkv_c = jnp.transpose(x_kv, (2, 3, 1, 0, 4)).reshape(C * B, K * m, d_kv)

    # relative positional encodings (tiny table); pre-tile over the K neighbours
    # so in-kernel key index j maps directly to pe[..., j, :] (j % m semantics).
    pe = _relative_pos_enc(params["for_pos_enc"], cs, m, offset, d_kv)   # (cs, m, H, d_qk)
    pe_h = jnp.transpose(pe, (2, 0, 1, 3))                               # (H, cs, m, d_qk)
    pe_tiled = jnp.tile(pe_h, (1, 1, K, 1))                              # (H, cs, K*m, d_qk)

    # fused attention (projections + attention + output projection) in Pallas
    z_cb = ccattn_core(xq_c, xkv_c, params["wq"], params["wkv"], params["wo"], pe_tiled)

    # unchunk + un-pad + residual
    z = z_cb.reshape(C, B, cs, d).transpose(0, 2, 1, 3).reshape(len_pad, B, d)
    z_padded = jnp.zeros_like(x_q).at[i1_z:i2_z].set(z[i1_pad:i2_pad])
    return x_q + z_padded            # dropout p=0 -> identity


# ---------------------------------------------------------------------------
# Pure-JAX reference mirroring the PyTorch forward exactly
# ---------------------------------------------------------------------------

def chunked_cross_attention_reference(params, x_q, x_kv):
    hp = jax.lax.Precision.HIGHEST
    to_q, to_kv, to_o = params["to_q"], params["to_kv"], params["to_o"]
    cs, d_qk, d_kv = params["chunk_size"], params["d_qk"], params["d_kv"]
    d_v, H, offset = params["d_v"], params["num_heads"], params["offset"]
    L, B, d = x_q.shape
    m, K = x_kv.shape[0], x_kv.shape[1]

    len_pad, i1_xq, i1_pad, i2_pad, i1_z, i2_z = _get_stuff(0, L, cs)
    C = len_pad // cs
    if C == 0:
        return x_q
    x_q_padded = jnp.zeros((len_pad, B, d), x_q.dtype).at[i1_pad:i2_pad].set(x_q[i1_xq:])
    x_q_chunked = x_q_padded.reshape(C, cs, B, d).transpose(1, 0, 2, 3)      # (n, C, B, d)

    q = jnp.einsum('hdb,ncxb->ncxhd', to_q, x_q_chunked, precision=hp)       # (n,C,B,H,dqk)
    kv = jnp.einsum('hdb,mkcxb->mkcxhd', to_kv, x_kv, precision=hp)
    k, v = kv[..., :d_qk], kv[..., d_qk:]
    pe = _relative_pos_enc(params["for_pos_enc"], cs, m, offset, d_kv)       # (n, m, H, dqk)

    content = jnp.einsum('ncxhd,mkcxhd->nmkcxh', q, k, precision=hp)
    pos = jnp.einsum('ncxhd,nmhd->nmcxh', q, pe, precision=hp)
    logits = content + pos[:, :, None]                                       # (n,m,K,C,B,H)
    lg = logits.reshape(cs, m * K, C, B, H)
    vv = v.reshape(m * K, C, B, H, d_v)
    w = jax.nn.softmax(lg, axis=1)
    attn = jnp.einsum('njcxh,jcxhd->ncxhd', w, vv, precision=hp)
    z_chunked = jnp.einsum('dhb,ncxhb->ncxd', to_o, attn, precision=hp)      # (n, C, B, d)

    z = z_chunked.transpose(1, 0, 2, 3).reshape(len_pad, B, d)
    z_padded = jnp.zeros_like(x_q).at[i1_z:i2_z].set(z[i1_pad:i2_pad])
    return x_q + z_padded


if __name__ == "__main__":
    key = jax.random.PRNGKey(0)
    kp, kq, kk = jax.random.split(key, 3)

    # Small RETRO-like shapes: chunk_size=8, seq L=16 (2 chunks), batch B=2,
    # d=32, heads=2 (d_qk=d_v=16), K=2 neighbours of length m=16, d_kv=64.
    CS, L, B, D, H = 8, 16, 2, 32, 2
    K, M, D_KV = 2, 16, 64
    C = L // CS

    params = init_block_params(kp, chunk_size=CS, d=D, d_kv=D_KV, num_heads=H)
    x_q = 0.1 * jax.random.normal(kq, (L, B, D), jnp.float32)
    x_kv = 0.1 * jax.random.normal(kk, (M, K, C, B, D_KV), jnp.float32)

    out = chunked_cross_attention_forward(params, x_q, x_kv)
    out = jax.block_until_ready(out)

    ref = chunked_cross_attention_reference(params, x_q, x_kv)
    np.testing.assert_allclose(np.asarray(out), np.asarray(ref),
                               rtol=2e-3, atol=5e-3)
    assert out.shape == (L, B, D)
    print("KERNEL_OK")
</pallas_src>

<mosaic_0001>
module attributes {stable_mosaic.version = 11 : i64} {
  func.func @_ccattn_kernel(%arg0: i32, %arg1: memref<1x8x32xf32, #tpu.memory_space<vmem>>, %arg2: memref<1x32x64xf32, #tpu.memory_space<vmem>>, %arg3: memref<32x32xf32, #tpu.memory_space<vmem>>, %arg4: memref<64x64xf32, #tpu.memory_space<vmem>>, %arg5: memref<32x32xf32, #tpu.memory_space<vmem>>, %arg6: memref<2x8x32x16xf32, #tpu.memory_space<vmem>>, %arg7: memref<1x8x32xf32, #tpu.memory_space<vmem>>) attributes {dimension_semantics = [#tpu.dimension_semantics<parallel>], iteration_bounds = array<i64: 4>, scalar_prefetch = 0 : i64, scratch_operands = 0 : i64, tpu.core_type = #tpu.core_type<tc>, window_params = [{transform_indices = @transform_0, window_bounds = array<i64: 1, 8, 32>}, {transform_indices = @transform_1, window_bounds = array<i64: 1, 32, 64>}, {pipeline_mode = #tpu.pipeline_mode<synchronous>, transform_indices = @transform_2, window_bounds = array<i64: 32, 32>}, {pipeline_mode = #tpu.pipeline_mode<synchronous>, transform_indices = @transform_3, window_bounds = array<i64: 64, 64>}, {pipeline_mode = #tpu.pipeline_mode<synchronous>, transform_indices = @transform_4, window_bounds = array<i64: 32, 32>}, {pipeline_mode = #tpu.pipeline_mode<synchronous>, transform_indices = @transform_5, window_bounds = array<i64: 2, 8, 32, 16>}, {transform_indices = @transform_6, window_bounds = array<i64: 1, 8, 32>}]} {
    %c0 = arith.constant 0 : index
    %c0_0 = arith.constant 0 : index
    %c0_1 = arith.constant 0 : index
    %0 = vector.load %arg1[%c0, %c0_0, %c0_1] : memref<1x8x32xf32, #tpu.memory_space<vmem>>, vector<1x8x32xf32>
    %1 = vector.shape_cast %0 : vector<1x8x32xf32> to vector<8x32xf32>
    %c0_2 = arith.constant 0 : index
    %c0_3 = arith.constant 0 : index
    %2 = vector.load %arg3[%c0_2, %c0_3] : memref<32x32xf32, #tpu.memory_space<vmem>>, vector<32x32xf32>
    %cst = arith.constant dense<0.000000e+00> : vector<8x32xf32>
    %3 = tpu.matmul %1, %2, %cst {dimension_numbers = #tpu.dot_dimension_numbers<[1], [0], [0], [1], [0, 0, 1, 1], [], []>, precision = #tpu.contract_precision<fp32>} : vector<8x32xf32>, vector<32x32xf32>, vector<8x32xf32> -> vector<8x32xf32>
    %c0_4 = arith.constant 0 : index
    %c0_5 = arith.constant 0 : index
    %c0_6 = arith.constant 0 : index
    %4 = vector.load %arg2[%c0_4, %c0_5, %c0_6] : memref<1x32x64xf32, #tpu.memory_space<vmem>>, vector<1x32x64xf32>
    %5 = vector.shape_cast %4 : vector<1x32x64xf32> to vector<32x64xf32>
    %c0_7 = arith.constant 0 : index
    %c0_8 = arith.constant 0 : index
    %6 = vector.load %arg4[%c0_7, %c0_8] : memref<64x64xf32, #tpu.memory_space<vmem>>, vector<64x64xf32>
    %cst_9 = arith.constant dense<0.000000e+00> : vector<32x64xf32>
    %7 = tpu.matmul %5, %6, %cst_9 {dimension_numbers = #tpu.dot_dimension_numbers<[1], [0], [0], [1], [0, 0, 1, 1], [], []>, precision = #tpu.contract_precision<fp32>} : vector<32x64xf32>, vector<64x64xf32>, vector<32x64xf32> -> vector<32x64xf32>
    %8 = vector.extract_strided_slice %3 {offsets = [0, 0], sizes = [8, 16], strides = [1, 1]} : vector<8x32xf32> to vector<8x16xf32>
    %9 = vector.extract_strided_slice %7 {offsets = [0, 0], sizes = [32, 16], strides = [1, 1]} : vector<32x64xf32> to vector<32x16xf32>
    %10 = vector.extract_strided_slice %7 {offsets = [0, 16], sizes = [32, 16], strides = [1, 1]} : vector<32x64xf32> to vector<32x16xf32>
    %cst_10 = arith.constant dense<0.000000e+00> : vector<8x32xf32>
    %11 = tpu.matmul %8, %9, %cst_10 {dimension_numbers = #tpu.dot_dimension_numbers<[1], [1], [0], [0], [0, 0, 1, 0], [], []>, precision = #tpu.contract_precision<fp32>} : vector<8x16xf32>, vector<32x16xf32>, vector<8x32xf32> -> vector<8x32xf32>
    %c0_11 = arith.constant 0 : index
    %c0_12 = arith.constant 0 : index
    %c0_13 = arith.constant 0 : index
    %c0_14 = arith.constant 0 : index
    %12 = vector.load %arg6[%c0_11, %c0_12, %c0_13, %c0_14] : memref<2x8x32x16xf32, #tpu.memory_space<vmem>>, vector<1x8x32x16xf32>
    %13 = vector.shape_cast %12 : vector<1x8x32x16xf32> to vector<8x32x16xf32>
    %14 = vector.shape_cast %8 : vector<8x16xf32> to vector<8x1x16xf32>
    %15 = vector.broadcast %14 : vector<8x1x16xf32> to vector<8x32x16xf32>
    %16 = arith.mulf %15, %13 : vector<8x32x16xf32>
    %cst_15 = arith.constant dense<0.000000e+00> : vector<8x32xf32>
    %17 = vector.multi_reduction <add>, %16, %cst_15 [2] : vector<8x32x16xf32> to vector<8x32xf32>
    %18 = arith.addf %11, %17 : vector<8x32xf32>
    %cst_16 = arith.constant dense<0xFF800000> : vector<8xf32>
    %19 = vector.multi_reduction <maximumf>, %18, %cst_16 [1] : vector<8x32xf32> to vector<8xf32>
    %20 = vector.shape_cast %19 : vector<8xf32> to vector<8x1xf32>
    %21 = vector.broadcast %20 : vector<8x1xf32> to vector<8x32xf32>
    %22 = arith.subf %18, %21 : vector<8x32xf32>
    %23 = math.exp %22 : vector<8x32xf32>
    %cst_17 = arith.constant dense<0.000000e+00> : vector<8xf32>
    %24 = vector.multi_reduction <add>, %23, %cst_17 [1] : vector<8x32xf32> to vector<8xf32>
    %25 = vector.shape_cast %24 : vector<8xf32> to vector<8x1xf32>
    %cst_18 = arith.constant dense<0.000000e+00> : vector<8x16xf32>
    %26 = tpu.matmul %23, %10, %cst_18 {dimension_numbers = #tpu.dot_dimension_numbers<[1], [0], [0], [1], [0, 0, 1, 1], [], []>, precision = #tpu.contract_precision<fp32>} : vector<8x32xf32>, vector<32x16xf32>, vector<8x16xf32> -> vector<8x16xf32>
    %27 = vector.broadcast %25 : vector<8x1xf32> to vector<8x16xf32>
    %28 = arith.divf %26, %27 : vector<8x16xf32>
    %29 = vector.extract_strided_slice %3 {offsets = [0, 16], sizes = [8, 16], strides = [1, 1]} : vector<8x32xf32> to vector<8x16xf32>
    %30 = vector.extract_strided_slice %7 {offsets = [0, 32], sizes = [32, 16], strides = [1, 1]} : vector<32x64xf32> to vector<32x16xf32>
    %31 = vector.extract_strided_slice %7 {offsets = [0, 48], sizes = [32, 16], strides = [1, 1]} : vector<32x64xf32> to vector<32x16xf32>
    %cst_19 = arith.constant dense<0.000000e+00> : vector<8x32xf32>
    %32 = tpu.matmul %29, %30, %cst_19 {dimension_numbers = #tpu.dot_dimension_numbers<[1], [1], [0], [0], [0, 0, 1, 0], [], []>, precision = #tpu.contract_precision<fp32>} : vector<8x16xf32>, vector<32x16xf32>, vector<8x32xf32> -> vector<8x32xf32>
    %c1 = arith.constant 1 : index
    %c0_20 = arith.constant 0 : index
    %c0_21 = arith.constant 0 : index
    %c0_22 = arith.constant 0 : index
    %33 = vector.load %arg6[%c1, %c0_20, %c0_21, %c0_22] : memref<2x8x32x16xf32, #tpu.memory_space<vmem>>, vector<1x8x32x16xf32>
    %34 = vector.shape_cast %33 : vector<1x8x32x16xf32> to vector<8x32x16xf32>
    %35 = vector.shape_cast %29 : vector<8x16xf32> to vector<8x1x16xf32>
    %36 = vector.broadcast %35 : vector<8x1x16xf32> to vector<8x32x16xf32>
    %37 = arith.mulf %36, %34 : vector<8x32x16xf32>
    %cst_23 = arith.constant dense<0.000000e+00> : vector<8x32xf32>
    %38 = vector.multi_reduction <add>, %37, %cst_23 [2] : vector<8x32x16xf32> to vector<8x32xf32>
    %39 = arith.addf %32, %38 : vector<8x32xf32>
    %cst_24 = arith.constant dense<0xFF800000> : vector<8xf32>
    %40 = vector.multi_reduction <maximumf>, %39, %cst_24 [1] : vector<8x32xf32> to vector<8xf32>
    %41 = vector.shape_cast %40 : vector<8xf32> to vector<8x1xf32>
    %42 = vector.broadcast %41 : vector<8x1xf32> to vector<8x32xf32>
    %43 = arith.subf %39, %42 : vector<8x32xf32>
    %44 = math.exp %43 : vector<8x32xf32>
    %cst_25 = arith.constant dense<0.000000e+00> : vector<8xf32>
    %45 = vector.multi_reduction <add>, %44, %cst_25 [1] : vector<8x32xf32> to vector<8xf32>
    %46 = vector.shape_cast %45 : vector<8xf32> to vector<8x1xf32>
    %cst_26 = arith.constant dense<0.000000e+00> : vector<8x16xf32>
    %47 = tpu.matmul %44, %31, %cst_26 {dimension_numbers = #tpu.dot_dimension_numbers<[1], [0], [0], [1], [0, 0, 1, 1], [], []>, precision = #tpu.contract_precision<fp32>} : vector<8x32xf32>, vector<32x16xf32>, vector<8x16xf32> -> vector<8x16xf32>
    %48 = vector.broadcast %46 : vector<8x1xf32> to vector<8x16xf32>
    %49 = arith.divf %47, %48 : vector<8x16xf32>
    %50 = tpu.concatenate %28, %49 in 1 : vector<8x16xf32>, vector<8x16xf32> -> vector<8x32xf32>
    %c0_27 = arith.constant 0 : index
    %c0_28 = arith.constant 0 : index
    %51 = vector.load %arg5[%c0_27, %c0_28] : memref<32x32xf32, #tpu.memory_space<vmem>>, vector<32x32xf32>
    %cst_29 = arith.constant dense<0.000000e+00> : vector<8x32xf32>
    %52 = tpu.matmul %50, %51, %cst_29 {dimension_numbers = #tpu.dot_dimension_numbers<[1], [0], [0], [1], [0, 0, 1, 1], [], []>, precision = #tpu.contract_precision<fp32>} : vector<8x32xf32>, vector<32x32xf32>, vector<8x32xf32> -> vector<8x32xf32>
    %c0_30 = arith.constant 0 : index
    %c0_31 = arith.constant 0 : index
    %c0_32 = arith.constant 0 : index
    %53 = vector.load %arg7[%c0_30, %c0_31, %c0_32] : memref<1x8x32xf32, #tpu.memory_space<vmem>>, vector<1x8x32xf32>
    %54 = vector.shape_cast %53 : vector<1x8x32xf32> to vector<8x32xf32>
    %55 = vector.shape_cast %52 : vector<8x32xf32> to vector<1x8x32xf32>
    tpu.vector_store %arg7[%c0_30, %c0_31, %c0_32], %55 {strides = array<i32>} : memref<1x8x32xf32, #tpu.memory_space<vmem>>, vector<1x8x32xf32>,
    return
  }
  func.func @transform_0(%arg0: i32) -> (i32, i32, i32) {
    %c0_i32 = arith.constant 0 : i32
    %c0_i32_0 = arith.constant 0 : i32
    %c0_i32_1 = arith.constant 0 : i32
    return %arg0, %c0_i32, %c0_i32_0 : i32, i32, i32
  }
  func.func @transform_1(%arg0: i32) -> (i32, i32, i32) {
    %c0_i32 = arith.constant 0 : i32
    %c0_i32_0 = arith.constant 0 : i32
    %c0_i32_1 = arith.constant 0 : i32
    return %arg0, %c0_i32, %c0_i32_0 : i32, i32, i32
  }
  func.func @transform_2(%arg0: i32) -> (i32, i32) {
    %c0_i32 = arith.constant 0 : i32
    %c0_i32_0 = arith.constant 0 : i32
    %c0_i32_1 = arith.constant 0 : i32
    return %c0_i32, %c0_i32_0 : i32, i32
  }
  func.func @transform_3(%arg0: i32) -> (i32, i32) {
    %c0_i32 = arith.constant 0 : i32
    %c0_i32_0 = arith.constant 0 : i32
    %c0_i32_1 = arith.constant 0 : i32
    return %c0_i32, %c0_i32_0 : i32, i32
  }
  func.func @transform_4(%arg0: i32) -> (i32, i32) {
    %c0_i32 = arith.constant 0 : i32
    %c0_i32_0 = arith.constant 0 : i32
    %c0_i32_1 = arith.constant 0 : i32
    return %c0_i32, %c0_i32_0 : i32, i32
  }
  func.func @transform_5(%arg0: i32) -> (i32, i32, i32, i32) {
    %c0_i32 = arith.constant 0 : i32
    %c0_i32_0 = arith.constant 0 : i32
    %c0_i32_1 = arith.constant 0 : i32
    %c0_i32_2 = arith.constant 0 : i32
    %c0_i32_3 = arith.constant 0 : i32
    return %c0_i32, %c0_i32_0, %c0_i32_1, %c0_i32_2 : i32, i32, i32, i32
  }
  func.func @transform_6(%arg0: i32) -> (i32, i32, i32) {
    %c0_i32 = arith.constant 0 : i32
    %c0_i32_0 = arith.constant 0 : i32
    %c0_i32_1 = arith.constant 0 : i32
    return %arg0, %c0_i32, %c0_i32_0 : i32, i32, i32
  }
}

</mosaic_0001>

<llo_original>
// kernel: tpu_custom_call.1
$region0: #{tpu_custom_call.1}
  #allocation0 [shape = 'u32[]', space=smem, size = 0x4, offset = 0x4, fixed_abs, tag = 'smem constant byte address 0x4 - core index']
  #allocation1 [shape = 'u32[144,128]{1,0:T(1,128)}', space=vmem, size = 0x12000, scoped, tag = 'internal scratch']
  %s0 = inlined_call_operand.vmem [shape: f32[4,8,32], index: 0, kind: input, shape index: {}]
  %s1 = inlined_call_operand.vmem [shape: f32[4,32,64], index: 1, kind: input, shape index: {}]
  %s2 = inlined_call_operand.vmem [shape: f32[32,32], index: 2, kind: input, shape index: {}]
  %s3 = inlined_call_operand.vmem [shape: f32[64,64], index: 3, kind: input, shape index: {}]
  %s4 = inlined_call_operand.vmem [shape: f32[32,32], index: 4, kind: input, shape index: {}]
  %s5 = inlined_call_operand.vmem [shape: f32[2,8,32,16], index: 5, kind: input, shape index: {}]
  %s6 = inlined_call_operand.hbm [shape: f32[4,8,32], index: 6, kind: output, shape index: {}]
  %s7 = sld [smem:[#allocation0]]
  $region57: #{tpu_custom_call.1} parent=0
    _
  %s9 = ssub.s32 1, %s7
  %s10 = scalar_select 0, %s9, %s7
  $region1: #{tpu_custom_call.1} parent=0
    #allocation2 [shape = 'u8[8192]{0}', space=vmem, size = 0x2000, scoped, tag = 'output window, operand 0']
    #allocation3 [shape = 's32[2]{0}', space=sflag, size = 0x8, scoped, tag = 'scoped memory for tpu_custom_call.1']
    %11 = vsyncpa [#allocation3], 0
    %s12 = scalar_lea.sflag [#allocation3], 1
    %13 = vsyncpa %s12, 0
    loop: start=0, step=1, limit=6
    $region2: #{tpu_custom_call.1} parent=1 // loop_pre_header
      _
    $region3: #{tpu_custom_call.1} parent=1 // loop_header
      %s15 = sphi 0, %s19
      %p16 = scmp.ge.s32.totalorder %s15, 6
      %s25 = sphi 0, %s27
      %s28 = sphi 0, %s25
      %s29 = sphi 0, %s28
      %s45 = sphi 0, %s29
      %s51 = sphi 0, %s53
      %s54 = sphi 0, %s51
      %s55 = sphi 0, %s54
      %s71 = sphi 0, %s55
      %s75 = sphi 0, %s75
      %s77 = sphi 0, %s75
      %s78 = sphi 0, %s77
      %s92 = sphi 0, %s78
      %s96 = sphi 0, %s96
      %s98 = sphi 0, %s96
      %s99 = sphi 0, %s98
      %s113 = sphi 0, %s99
      %s117 = sphi 0, %s117
      %s119 = sphi 0, %s117
      %s120 = sphi 0, %s119
      %s134 = sphi 0, %s120
      %s138 = sphi 0, %s138
      %s140 = sphi 0, %s138
      %s141 = sphi 0, %s140
      %s155 = sphi 0, %s141
      %s161 = sphi 0, %s163
      %s164 = sphi 0, %s161
      %s165 = sphi 0, %s164
      %s181 = sphi 0, %s165
    $region4: #{tpu_custom_call.1} parent=1 // loop_header_branch
      %18 = sbr.rel (%p16) target = $region8
    $region5: #{tpu_custom_call.1} parent=1 // loop_body
      %s20 = ssub.s32 %s15, 1
      %s21 = ssub.s32 %s15, 2
      %s22 = sadd.s32 %s15, 1
      %s23 = ssub.s32 %s15, %s22
      %p24 = scmp.eq.s32.totalorder %s23, 0
      %s26 = sadd.s32 %s25, 1
      %s27 = scalar_select %p24, %s25, %s26
      %p30 = pneg %p24
      %p31 = scmp.eq.s32.totalorder %s15, 3
      %p32 = por %p30, %p31
      %p33 = scmp.ne.s32.totalorder %s25, %s28
      %p34 = scmp.eq.s32.totalorder %s15, 0
      %p35 = por %p33, %p34
      %p36 = scmp.ne.s32.totalorder %s25, %s28
      %p37 = scmp.eq.s32.totalorder %s20, 3
      %p38 = por %p36, %p37
      %p39 = scmp.ne.s32.totalorder %s28, %s29
      %p40 = scmp.eq.s32.totalorder %s20, 0
      %p41 = por %p39, %p40
      %p42 = scmp.ne.s32.totalorder %s28, %s29
      %p43 = scmp.eq.s32.totalorder %s21, 3
      %p44 = por %p42, %p43
      %p46 = scmp.ne.s32.totalorder %s29, %s45
      %p47 = scmp.eq.s32.totalorder %s21, 0
      %p48 = por %p46, %p47
      %s49 = ssub.s32 %s15, %s22
      %p50 = scmp.eq.s32.totalorder %s49, 0
      %s52 = sadd.s32 %s51, 1
      %s53 = scalar_select %p50, %s51, %s52
      %p56 = pneg %p50
      %p57 = scmp.eq.s32.totalorder %s15, 3
      %p58 = por %p56, %p57
      %p59 = scmp.ne.s32.totalorder %s51, %s54
      %p60 = scmp.eq.s32.totalorder %s15, 0
      %p61 = por %p59, %p60
      %p62 = scmp.ne.s32.totalorder %s51, %s54
      %p63 = scmp.eq.s32.totalorder %s20, 3
      %p64 = por %p62, %p63
      %p65 = scmp.ne.s32.totalorder %s54, %s55
      %p66 = scmp.eq.s32.totalorder %s20, 0
      %p67 = por %p65, %p66
      %p68 = scmp.ne.s32.totalorder %s54, %s55
      %p69 = scmp.eq.s32.totalorder %s21, 3
      %p70 = por %p68, %p69
      %p72 = scmp.ne.s32.totalorder %s55, %s71
      %p73 = scmp.eq.s32.totalorder %s21, 0
      %p74 = por %p72, %p73
      %s76 = sadd.s32 %s75, 1
      %p79 = scmp.eq.s32.totalorder %s15, 3
      %p80 = scmp.ne.s32.totalorder %s75, %s77
      %p81 = scmp.eq.s32.totalorder %s15, 0
      %p82 = por %p80, %p81
      %p83 = scmp.ne.s32.totalorder %s75, %s77
      %p84 = scmp.eq.s32.totalorder %s20, 3
      %p85 = por %p83, %p84
      %p86 = scmp.ne.s32.totalorder %s77, %s78
      %p87 = scmp.eq.s32.totalorder %s20, 0
      %p88 = por %p86, %p87
      %p89 = scmp.ne.s32.totalorder %s77, %s78
      %p90 = scmp.eq.s32.totalorder %s21, 3
      %p91 = por %p89, %p90
      %p93 = scmp.ne.s32.totalorder %s78, %s92
      %p94 = scmp.eq.s32.totalorder %s21, 0
      %p95 = por %p93, %p94
      %s97 = sadd.s32 %s96, 1
      %p100 = scmp.eq.s32.totalorder %s15, 3
      %p101 = scmp.ne.s32.totalorder %s96, %s98
      %p102 = scmp.eq.s32.totalorder %s15, 0
      %p103 = por %p101, %p102
      %p104 = scmp.ne.s32.totalorder %s96, %s98
      %p105 = scmp.eq.s32.totalorder %s20, 3
      %p106 = por %p104, %p105
      %p107 = scmp.ne.s32.totalorder %s98, %s99
      %p108 = scmp.eq.s32.totalorder %s20, 0
      %p109 = por %p107, %p108
      %p110 = scmp.ne.s32.totalorder %s98, %s99
      %p111 = scmp.eq.s32.totalorder %s21, 3
      %p112 = por %p110, %p111
      %p114 = scmp.ne.s32.totalorder %s99, %s113
      %p115 = scmp.eq.s32.totalorder %s21, 0
      %p116 = por %p114, %p115
      %s118 = sadd.s32 %s117, 1
      %p121 = scmp.eq.s32.totalorder %s15, 3
      %p122 = scmp.ne.s32.totalorder %s117, %s119
      %p123 = scmp.eq.s32.totalorder %s15, 0
      %p124 = por %p122, %p123
      %p125 = scmp.ne.s32.totalorder %s117, %s119
      %p126 = scmp.eq.s32.totalorder %s20, 3
      %p127 = por %p125, %p126
      %p128 = scmp.ne.s32.totalorder %s119, %s120
      %p129 = scmp.eq.s32.totalorder %s20, 0
      %p130 = por %p128, %p129
      %p131 = scmp.ne.s32.totalorder %s119, %s120
      %p132 = scmp.eq.s32.totalorder %s21, 3
      %p133 = por %p131, %p132
      %p135 = scmp.ne.s32.totalorder %s120, %s134
      %p136 = scmp.eq.s32.totalorder %s21, 0
      %p137 = por %p135, %p136
      %s139 = sadd.s32 %s138, 1
      %p142 = scmp.eq.s32.totalorder %s15, 3
      %p143 = scmp.ne.s32.totalorder %s138, %s140
      %p144 = scmp.eq.s32.totalorder %s15, 0
      %p145 = por %p143, %p144
      %p146 = scmp.ne.s32.totalorder %s138, %s140
      %p147 = scmp.eq.s32.totalorder %s20, 3
      %p148 = por %p146, %p147
      %p149 = scmp.ne.s32.totalorder %s140, %s141
      %p150 = scmp.eq.s32.totalorder %s20, 0
      %p151 = por %p149, %p150
      %p152 = scmp.ne.s32.totalorder %s140, %s141
      %p153 = scmp.eq.s32.totalorder %s21, 3
      %p154 = por %p152, %p153
      %p156 = scmp.ne.s32.totalorder %s141, %s155
      %p157 = scmp.eq.s32.totalorder %s21, 0
      %p158 = por %p156, %p157
      %s159 = ssub.s32 %s15, %s22
      %p160 = scmp.eq.s32.totalorder %s159, 0
      %s162 = sadd.s32 %s161, 1
      %s163 = scalar_select %p160, %s161, %s162
      %p166 = pneg %p160
      %p167 = scmp.eq.s32.totalorder %s15, 3
      %p168 = por %p166, %p167
      %p169 = scmp.ne.s32.totalorder %s161, %s164
      %p170 = scmp.eq.s32.totalorder %s15, 0
      %p171 = por %p169, %p170
      %p172 = scmp.ne.s32.totalorder %s161, %s164
      %p173 = scmp.eq.s32.totalorder %s20, 3
      %p174 = por %p172, %p173
      %p175 = scmp.ne.s32.totalorder %s164, %s165
      %p176 = scmp.eq.s32.totalorder %s20, 0
      %p177 = por %p175, %p176
      %p178 = scmp.ne.s32.totalorder %s164, %s165
      %p179 = scmp.eq.s32.totalorder %s21, 3
      %p180 = por %p178, %p179
      %p182 = scmp.ne.s32.totalorder %s165, %s181
      %p183 = scmp.eq.s32.totalorder %s21, 0
      %p184 = por %p182, %p183
      %p185 = scmp.le.s32.totalorder 1, %s15
      %p186 = scmp.lt.s32.totalorder %s15, 5
      %p187 = pnand %p185, %p186
      %p188 = pneg %p187
      // Predicated region
      $region9: #{tpu_custom_call.1} parent=5 // pred_check
        _
      $region10: #{tpu_custom_call.1} parent=5 // pred_check_branch
        %190 = sbr.rel (%p187) target = $region12
      $region11: #{tpu_custom_call.1} parent=5 // pred_region
        %s191 = ssub.s32 %s15, 1
        // Predicated region
        $region13: #{tpu_custom_call.1} parent=11 // pred_check
          %p192 = pneg %p88
        $region14: #{tpu_custom_call.1} parent=11 // pred_check_branch
          %194 = sbr.rel (%p192) target = $region16
        $region15: #{tpu_custom_call.1} parent=11 // pred_region
          _
        $region16: #{tpu_custom_call.1} parent=11 // pred_fallthru
          _
        // Predicated region
        $region17: #{tpu_custom_call.1} parent=11 // pred_check
          %p195 = pneg %p109
        $region18: #{tpu_custom_call.1} parent=11 // pred_check_branch
          %197 = sbr.rel (%p195) target = $region20
        $region19: #{tpu_custom_call.1} parent=11 // pred_region
          _
        $region20: #{tpu_custom_call.1} parent=11 // pred_fallthru
          _
        // Predicated region
        $region21: #{tpu_custom_call.1} parent=11 // pred_check
          %p198 = pneg %p130
        $region22: #{tpu_custom_call.1} parent=11 // pred_check_branch
          %200 = sbr.rel (%p198) target = $region24
        $region23: #{tpu_custom_call.1} parent=11 // pred_region
          _
        $region24: #{tpu_custom_call.1} parent=11 // pred_fallthru
          _
        // Predicated region
        $region25: #{tpu_custom_call.1} parent=11 // pred_check
          %p201 = pneg %p151
        $region26: #{tpu_custom_call.1} parent=11 // pred_check_branch
          %203 = sbr.rel (%p201) target = $region28
        $region27: #{tpu_custom_call.1} parent=11 // pred_region
          _
        $region28: #{tpu_custom_call.1} parent=11 // pred_fallthru
          _
      $region12: #{tpu_custom_call.1} parent=5 // pred_fallthru
        _
      %p204 = scmp.lt.s32.totalorder %s15, 4
      // Predicated region
      $region29: #{tpu_custom_call.1} parent=5 // pred_check
        %p205 = pneg %p204
      $region30: #{tpu_custom_call.1} parent=5 // pred_check_branch
        %207 = sbr.rel (%p205) target = $region32
      $region31: #{tpu_custom_call.1} parent=5 // pred_region
        // Predicated region
        $region33: #{tpu_custom_call.1} parent=31 // pred_check
          %p208 = pneg %p35
        $region34: #{tpu_custom_call.1} parent=31 // pred_check_branch
          %210 = sbr.rel (%p208) target = $region36
        $region35: #{tpu_custom_call.1} parent=31 // pred_region
          %p211 = scmp.lt.s32.totalorder %s15, 3
          %s212 = scalar_select %p211, %s15, 3
          %s213 = smul.addr %s212, 8
          %s214 = scalar_lea.vmem %s0, %s213
        $region36: #{tpu_custom_call.1} parent=31 // pred_fallthru
          _
        // Predicated region
        $region37: #{tpu_custom_call.1} parent=31 // pred_check
          %p215 = pneg %p61
        $region38: #{tpu_custom_call.1} parent=31 // pred_check_branch
          %217 = sbr.rel (%p215) target = $region40
        $region39: #{tpu_custom_call.1} parent=31 // pred_region
          %p218 = scmp.lt.s32.totalorder %s15, 3
          %s219 = scalar_select %p218, %s15, 3
          %s220 = smul.addr %s219, 4
          %s221 = smul.addr %s220, 8
          %s222 = scalar_lea.vmem %s1, %s221
        $region40: #{tpu_custom_call.1} parent=31 // pred_fallthru
          _
      $region32: #{tpu_custom_call.1} parent=5 // pred_fallthru
        _
      %p223 = scmp.le.s32.totalorder 1, %s15
      %p224 = scmp.lt.s32.totalorder %s15, 5
      %p225 = pnand %p223, %p224
      %p226 = pneg %p225
      // Predicated region
      $region41: #{tpu_custom_call.1} parent=5 // pred_check
        _
      $region42: #{tpu_custom_call.1} parent=5 // pred_check_branch
        %228 = sbr.rel (%p225) target = $region44
      $region43: #{tpu_custom_call.1} parent=5 // pred_region
        %s229 = ssub.s32 %s15, 1
        %p230 = scmp.lt.s32.totalorder %s20, 3
        %s231 = scalar_select %p230, %s20, 3
        %s232 = smul.addr %s231, 8
        %s233 = scalar_lea.vmem %s0, %s232
        %p234 = pneg %p41
        %p235 = pneg %p38
        %p236 = scmp.lt.s32.totalorder %s20, 3
        %s237 = scalar_select %p236, %s20, 3
        %s238 = smul.addr %s237, 4
        %s239 = smul.addr %s238, 8
        %s240 = scalar_lea.vmem %s1, %s239
        %p241 = pneg %p67
        %p242 = pneg %p64
        %p243 = pneg %p88
        %p244 = pneg %p85
        %p245 = pneg %p109
        %p246 = pneg %p106
        %p247 = pneg %p130
        %p248 = pneg %p127
        %p249 = pneg %p151
        %p250 = pneg %p148
        %p251 = pneg %p177
        %p252 = pneg %p174
        %s253 = sand.u32 %s164, 1
        %s254 = scalar_lea.sflag [#allocation3], %s253
        %s255 = sand.u32 %s164, 1
        %s256 = smul.addr %s255, 8
        %s257 = scalar_lea.vmem [#allocation2], %s256
        %p258 = scmp.lt.s32.totalorder %s20, 3
        %s259 = scalar_select %p258, %s20, 3
        %s260 = smul.addr %s259, 8
        %s261 = scalar_lea.vmem %s0, %s260
        %p262 = scmp.lt.s32.totalorder %s20, 3
        %s263 = scalar_select %p262, %s20, 3
        %s264 = smul.addr %s263, 4
        %s265 = smul.addr %s264, 8
        %s266 = scalar_lea.vmem %s1, %s265
        %v267 = vld [vmem:[%s261] sm:$0xff]
        %v268 = vld [vmem:[%s2] sm:$0xff]
        %v269 = vld [vmem:[%s2 + $0x8] sm:$0xff]
        %v270 = vld [vmem:[%s2 + $0x10] sm:$0xff]
        %v271 = vld [vmem:[%s2 + $0x18] sm:$0xff]
        %vm272 = vcmask 261120
        %v274 = vsel %vm272, %v267, 0
        %276 = vmatprep.subr.mxu0 0.0
        %v277 = vand.u32 %v268, 4294901760
        %278 = vmatpush1.msra.mxu0 %v277
        %279 = vmatprep.subr.mxu0 0.0
        %v280 = vand.u32 %v269, 4294901760
        %281 = vmatpush1.msra.mxu0 %v280
        %282 = vmatprep.subr.mxu0 0.0
        %v283 = vand.u32 %v270, 4294901760
        %284 = vmatpush1.msra.mxu0 %v283
        %285 = vmatprep.subr.mxu0 0.0
        %v286 = vand.u32 %v271, 4294901760
        %287 = vmatpush1.msra.mxu0 %v286
        %288 = vmatprep.subr.mxu0 0.0
        %289 = vmatpush1.msra.mxu0 0.0
        %290 = vmatprep.subr.mxu0 0.0
        %291 = vmatpush1.msra.mxu0 0.0
        %292 = vmatprep.subr.mxu0 0.0
        %293 = vmatpush1.msra.mxu0 0.0
        %294 = vmatprep.subr.mxu0 0.0
        %295 = vmatpush1.msra.mxu0 0.0
        %296 = vmatprep.subr.mxu0 0.0
        %297 = vmatpush1.msra.mxu0 0.0
        %298 = vmatprep.subr.mxu0 0.0
        %299 = vmatpush1.msra.mxu0 0.0
        %300 = vmatprep.subr.mxu0 0.0
        %301 = vmatpush1.msra.mxu0 0.0
        %302 = vmatprep.subr.mxu0 0.0
        %303 = vmatpush1.msra.mxu0 0.0
        %304 = vmatprep.subr.mxu0 0.0
        %305 = vmatpush1.msra.mxu0 0.0
        %306 = vmatprep.subr.mxu0 0.0
        %307 = vmatpush1.msra.mxu0 0.0
        %308 = vmatprep.subr.mxu0 0.0
        %309 = vmatpush1.msra.mxu0 0.0
        %310 = vmatprep.subr.mxu0 0.0
        %311 = vmatpush1.msra.mxu0 0.0
        %312 = vmatprep.subr.mxu0 0.0
        %313 = vmatpush1.msra.mxu0 0.0
        %314 = vmatprep.subr.mxu0 0.0
        %315 = vmatpush1.msra.mxu0 0.0
        %316 = vmatprep.subr.mxu0 0.0
        %317 = vmatpush1.msra.mxu0 0.0
        %318 = vmatprep.subr.mxu0 0.0
        %319 = vmatpush1.msra.mxu0 0.0
        %320 = vmatprep.subr.mxu0 0.0
        %321 = vmatpush1.msra.mxu0 0.0
        %322 = vmatprep.subr.mxu0 0.0
        %323 = vmatpush1.msra.mxu0 0.0
        %324 = vmatprep.subr.mxu0 0.0
        %325 = vmatpush1.msra.mxu0 0.0
        %326 = vmatprep.subr.mxu0 0.0
        %327 = vmatpush1.msra.mxu0 0.0
        %328 = vmatprep.subr.mxu0 0.0
        %329 = vmatpush1.msra.mxu0 0.0
        %330 = vmatprep.subr.mxu0 0.0
        %331 = vmatpush1.msra.mxu0 0.0
        %332 = vmatprep.subr.mxu0 0.0
        %333 = vmatpush1.msra.mxu0 0.0
        %334 = vmatprep.subr.mxu0 0.0
        %335 = vmatpush1.msra.mxu0 0.0
        %336 = vmatprep.subr.mxu0 0.0
        %337 = vmatpush1.msra.mxu0 0.0
        %338 = vmatprep.subr.mxu0 0.0
        %339 = vmatpush1.msra.mxu0 0.0
        %340 = vmatprep.subr.mxu0 0.0
        %341 = vmatpush1.msra.mxu0 0.0
        %342 = vmatprep.subr.mxu0 0.0
        %343 = vmatpush1.msra.mxu0 0.0
        %344 = vmatprep.mubr.f32.mxu0 0.0
        %v345 = vand.u32 %v274, 4294901760
        %v346 = vsub.f32 %v274, %v345
        %v347 = vand.u32 %v346, 4294901760
        %v348 = vsub.f32 %v346, %v347
        %v349 = vand.u32 %v348, 4294901760
        %350 = vmatmul.mubr.f32.gmra.mrb[0].mxu0 %v349
        %v351 = vpop.f32.mrb[0].mxu0
        %v352 = vadd.f32 0.0, %v351
        %v353 = vpop.f32.mrb[0].mxu0
        %354 = vdwg.mxu0
        %355 = vmatprep.subr.mxu0 0.0
        %v356 = vand.u32 %v268, 4294901760
        %v357 = vsub.f32 %v268, %v356
        %v358 = vand.u32 %v357, 4294901760
        %v359 = vsub.f32 %v357, %v358
        %v360 = vand.u32 %v359, 4294901760
        %361 = vmatpush1.msra.mxu0 %v360
        %362 = vmatprep.subr.mxu0 0.0
        %v363 = vand.u32 %v269, 4294901760
        %v364 = vsub.f32 %v269, %v363
        %v365 = vand.u32 %v364, 4294901760
        %v366 = vsub.f32 %v364, %v365
        %v367 = vand.u32 %v366, 4294901760
        %368 = vmatpush1.msra.mxu0 %v367
        %369 = vmatprep.subr.mxu0 0.0
        %v370 = vand.u32 %v270, 4294901760
        %v371 = vsub.f32 %v270, %v370
        %v372 = vand.u32 %v371, 4294901760
        %v373 = vsub.f32 %v371, %v372
        %v374 = vand.u32 %v373, 4294901760
        %375 = vmatpush1.msra.mxu0 %v374
        %376 = vmatprep.subr.mxu0 0.0
        %v377 = vand.u32 %v271, 4294901760
        %v378 = vsub.f32 %v271, %v377
        %v379 = vand.u32 %v378, 4294901760
        %v380 = vsub.f32 %v378, %v379
        %v381 = vand.u32 %v380, 4294901760
        %382 = vmatpush1.msra.mxu0 %v381
        %383 = vmatprep.subr.mxu0 0.0
        %384 = vmatpush1.msra.mxu0 0.0
        %385 = vmatprep.subr.mxu0 0.0
        %386 = vmatpush1.msra.mxu0 0.0
        %387 = vmatprep.subr.mxu0 0.0
        %388 = vmatpush1.msra.mxu0 0.0
        %389 = vmatprep.subr.mxu0 0.0
        %390 = vmatpush1.msra.mxu0 0.0
        %391 = vmatprep.subr.mxu0 0.0
        %392 = vmatpush1.msra.mxu0 0.0
        %393 = vmatprep.subr.mxu0 0.0
        %394 = vmatpush1.msra.mxu0 0.0
        %395 = vmatprep.subr.mxu0 0.0
        %396 = vmatpush1.msra.mxu0 0.0
        %397 = vmatprep.subr.mxu0 0.0
        %398 = vmatpush1.msra.mxu0 0.0
        %399 = vmatprep.subr.mxu0 0.0
        %400 = vmatpush1.msra.mxu0 0.0
        %401 = vmatprep.subr.mxu0 0.0
        %402 = vmatpush1.msra.mxu0 0.0
        %403 = vmatprep.subr.mxu0 0.0
        %404 = vmatpush1.msra.mxu0 0.0
        %405 = vmatprep.subr.mxu0 0.0
        %406 = vmatpush1.msra.mxu0 0.0
        %407 = vmatprep.subr.mxu0 0.0
        %408 = vmatpush1.msra.mxu0 0.0
        %409 = vmatprep.subr.mxu0 0.0
        %410 = vmatpush1.msra.mxu0 0.0
        %411 = vmatprep.subr.mxu0 0.0
        %412 = vmatpush1.msra.mxu0 0.0
        %413 = vmatprep.subr.mxu0 0.0
        %414 = vmatpush1.msra.mxu0 0.0
        %415 = vmatprep.subr.mxu0 0.0
        %416 = vmatpush1.msra.mxu0 0.0
        %417 = vmatprep.subr.mxu0 0.0
        %418 = vmatpush1.msra.mxu0 0.0
        %419 = vmatprep.subr.mxu0 0.0
        %420 = vmatpush1.msra.mxu0 0.0
        %421 = vmatprep.subr.mxu0 0.0
        %422 = vmatpush1.msra.mxu0 0.0
        %423 = vmatprep.subr.mxu0 0.0
        %424 = vmatpush1.msra.mxu0 0.0
        %425 = vmatprep.subr.mxu0 0.0
        %426 = vmatpush1.msra.mxu0 0.0
        %427 = vmatprep.subr.mxu0 0.0
        %428 = vmatpush1.msra.mxu0 0.0
        %429 = vmatprep.subr.mxu0 0.0
        %430 = vmatpush1.msra.mxu0 0.0
        %431 = vmatprep.subr.mxu0 0.0
        %432 = vmatpush1.msra.mxu0 0.0
        %433 = vmatprep.subr.mxu0 0.0
        %434 = vmatpush1.msra.mxu0 0.0
        %435 = vmatprep.subr.mxu0 0.0
        %436 = vmatpush1.msra.mxu0 0.0
        %437 = vmatprep.subr.mxu0 0.0
        %438 = vmatpush1.msra.mxu0 0.0
        %439 = vmatprep.mubr.f32.mxu0 0.0
        %v440 = vand.u32 %v274, 4294901760
        %441 = vmatmul.mubr.f32.gmra.mrb[0].mxu0 %v440
        %v442 = vpop.f32.mrb[0].mxu0
        %v443 = vadd.f32 %v352, %v442
        %v444 = vpop.f32.mrb[0].mxu0
        %445 = vdwg.mxu0
        %446 = vmatprep.subr.mxu0 0.0
        %v447 = vand.u32 %v268, 4294901760
        %v448 = vsub.f32 %v268, %v447
        %449 = vmatpush1.msra.mxu0 %v448
        %450 = vmatprep.subr.mxu0 0.0
        %v451 = vand.u32 %v269, 4294901760
        %v452 = vsub.f32 %v269, %v451
        %453 = vmatpush1.msra.mxu0 %v452
        %454 = vmatprep.subr.mxu0 0.0
        %v455 = vand.u32 %v270, 4294901760
        %v456 = vsub.f32 %v270, %v455
        %457 = vmatpush1.msra.mxu0 %v456
        %458 = vmatprep.subr.mxu0 0.0
        %v459 = vand.u32 %v271, 4294901760
        %v460 = vsub.f32 %v271, %v459
        %461 = vmatpush1.msra.mxu0 %v460
        %462 = vmatprep.subr.mxu0 0.0
        %463 = vmatpush1.msra.mxu0 0.0
        %464 = vmatprep.subr.mxu0 0.0
        %465 = vmatpush1.msra.mxu0 0.0
        %466 = vmatprep.subr.mxu0 0.0
        %467 = vmatpush1.msra.mxu0 0.0
        %468 = vmatprep.subr.mxu0 0.0
        %469 = vmatpush1.msra.mxu0 0.0
        %470 = vmatprep.subr.mxu0 0.0
        %471 = vmatpush1.msra.mxu0 0.0
        %472 = vmatprep.subr.mxu0 0.0
        %473 = vmatpush1.msra.mxu0 0.0
        %474 = vmatprep.subr.mxu0 0.0
        %475 = vmatpush1.msra.mxu0 0.0
        %476 = vmatprep.subr.mxu0 0.0
        %477 = vmatpush1.msra.mxu0 0.0
        %478 = vmatprep.subr.mxu0 0.0
        %479 = vmatpush1.msra.mxu0 0.0
        %480 = vmatprep.subr.mxu0 0.0
        %481 = vmatpush1.msra.mxu0 0.0
        %482 = vmatprep.subr.mxu0 0.0
        %483 = vmatpush1.msra.mxu0 0.0
        %484 = vmatprep.subr.mxu0 0.0
        %485 = vmatpush1.msra.mxu0 0.0
        %486 = vmatprep.subr.mxu0 0.0
        %487 = vmatpush1.msra.mxu0 0.0
        %488 = vmatprep.subr.mxu0 0.0
        %489 = vmatpush1.msra.mxu0 0.0
        %490 = vmatprep.subr.mxu0 0.0
        %491 = vmatpush1.msra.mxu0 0.0
        %492 = vmatprep.subr.mxu0 0.0
        %493 = vmatpush1.msra.mxu0 0.0
        %494 = vmatprep.subr.mxu0 0.0
        %495 = vmatpush1.msra.mxu0 0.0
        %496 = vmatprep.subr.mxu0 0.0
        %497 = vmatpush1.msra.mxu0 0.0
        %498 = vmatprep.subr.mxu0 0.0
        %499 = vmatpush1.msra.mxu0 0.0
        %500 = vmatprep.subr.mxu0 0.0
        %501 = vmatpush1.msra.mxu0 0.0
        %502 = vmatprep.subr.mxu0 0.0
        %503 = vmatpush1.msra.mxu0 0.0
        %504 = vmatprep.subr.mxu0 0.0
        %505 = vmatpush1.msra.mxu0 0.0
        %506 = vmatprep.subr.mxu0 0.0
        %507 = vmatpush1.msra.mxu0 0.0
        %508 = vmatprep.subr.mxu0 0.0
        %509 = vmatpush1.msra.mxu0 0.0
        %510 = vmatprep.subr.mxu0 0.0
        %511 = vmatpush1.msra.mxu0 0.0
        %512 = vmatprep.subr.mxu0 0.0
        %513 = vmatpush1.msra.mxu0 0.0
        %514 = vmatprep.subr.mxu0 0.0
        %515 = vmatpush1.msra.mxu0 0.0
        %516 = vmatprep.subr.mxu0 0.0
        %517 = vmatpush1.msra.mxu0 0.0
        %518 = vmatprep.mubr.f32.mxu0 0.0
        %v519 = vand.u32 %v274, 4294901760
        %v520 = vsub.f32 %v274, %v519
        %521 = vmatmul.mubr.f32.gmra.mrb[0].mxu0 %v520
        %v522 = vpop.f32.mrb[0].mxu0
        %v523 = vadd.f32 %v443, %v522
        %v524 = vpop.f32.mrb[0].mxu0
        %525 = vdwg.mxu0
        %526 = vmatprep.subr.mxu0 0.0
        %v527 = vand.u32 %v268, 4294901760
        %528 = vmatpush1.msra.mxu0 %v527
        %529 = vmatprep.subr.mxu0 0.0
        %v530 = vand.u32 %v269, 4294901760
        %531 = vmatpush1.msra.mxu0 %v530
        %532 = vmatprep.subr.mxu0 0.0
        %v533 = vand.u32 %v270, 4294901760
        %534 = vmatpush1.msra.mxu0 %v533
        %535 = vmatprep.subr.mxu0 0.0
        %v536 = vand.u32 %v271, 4294901760
        %537 = vmatpush1.msra.mxu0 %v536
        %538 = vmatprep.subr.mxu0 0.0
        %539 = vmatpush1.msra.mxu0 0.0
        %540 = vmatprep.subr.mxu0 0.0
        %541 = vmatpush1.msra.mxu0 0.0
        %542 = vmatprep.subr.mxu0 0.0
        %543 = vmatpush1.msra.mxu0 0.0
        %544 = vmatprep.subr.mxu0 0.0
        %545 = vmatpush1.msra.mxu0 0.0
        %546 = vmatprep.subr.mxu0 0.0
        %547 = vmatpush1.msra.mxu0 0.0
        %548 = vmatprep.subr.mxu0 0.0
        %549 = vmatpush1.msra.mxu0 0.0
        %550 = vmatprep.subr.mxu0 0.0
        %551 = vmatpush1.msra.mxu0 0.0
        %552 = vmatprep.subr.mxu0 0.0
        %553 = vmatpush1.msra.mxu0 0.0
        %554 = vmatprep.subr.mxu0 0.0
        %555 = vmatpush1.msra.mxu0 0.0
        %556 = vmatprep.subr.mxu0 0.0
        %557 = vmatpush1.msra.mxu0 0.0
        %558 = vmatprep.subr.mxu0 0.0
        %559 = vmatpush1.msra.mxu0 0.0
        %560 = vmatprep.subr.mxu0 0.0
        %561 = vmatpush1.msra.mxu0 0.0
        %562 = vmatprep.subr.mxu0 0.0
        %563 = vmatpush1.msra.mxu0 0.0
        %564 = vmatprep.subr.mxu0 0.0
        %565 = vmatpush1.msra.mxu0 0.0
        %566 = vmatprep.subr.mxu0 0.0
        %567 = vmatpush1.msra.mxu0 0.0
        %568 = vmatprep.subr.mxu0 0.0
        %569 = vmatpush1.msra.mxu0 0.0
        %570 = vmatprep.subr.mxu0 0.0
        %571 = vmatpush1.msra.mxu0 0.0
        %572 = vmatprep.subr.mxu0 0.0
        %573 = vmatpush1.msra.mxu0 0.0
        %574 = vmatprep.subr.mxu0 0.0
        %575 = vmatpush1.msra.mxu0 0.0
        %576 = vmatprep.subr.mxu0 0.0
        %577 = vmatpush1.msra.mxu0 0.0
        %578 = vmatprep.subr.mxu0 0.0
        %579 = vmatpush1.msra.mxu0 0.0
        %580 = vmatprep.subr.mxu0 0.0
        %581 = vmatpush1.msra.mxu0 0.0
        %582 = vmatprep.subr.mxu0 0.0
        %583 = vmatpush1.msra.mxu0 0.0
        %584 = vmatprep.subr.mxu0 0.0
        %585 = vmatpush1.msra.mxu0 0.0
        %586 = vmatprep.subr.mxu0 0.0
        %587 = vmatpush1.msra.mxu0 0.0
        %588 = vmatprep.subr.mxu0 0.0
        %589 = vmatpush1.msra.mxu0 0.0
        %590 = vmatprep.subr.mxu0 0.0
        %591 = vmatpush1.msra.mxu0 0.0
        %592 = vmatprep.subr.mxu0 0.0
        %593 = vmatpush1.msra.mxu0 0.0
        %594 = vmatprep.mubr.f32.mxu0 0.0
        %v595 = vand.u32 %v274, 4294901760
        %v596 = vsub.f32 %v274, %v595
        %v597 = vand.u32 %v596, 4294901760
        %598 = vmatmul.mubr.f32.gmra.mrb[0].mxu0 %v597
        %v599 = vpop.f32.mrb[0].mxu0
        %v600 = vadd.f32 %v523, %v599
        %v601 = vpop.f32.mrb[0].mxu0
        %602 = vdwg.mxu0
        %603 = vmatprep.subr.mxu0 0.0
        %v604 = vand.u32 %v268, 4294901760
        %v605 = vsub.f32 %v268, %v604
        %v606 = vand.u32 %v605, 4294901760
        %607 = vmatpush1.msra.mxu0 %v606
        %608 = vmatprep.subr.mxu0 0.0
        %v609 = vand.u32 %v269, 4294901760
        %v610 = vsub.f32 %v269, %v609
        %v611 = vand.u32 %v610, 4294901760
        %612 = vmatpush1.msra.mxu0 %v611
        %613 = vmatprep.subr.mxu0 0.0
        %v614 = vand.u32 %v270, 4294901760
        %v615 = vsub.f32 %v270, %v614
        %v616 = vand.u32 %v615, 4294901760
        %617 = vmatpush1.msra.mxu0 %v616
        %618 = vmatprep.subr.mxu0 0.0
        %v619 = vand.u32 %v271, 4294901760
        %v620 = vsub.f32 %v271, %v619
        %v621 = vand.u32 %v620, 4294901760
        %622 = vmatpush1.msra.mxu0 %v621
        %623 = vmatprep.subr.mxu0 0.0
        %624 = vmatpush1.msra.mxu0 0.0
        %625 = vmatprep.subr.mxu0 0.0
        %626 = vmatpush1.msra.mxu0 0.0
        %627 = vmatprep.subr.mxu0 0.0
        %628 = vmatpush1.msra.mxu0 0.0
        %629 = vmatprep.subr.mxu0 0.0
        %630 = vmatpush1.msra.mxu0 0.0
        %631 = vmatprep.subr.mxu0 0.0
        %632 = vmatpush1.msra.mxu0 0.0
        %633 = vmatprep.subr.mxu0 0.0
        %634 = vmatpush1.msra.mxu0 0.0
        %635 = vmatprep.subr.mxu0 0.0
        %636 = vmatpush1.msra.mxu0 0.0
        %637 = vmatprep.subr.mxu0 0.0
        %638 = vmatpush1.msra.mxu0 0.0
        %639 = vmatprep.subr.mxu0 0.0
        %640 = vmatpush1.msra.mxu0 0.0
        %641 = vmatprep.subr.mxu0 0.0
        %642 = vmatpush1.msra.mxu0 0.0
        %643 = vmatprep.subr.mxu0 0.0
        %644 = vmatpush1.msra.mxu0 0.0
        %645 = vmatprep.subr.mxu0 0.0
        %646 = vmatpush1.msra.mxu0 0.0
        %647 = vmatprep.subr.mxu0 0.0
        %648 = vmatpush1.msra.mxu0 0.0
        %649 = vmatprep.subr.mxu0 0.0
        %650 = vmatpush1.msra.mxu0 0.0
        %651 = vmatprep.subr.mxu0 0.0
        %652 = vmatpush1.msra.mxu0 0.0
        %653 = vmatprep.subr.mxu0 0.0
        %654 = vmatpush1.msra.mxu0 0.0
        %655 = vmatprep.subr.mxu0 0.0
        %656 = vmatpush1.msra.mxu0 0.0
        %657 = vmatprep.subr.mxu0 0.0
        %658 = vmatpush1.msra.mxu0 0.0
        %659 = vmatprep.subr.mxu0 0.0
        %660 = vmatpush1.msra.mxu0 0.0
        %661 = vmatprep.subr.mxu0 0.0
        %662 = vmatpush1.msra.mxu0 0.0
        %663 = vmatprep.subr.mxu0 0.0
        %664 = vmatpush1.msra.mxu0 0.0
        %665 = vmatprep.subr.mxu0 0.0
        %666 = vmatpush1.msra.mxu0 0.0
        %667 = vmatprep.subr.mxu0 0.0
        %668 = vmatpush1.msra.mxu0 0.0
        %669 = vmatprep.subr.mxu0 0.0
        %670 = vmatpush1.msra.mxu0 0.0
        %671 = vmatprep.subr.mxu0 0.0
        %672 = vmatpush1.msra.mxu0 0.0
        %673 = vmatprep.subr.mxu0 0.0
        %674 = vmatpush1.msra.mxu0 0.0
        %675 = vmatprep.subr.mxu0 0.0
        %676 = vmatpush1.msra.mxu0 0.0
        %677 = vmatprep.subr.mxu0 0.0
        %678 = vmatpush1.msra.mxu0 0.0
        %679 = vmatprep.mubr.f32.mxu0 0.0
        %v680 = vand.u32 %v274, 4294901760
        %681 = vmatmul.mubr.f32.gmra.mrb[0].mxu0 %v680
        %v682 = vpop.f32.mrb[0].mxu0
        %v683 = vadd.f32 %v600, %v682
        %v684 = vpop.f32.mrb[0].mxu0
        %685 = vdwg.mxu0
        %686 = vmatprep.subr.mxu0 0.0
        %v687 = vand.u32 %v268, 4294901760
        %688 = vmatpush1.msra.mxu0 %v687
        %689 = vmatprep.subr.mxu0 0.0
        %v690 = vand.u32 %v269, 4294901760
        %691 = vmatpush1.msra.mxu0 %v690
        %692 = vmatprep.subr.mxu0 0.0
        %v693 = vand.u32 %v270, 4294901760
        %694 = vmatpush1.msra.mxu0 %v693
        %695 = vmatprep.subr.mxu0 0.0
        %v696 = vand.u32 %v271, 4294901760
        %697 = vmatpush1.msra.mxu0 %v696
        %698 = vmatprep.subr.mxu0 0.0
        %699 = vmatpush1.msra.mxu0 0.0
        %700 = vmatprep.subr.mxu0 0.0
        %701 = vmatpush1.msra.mxu0 0.0
        %702 = vmatprep.subr.mxu0 0.0
        %703 = vmatpush1.msra.mxu0 0.0
        %704 = vmatprep.subr.mxu0 0.0
        %705 = vmatpush1.msra.mxu0 0.0
        %706 = vmatprep.subr.mxu0 0.0
        %707 = vmatpush1.msra.mxu0 0.0
        %708 = vmatprep.subr.mxu0 0.0
        %709 = vmatpush1.msra.mxu0 0.0
        %710 = vmatprep.subr.mxu0 0.0
        %711 = vmatpush1.msra.mxu0 0.0
        %712 = vmatprep.subr.mxu0 0.0
        %713 = vmatpush1.msra.mxu0 0.0
        %714 = vmatprep.subr.mxu0 0.0
        %715 = vmatpush1.msra.mxu0 0.0
        %716 = vmatprep.subr.mxu0 0.0
        %717 = vmatpush1.msra.mxu0 0.0
        %718 = vmatprep.subr.mxu0 0.0
        %719 = vmatpush1.msra.mxu0 0.0
        %720 = vmatprep.subr.mxu0 0.0
        %721 = vmatpush1.msra.mxu0 0.0
        %722 = vmatprep.subr.mxu0 0.0
        %723 = vmatpush1.msra.mxu0 0.0
        %724 = vmatprep.subr.mxu0 0.0
        %725 = vmatpush1.msra.mxu0 0.0
        %726 = vmatprep.subr.mxu0 0.0
        %727 = vmatpush1.msra.mxu0 0.0
        %728 = vmatprep.subr.mxu0 0.0
        %729 = vmatpush1.msra.mxu0 0.0
        %730 = vmatprep.subr.mxu0 0.0
        %731 = vmatpush1.msra.mxu0 0.0
        %732 = vmatprep.subr.mxu0 0.0
        %733 = vmatpush1.msra.mxu0 0.0
        %734 = vmatprep.subr.mxu0 0.0
        %735 = vmatpush1.msra.mxu0 0.0
        %736 = vmatprep.subr.mxu0 0.0
        %737 = vmatpush1.msra.mxu0 0.0
        %738 = vmatprep.subr.mxu0 0.0
        %739 = vmatpush1.msra.mxu0 0.0
        %740 = vmatprep.subr.mxu0 0.0
        %741 = vmatpush1.msra.mxu0 0.0
        %742 = vmatprep.subr.mxu0 0.0
        %743 = vmatpush1.msra.mxu0 0.0
        %744 = vmatprep.subr.mxu0 0.0
        %745 = vmatpush1.msra.mxu0 0.0
        %746 = vmatprep.subr.mxu0 0.0
        %747 = vmatpush1.msra.mxu0 0.0
        %748 = vmatprep.subr.mxu0 0.0
        %749 = vmatpush1.msra.mxu0 0.0
        %750 = vmatprep.subr.mxu0 0.0
        %751 = vmatpush1.msra.mxu0 0.0
        %752 = vmatprep.subr.mxu0 0.0
        %753 = vmatpush1.msra.mxu0 0.0
        %754 = vmatprep.mubr.f32.mxu0 0.0
        %v755 = vand.u32 %v274, 4294901760
        %756 = vmatmul.mubr.f32.gmra.mrb[0].mxu0 %v755
        %v757 = vpop.f32.mrb[0].mxu0
        %v758 = vadd.f32 %v683, %v757
        %v759 = vpop.f32.mrb[0].mxu0
        %760 = vdwg.mxu0
        %v761 = vld [vmem:[%s266] sm:$0xff]
        %v762 = vld [vmem:[%s266 + $0x8] sm:$0xff]
        %v763 = vld [vmem:[%s266 + $0x10] sm:$0xff]
        %v764 = vld [vmem:[%s266 + $0x18] sm:$0xff]
        %v765 = vld [vmem:[%s3] sm:$0xff]
        %v766 = vld [vmem:[%s3 + $0x8] sm:$0xff]
        %v767 = vld [vmem:[%s3 + $0x10] sm:$0xff]
        %v768 = vld [vmem:[%s3 + $0x18] sm:$0xff]
        %v769 = vld [vmem:[%s3 + $0x20] sm:$0xff]
        %v770 = vld [vmem:[%s3 + $0x28] sm:$0xff]
        %v771 = vld [vmem:[%s3 + $0x30] sm:$0xff]
        %v772 = vld [vmem:[%s3 + $0x38] sm:$0xff]
        %vm773 = vcmask 523264
        %v775 = vsel %vm773, %v761, 0
        %v778 = vsel %vm773, %v762, 0
        %v781 = vsel %vm773, %v763, 0
        %v784 = vsel %vm773, %v764, 0
        %786 = vmatprep.subr.mxu0 0.0
        %v787 = vand.u32 %v765, 4294901760
        %788 = vmatpush1.msra.mxu0 %v787
        %789 = vmatprep.subr.mxu0 0.0
        %v790 = vand.u32 %v766, 4294901760
        %791 = vmatpush1.msra.mxu0 %v790
        %792 = vmatprep.subr.mxu0 0.0
        %v793 = vand.u32 %v767, 4294901760
        %794 = vmatpush1.msra.mxu0 %v793
        %795 = vmatprep.subr.mxu0 0.0
        %v796 = vand.u32 %v768, 4294901760
        %797 = vmatpush1.msra.mxu0 %v796
        %798 = vmatprep.subr.mxu0 0.0
        %v799 = vand.u32 %v769, 4294901760
        %800 = vmatpush1.msra.mxu0 %v799
        %801 = vmatprep.subr.mxu0 0.0
        %v802 = vand.u32 %v770, 4294901760
        %803 = vmatpush1.msra.mxu0 %v802
        %804 = vmatprep.subr.mxu0 0.0
        %v805 = vand.u32 %v771, 4294901760
        %806 = vmatpush1.msra.mxu0 %v805
        %807 = vmatprep.subr.mxu0 0.0
        %v808 = vand.u32 %v772, 4294901760
        %809 = vmatpush1.msra.mxu0 %v808
        %810 = vmatprep.subr.mxu0 0.0
        %811 = vmatpush1.msra.mxu0 0.0
        %812 = vmatprep.subr.mxu0 0.0
        %813 = vmatpush1.msra.mxu0 0.0
        %814 = vmatprep.subr.mxu0 0.0
        %815 = vmatpush1.msra.mxu0 0.0
        %816 = vmatprep.subr.mxu0 0.0
        %817 = vmatpush1.msra.mxu0 0.0
        %818 = vmatprep.subr.mxu0 0.0
        %819 = vmatpush1.msra.mxu0 0.0
        %820 = vmatprep.subr.mxu0 0.0
        %821 = vmatpush1.msra.mxu0 0.0
        %822 = vmatprep.subr.mxu0 0.0
        %823 = vmatpush1.msra.mxu0 0.0
        %824 = vmatprep.subr.mxu0 0.0
        %825 = vmatpush1.msra.mxu0 0.0
        %826 = vmatprep.subr.mxu0 0.0
        %827 = vmatpush1.msra.mxu0 0.0
        %828 = vmatprep.subr.mxu0 0.0
        %829 = vmatpush1.msra.mxu0 0.0
        %830 = vmatprep.subr.mxu0 0.0
        %831 = vmatpush1.msra.mxu0 0.0
        %832 = vmatprep.subr.mxu0 0.0
        %833 = vmatpush1.msra.mxu0 0.0
        %834 = vmatprep.subr.mxu0 0.0
        %835 = vmatpush1.msra.mxu0 0.0
        %836 = vmatprep.subr.mxu0 0.0
        %837 = vmatpush1.msra.mxu0 0.0
        %838 = vmatprep.subr.mxu0 0.0
        %839 = vmatpush1.msra.mxu0 0.0
        %840 = vmatprep.subr.mxu0 0.0
        %841 = vmatpush1.msra.mxu0 0.0
        %842 = vmatprep.subr.mxu0 0.0
        %843 = vmatpush1.msra.mxu0 0.0
        %844 = vmatprep.subr.mxu0 0.0
        %845 = vmatpush1.msra.mxu0 0.0
        %846 = vmatprep.subr.mxu0 0.0
        %847 = vmatpush1.msra.mxu0 0.0
        %848 = vmatprep.subr.mxu0 0.0
        %849 = vmatpush1.msra.mxu0 0.0
        %850 = vmatprep.subr.mxu0 0.0
        %851 = vmatpush1.msra.mxu0 0.0
        %852 = vmatprep.subr.mxu0 0.0
        %853 = vmatpush1.msra.mxu0 0.0
        %854 = vmatprep.subr.mxu0 0.0
        %855 = vmatpush1.msra.mxu0 0.0
        %856 = vmatprep.subr.mxu0 0.0
        %857 = vmatpush1.msra.mxu0 0.0
        %858 = vmatprep.mubr.f32.mxu0 0.0
        %v859 = vand.u32 %v775, 4294901760
        %v860 = vsub.f32 %v775, %v859
        %v861 = vand.u32 %v860, 4294901760
        %v862 = vsub.f32 %v860, %v861
        %v863 = vand.u32 %v862, 4294901760
        %864 = vmatmul.mubr.f32.gmra.mrb[0].mxu0 %v863
        %v865 = vpop.f32.mrb[0].mxu0
        %v866 = vadd.f32 0.0, %v865
        %v867 = vpop.f32.mrb[0].mxu0
        %868 = vmatprep.mubr.f32.mxu0 0.0
        %v869 = vand.u32 %v778, 4294901760
        %v870 = vsub.f32 %v778, %v869
        %v871 = vand.u32 %v870, 4294901760
        %v872 = vsub.f32 %v870, %v871
        %v873 = vand.u32 %v872, 4294901760
        %874 = vmatmul.mubr.f32.gmra.mrb[0].mxu0 %v873
        %v875 = vpop.f32.mrb[0].mxu0
        %v876 = vadd.f32 0.0, %v875
        %v877 = vpop.f32.mrb[0].mxu0
        %878 = vmatprep.mubr.f32.mxu0 0.0
        %v879 = vand.u32 %v781, 4294901760
        %v880 = vsub.f32 %v781, %v879
        %v881 = vand.u32 %v880, 4294901760
        %v882 = vsub.f32 %v880, %v881
        %v883 = vand.u32 %v882, 4294901760
        %884 = vmatmul.mubr.f32.gmra.mrb[0].mxu0 %v883
        %v885 = vpop.f32.mrb[0].mxu0
        %v886 = vadd.f32 0.0, %v885
        %v887 = vpop.f32.mrb[0].mxu0
        %888 = vmatprep.mubr.f32.mxu0 0.0
        %v889 = vand.u32 %v784, 4294901760
        %v890 = vsub.f32 %v784, %v889
        %v891 = vand.u32 %v890, 4294901760
        %v892 = vsub.f32 %v890, %v891
        %v893 = vand.u32 %v892, 4294901760
        %894 = vmatmul.mubr.f32.gmra.mrb[0].mxu0 %v893
        %v895 = vpop.f32.mrb[0].mxu0
        %v896 = vadd.f32 0.0, %v895
        %v897 = vpop.f32.mrb[0].mxu0
        %898 = vdwg.mxu0
        %899 = vmatprep.subr.mxu0 0.0
        %v900 = vand.u32 %v765, 4294901760
        %v901 = vsub.f32 %v765, %v900
        %v902 = vand.u32 %v901, 4294901760
        %v903 = vsub.f32 %v901, %v902
        %v904 = vand.u32 %v903, 4294901760
        %905 = vmatpush1.msra.mxu0 %v904
        %906 = vmatprep.subr.mxu0 0.0
        %v907 = vand.u32 %v766, 4294901760
        %v908 = vsub.f32 %v766, %v907
        %v909 = vand.u32 %v908, 4294901760
        %v910 = vsub.f32 %v908, %v909
        %v911 = vand.u32 %v910, 4294901760
        %912 = vmatpush1.msra.mxu0 %v911
        %913 = vmatprep.subr.mxu0 0.0
        %v914 = vand.u32 %v767, 4294901760
        %v915 = vsub.f32 %v767, %v914
        %v916 = vand.u32 %v915, 4294901760
        %v917 = vsub.f32 %v915, %v916
        %v918 = vand.u32 %v917, 4294901760
        %919 = vmatpush1.msra.mxu0 %v918
        %920 = vmatprep.subr.mxu0 0.0
        %v921 = vand.u32 %v768, 4294901760
        %v922 = vsub.f32 %v768, %v921
        %v923 = vand.u32 %v922, 4294901760
        %v924 = vsub.f32 %v922, %v923
        %v925 = vand.u32 %v924, 4294901760
        %926 = vmatpush1.msra.mxu0 %v925
        %927 = vmatprep.subr.mxu0 0.0
        %v928 = vand.u32 %v769, 4294901760
        %v929 = vsub.f32 %v769, %v928
        %v930 = vand.u32 %v929, 4294901760
        %v931 = vsub.f32 %v929, %v930
        %v932 = vand.u32 %v931, 4294901760
        %933 = vmatpush1.msra.mxu0 %v932
        %934 = vmatprep.subr.mxu0 0.0
        %v935 = vand.u32 %v770, 4294901760
        %v936 = vsub.f32 %v770, %v935
        %v937 = vand.u32 %v936, 4294901760
        %v938 = vsub.f32 %v936, %v937
        %v939 = vand.u32 %v938, 4294901760
        %940 = vmatpush1.msra.mxu0 %v939
        %941 = vmatprep.subr.mxu0 0.0
        %v942 = vand.u32 %v771, 4294901760
        %v943 = vsub.f32 %v771, %v942
        %v944 = vand.u32 %v943, 4294901760
        %v945 = vsub.f32 %v943, %v944
        %v946 = vand.u32 %v945, 4294901760
        %947 = vmatpush1.msra.mxu0 %v946
        %948 = vmatprep.subr.mxu0 0.0
        %v949 = vand.u32 %v772, 4294901760
        %v950 = vsub.f32 %v772, %v949
        %v951 = vand.u32 %v950, 4294901760
        %v952 = vsub.f32 %v950, %v951
        %v953 = vand.u32 %v952, 4294901760
        %954 = vmatpush1.msra.mxu0 %v953
        %955 = vmatprep.subr.mxu0 0.0
        %956 = vmatpush1.msra.mxu0 0.0
        %957 = vmatprep.subr.mxu0 0.0
        %958 = vmatpush1.msra.mxu0 0.0
        %959 = vmatprep.subr.mxu0 0.0
        %960 = vmatpush1.msra.mxu0 0.0
        %961 = vmatprep.subr.mxu0 0.0
        %962 = vmatpush1.msra.mxu0 0.0
        %963 = vmatprep.subr.mxu0 0.0
        %964 = vmatpush1.msra.mxu0 0.0
        %965 = vmatprep.subr.mxu0 0.0
        %966 = vmatpush1.msra.mxu0 0.0
        %967 = vmatprep.subr.mxu0 0.0
        %968 = vmatpush1.msra.mxu0 0.0
        %969 = vmatprep.subr.mxu0 0.0
        %970 = vmatpush1.msra.mxu0 0.0
        %971 = vmatprep.subr.mxu0 0.0
        %972 = vmatpush1.msra.mxu0 0.0
        %973 = vmatprep.subr.mxu0 0.0
        %974 = vmatpush1.msra.mxu0 0.0
        %975 = vmatprep.subr.mxu0 0.0
        %976 = vmatpush1.msra.mxu0 0.0
        %977 = vmatprep.subr.mxu0 0.0
        %978 = vmatpush1.msra.mxu0 0.0
        %979 = vmatprep.subr.mxu0 0.0
        %980 = vmatpush1.msra.mxu0 0.0
        %981 = vmatprep.subr.mxu0 0.0
        %982 = vmatpush1.msra.mxu0 0.0
        %983 = vmatprep.subr.mxu0 0.0
        %984 = vmatpush1.msra.mxu0 0.0
        %985 = vmatprep.subr.mxu0 0.0
        %986 = vmatpush1.msra.mxu0 0.0
        %987 = vmatprep.subr.mxu0 0.0
        %988 = vmatpush1.msra.mxu0 0.0
        %989 = vmatprep.subr.mxu0 0.0
        %990 = vmatpush1.msra.mxu0 0.0
        %991 = vmatprep.subr.mxu0 0.0
        %992 = vmatpush1.msra.mxu0 0.0
        %993 = vmatprep.subr.mxu0 0.0
        %994 = vmatpush1.msra.mxu0 0.0
        %995 = vmatprep.subr.mxu0 0.0
        %996 = vmatpush1.msra.mxu0 0.0
        %997 = vmatprep.subr.mxu0 0.0
        %998 = vmatpush1.msra.mxu0 0.0
        %999 = vmatprep.subr.mxu0 0.0
        %1000 = vmatpush1.msra.mxu0 0.0
        %1001 = vmatprep.subr.mxu0 0.0
        %1002 = vmatpush1.msra.mxu0 0.0
        %1003 = vmatprep.mubr.f32.mxu0 0.0
        %v1004 = vand.u32 %v775, 4294901760
        %1005 = vmatmul.mubr.f32.gmra.mrb[0].mxu0 %v1004
        %v1006 = vpop.f32.mrb[0].mxu0
        %v1007 = vadd.f32 %v866, %v1006
        %v1008 = vpop.f32.mrb[0].mxu0
        %1009 = vmatprep.mubr.f32.mxu0 0.0
        %v1010 = vand.u32 %v778, 4294901760
        %1011 = vmatmul.mubr.f32.gmra.mrb[0].mxu0 %v1010
        %v1012 = vpop.f32.mrb[0].mxu0
        %v1013 = vadd.f32 %v876, %v1012
        %v1014 = vpop.f32.mrb[0].mxu0
        %1015 = vmatprep.mubr.f32.mxu0 0.0
        %v1016 = vand.u32 %v781, 4294901760
        %1017 = vmatmul.mubr.f32.gmra.mrb[0].mxu0 %v1016
        %v1018 = vpop.f32.mrb[0].mxu0
        %v1019 = vadd.f32 %v886, %v1018
        %v1020 = vpop.f32.mrb[0].mxu0
        %1021 = vmatprep.mubr.f32.mxu0 0.0
        %v1022 = vand.u32 %v784, 4294901760
        %1023 = vmatmul.mubr.f32.gmra.mrb[0].mxu0 %v1022
        %v1024 = vpop.f32.mrb[0].mxu0
        %v1025 = vadd.f32 %v896, %v1024
        %v1026 = vpop.f32.mrb[0].mxu0
        %1027 = vdwg.mxu0
        %1028 = vmatprep.subr.mxu0 0.0
        %v1029 = vand.u32 %v765, 4294901760
        %v1030 = vsub.f32 %v765, %v1029
        %1031 = vmatpush1.msra.mxu0 %v1030
        %1032 = vmatprep.subr.mxu0 0.0
        %v1033 = vand.u32 %v766, 4294901760
        %v1034 = vsub.f32 %v766, %v1033
        %1035 = vmatpush1.msra.mxu0 %v1034
        %1036 = vmatprep.subr.mxu0 0.0
        %v1037 = vand.u32 %v767, 4294901760
        %v1038 = vsub.f32 %v767, %v1037
        %1039 = vmatpush1.msra.mxu0 %v1038
        %1040 = vmatprep.subr.mxu0 0.0
        %v1041 = vand.u32 %v768, 4294901760
        %v1042 = vsub.f32 %v768, %v1041
        %1043 = vmatpush1.msra.mxu0 %v1042
        %1044 = vmatprep.subr.mxu0 0.0
        %v1045 = vand.u32 %v769, 4294901760
        %v1046 = vsub.f32 %v769, %v1045
        %1047 = vmatpush1.msra.mxu0 %v1046
        %1048 = vmatprep.subr.mxu0 0.0
        %v1049 = vand.u32 %v770, 4294901760
        %v1050 = vsub.f32 %v770, %v1049
        %1051 = vmatpush1.msra.mxu0 %v1050
        %1052 = vmatprep.subr.mxu0 0.0
        %v1053 = vand.u32 %v771, 4294901760
        %v1054 = vsub.f32 %v771, %v1053
        %1055 = vmatpush1.msra.mxu0 %v1054
        %1056 = vmatprep.subr.mxu0 0.0
        %v1057 = vand.u32 %v772, 4294901760
        %v1058 = vsub.f32 %v772, %v1057
        %1059 = vmatpush1.msra.mxu0 %v1058
        %1060 = vmatprep.subr.mxu0 0.0
        %1061 = vmatpush1.msra.mxu0 0.0
        %1062 = vmatprep.subr.mxu0 0.0
        %1063 = vmatpush1.msra.mxu0 0.0
        %1064 = vmatprep.subr.mxu0 0.0
        %1065 = vmatpush1.msra.mxu0 0.0
        %1066 = vmatprep.subr.mxu0 0.0
        %1067 = vmatpush1.msra.mxu0 0.0
        %1068 = vmatprep.subr.mxu0 0.0
        %1069 = vmatpush1.msra.mxu0 0.0
        %1070 = vmatprep.subr.mxu0 0.0
        %1071 = vmatpush1.msra.mxu0 0.0
        %1072 = vmatprep.subr.mxu0 0.0
        %1073 = vmatpush1.msra.mxu0 0.0
        %1074 = vmatprep.subr.mxu0 0.0
        %1075 = vmatpush1.msra.mxu0 0.0
        %1076 = vmatprep.subr.mxu0 0.0
        %1077 = vmatpush1.msra.mxu0 0.0
        %1078 = vmatprep.subr.mxu0 0.0
        %1079 = vmatpush1.msra.mxu0 0.0
        %1080 = vmatprep.subr.mxu0 0.0
        %1081 = vmatpush1.msra.mxu0 0.0
        %1082 = vmatprep.subr.mxu0 0.0
        %1083 = vmatpush1.msra.mxu0 0.0
        %1084 = vmatprep.subr.mxu0 0.0
        %1085 = vmatpush1.msra.mxu0 0.0
        %1086 = vmatprep.subr.mxu0 0.0
        %1087 = vmatpush1.msra.mxu0 0.0
        %1088 = vmatprep.subr.mxu0 0.0
        %1089 = vmatpush1.msra.mxu0 0.0
        %1090 = vmatprep.subr.mxu0 0.0
        %1091 = vmatpush1.msra.mxu0 0.0
        %1092 = vmatprep.subr.mxu0 0.0
        %1093 = vmatpush1.msra.mxu0 0.0
        %1094 = vmatprep.subr.mxu0 0.0
        %1095 = vmatpush1.msra.mxu0 0.0
        %1096 = vmatprep.subr.mxu0 0.0
        %1097 = vmatpush1.msra.mxu0 0.0
        %1098 = vmatprep.subr.mxu0 0.0
        %1099 = vmatpush1.msra.mxu0 0.0
        %1100 = vmatprep.subr.mxu0 0.0
        %1101 = vmatpush1.msra.mxu0 0.0
        %1102 = vmatprep.subr.mxu0 0.0
        %1103 = vmatpush1.msra.mxu0 0.0
        %1104 = vmatprep.subr.mxu0 0.0
        %1105 = vmatpush1.msra.mxu0 0.0
        %1106 = vmatprep.subr.mxu0 0.0
        %1107 = vmatpush1.msra.mxu0 0.0
        %1108 = vmatprep.mubr.f32.mxu0 0.0
        %v1109 = vand.u32 %v775, 4294901760
        %v1110 = vsub.f32 %v775, %v1109
        %1111 = vmatmul.mubr.f32.gmra.mrb[0].mxu0 %v1110
        %v1112 = vpop.f32.mrb[0].mxu0
        %v1113 = vadd.f32 %v1007, %v1112
        %v1114 = vpop.f32.mrb[0].mxu0
        %1115 = vmatprep.mubr.f32.mxu0 0.0
        %v1116 = vand.u32 %v778, 4294901760
        %v1117 = vsub.f32 %v778, %v1116
        %1118 = vmatmul.mubr.f32.gmra.mrb[0].mxu0 %v1117
        %v1119 = vpop.f32.mrb[0].mxu0
        %v1120 = vadd.f32 %v1013, %v1119
        %v1121 = vpop.f32.mrb[0].mxu0
        %1122 = vmatprep.mubr.f32.mxu0 0.0
        %v1123 = vand.u32 %v781, 4294901760
        %v1124 = vsub.f32 %v781, %v1123
        %1125 = vmatmul.mubr.f32.gmra.mrb[0].mxu0 %v1124
        %v1126 = vpop.f32.mrb[0].mxu0
        %v1127 = vadd.f32 %v1019, %v1126
        %v1128 = vpop.f32.mrb[0].mxu0
        %1129 = vmatprep.mubr.f32.mxu0 0.0
        %v1130 = vand.u32 %v784, 4294901760
        %v1131 = vsub.f32 %v784, %v1130
        %1132 = vmatmul.mubr.f32.gmra.mrb[0].mxu0 %v1131
        %v1133 = vpop.f32.mrb[0].mxu0
        %v1134 = vadd.f32 %v1025, %v1133
        %v1135 = vpop.f32.mrb[0].mxu0
        %1136 = vdwg.mxu0
        %1137 = vmatprep.subr.mxu0 0.0
        %v1138 = vand.u32 %v765, 4294901760
        %1139 = vmatpush1.msra.mxu0 %v1138
        %1140 = vmatprep.subr.mxu0 0.0
        %v1141 = vand.u32 %v766, 4294901760
        %1142 = vmatpush1.msra.mxu0 %v1141
        %1143 = vmatprep.subr.mxu0 0.0
        %v1144 = vand.u32 %v767, 4294901760
        %1145 = vmatpush1.msra.mxu0 %v1144
        %1146 = vmatprep.subr.mxu0 0.0
        %v1147 = vand.u32 %v768, 4294901760
        %1148 = vmatpush1.msra.mxu0 %v1147
        %1149 = vmatprep.subr.mxu0 0.0
        %v1150 = vand.u32 %v769, 4294901760
        %1151 = vmatpush1.msra.mxu0 %v1150
        %1152 = vmatprep.subr.mxu0 0.0
        %v1153 = vand.u32 %v770, 4294901760
        %1154 = vmatpush1.msra.mxu0 %v1153
        %1155 = vmatprep.subr.mxu0 0.0
        %v1156 = vand.u32 %v771, 4294901760
        %1157 = vmatpush1.msra.mxu0 %v1156
        %1158 = vmatprep.subr.mxu0 0.0
        %v1159 = vand.u32 %v772, 4294901760
        %1160 = vmatpush1.msra.mxu0 %v1159
        %1161 = vmatprep.subr.mxu0 0.0
        %1162 = vmatpush1.msra.mxu0 0.0
        %1163 = vmatprep.subr.mxu0 0.0
        %1164 = vmatpush1.msra.mxu0 0.0
        %1165 = vmatprep.subr.mxu0 0.0
        %1166 = vmatpush1.msra.mxu0 0.0
        %1167 = vmatprep.subr.mxu0 0.0
        %1168 = vmatpush1.msra.mxu0 0.0
        %1169 = vmatprep.subr.mxu0 0.0
        %1170 = vmatpush1.msra.mxu0 0.0
        %1171 = vmatprep.subr.mxu0 0.0
        %1172 = vmatpush1.msra.mxu0 0.0
        %1173 = vmatprep.subr.mxu0 0.0
        %1174 = vmatpush1.msra.mxu0 0.0
        %1175 = vmatprep.subr.mxu0 0.0
        %1176 = vmatpush1.msra.mxu0 0.0
        %1177 = vmatprep.subr.mxu0 0.0
        %1178 = vmatpush1.msra.mxu0 0.0
        %1179 = vmatprep.subr.mxu0 0.0
        %1180 = vmatpush1.msra.mxu0 0.0
        %1181 = vmatprep.subr.mxu0 0.0
        %1182 = vmatpush1.msra.mxu0 0.0
        %1183 = vmatprep.subr.mxu0 0.0
        %1184 = vmatpush1.msra.mxu0 0.0
        %1185 = vmatprep.subr.mxu0 0.0
        %1186 = vmatpush1.msra.mxu0 0.0
        %1187 = vmatprep.subr.mxu0 0.0
        %1188 = vmatpush1.msra.mxu0 0.0
        %1189 = vmatprep.subr.mxu0 0.0
        %1190 = vmatpush1.msra.mxu0 0.0
        %1191 = vmatprep.subr.mxu0 0.0
        %1192 = vmatpush1.msra.mxu0 0.0
        %1193 = vmatprep.subr.mxu0 0.0
        %1194 = vmatpush1.msra.mxu0 0.0
        %1195 = vmatprep.subr.mxu0 0.0
        %1196 = vmatpush1.msra.mxu0 0.0
        %1197 = vmatprep.subr.mxu0 0.0
        %1198 = vmatpush1.msra.mxu0 0.0
        %1199 = vmatprep.subr.mxu0 0.0
        %1200 = vmatpush1.msra.mxu0 0.0
        %1201 = vmatprep.subr.mxu0 0.0
        %1202 = vmatpush1.msra.mxu0 0.0
        %1203 = vmatprep.subr.mxu0 0.0
        %1204 = vmatpush1.msra.mxu0 0.0
        %1205 = vmatprep.subr.mxu0 0.0
        %1206 = vmatpush1.msra.mxu0 0.0
        %1207 = vmatprep.subr.mxu0 0.0
        %1208 = vmatpush1.msra.mxu0 0.0
        %1209 = vmatprep.mubr.f32.mxu0 0.0
        %v1210 = vand.u32 %v775, 4294901760
        %v1211 = vsub.f32 %v775, %v1210
        %v1212 = vand.u32 %v1211, 4294901760
        %1213 = vmatmul.mubr.f32.gmra.mrb[0].mxu0 %v1212
        %v1214 = vpop.f32.mrb[0].mxu0
        %v1215 = vadd.f32 %v1113, %v1214
        %v1216 = vpop.f32.mrb[0].mxu0
        %1217 = vmatprep.mubr.f32.mxu0 0.0
        %v1218 = vand.u32 %v778, 4294901760
        %v1219 = vsub.f32 %v778, %v1218
        %v1220 = vand.u32 %v1219, 4294901760
        %1221 = vmatmul.mubr.f32.gmra.mrb[0].mxu0 %v1220
        %v1222 = vpop.f32.mrb[0].mxu0
        %v1223 = vadd.f32 %v1120, %v1222
        %v1224 = vpop.f32.mrb[0].mxu0
        %1225 = vmatprep.mubr.f32.mxu0 0.0
        %v1226 = vand.u32 %v781, 4294901760
        %v1227 = vsub.f32 %v781, %v1226
        %v1228 = vand.u32 %v1227, 4294901760
        %1229 = vmatmul.mubr.f32.gmra.mrb[0].mxu0 %v1228
        %v1230 = vpop.f32.mrb[0].mxu0
        %v1231 = vadd.f32 %v1127, %v1230
        %v1232 = vpop.f32.mrb[0].mxu0
        %1233 = vmatprep.mubr.f32.mxu0 0.0
        %v1234 = vand.u32 %v784, 4294901760
        %v1235 = vsub.f32 %v784, %v1234
        %v1236 = vand.u32 %v1235, 4294901760
        %1237 = vmatmul.mubr.f32.gmra.mrb[0].mxu0 %v1236
        %v1238 = vpop.f32.mrb[0].mxu0
        %v1239 = vadd.f32 %v1134, %v1238
        %v1240 = vpop.f32.mrb[0].mxu0
        %1241 = vdwg.mxu0
        %1242 = vmatprep.subr.mxu0 0.0
        %v1243 = vand.u32 %v765, 4294901760
        %v1244 = vsub.f32 %v765, %v1243
        %v1245 = vand.u32 %v1244, 4294901760
        %1246 = vmatpush1.msra.mxu0 %v1245
        %1247 = vmatprep.subr.mxu0 0.0
        %v1248 = vand.u32 %v766, 4294901760
        %v1249 = vsub.f32 %v766, %v1248
        %v1250 = vand.u32 %v1249, 4294901760
        %1251 = vmatpush1.msra.mxu0 %v1250
        %1252 = vmatprep.subr.mxu0 0.0
        %v1253 = vand.u32 %v767, 4294901760
        %v1254 = vsub.f32 %v767, %v1253
        %v1255 = vand.u32 %v1254, 4294901760
        %1256 = vmatpush1.msra.mxu0 %v1255
        %1257 = vmatprep.subr.mxu0 0.0
        %v1258 = vand.u32 %v768, 4294901760
        %v1259 = vsub.f32 %v768, %v1258
        %v1260 = vand.u32 %v1259, 4294901760
        %1261 = vmatpush1.msra.mxu0 %v1260
        %1262 = vmatprep.subr.mxu0 0.0
        %v1263 = vand.u32 %v769, 4294901760
        %v1264 = vsub.f32 %v769, %v1263
        %v1265 = vand.u32 %v1264, 4294901760
        %1266 = vmatpush1.msra.mxu0 %v1265
        %1267 = vmatprep.subr.mxu0 0.0
        %v1268 = vand.u32 %v770, 4294901760
        %v1269 = vsub.f32 %v770, %v1268
        %v1270 = vand.u32 %v1269, 4294901760
        %1271 = vmatpush1.msra.mxu0 %v1270
        %1272 = vmatprep.subr.mxu0 0.0
        %v1273 = vand.u32 %v771, 4294901760
        %v1274 = vsub.f32 %v771, %v1273
        %v1275 = vand.u32 %v1274, 4294901760
        %1276 = vmatpush1.msra.mxu0 %v1275
        %1277 = vmatprep.subr.mxu0 0.0
        %v1278 = vand.u32 %v772, 4294901760
        %v1279 = vsub.f32 %v772, %v1278
        %v1280 = vand.u32 %v1279, 4294901760
        %1281 = vmatpush1.msra.mxu0 %v1280
        %1282 = vmatprep.subr.mxu0 0.0
        %1283 = vmatpush1.msra.mxu0 0.0
        %1284 = vmatprep.subr.mxu0 0.0
        %1285 = vmatpush1.msra.mxu0 0.0
        %1286 = vmatprep.subr.mxu0 0.0
        %1287 = vmatpush1.msra.mxu0 0.0
        %1288 = vmatprep.subr.mxu0 0.0
        %1289 = vmatpush1.msra.mxu0 0.0
        %1290 = vmatprep.subr.mxu0 0.0
        %1291 = vmatpush1.msra.mxu0 0.0
        %1292 = vmatprep.subr.mxu0 0.0
        %1293 = vmatpush1.msra.mxu0 0.0
        %1294 = vmatprep.subr.mxu0 0.0
        %1295 = vmatpush1.msra.mxu0 0.0
        %1296 = vmatprep.subr.mxu0 0.0
        %1297 = vmatpush1.msra.mxu0 0.0
        %1298 = vmatprep.subr.mxu0 0.0
        %1299 = vmatpush1.msra.mxu0 0.0
        %1300 = vmatprep.subr.mxu0 0.0
        %1301 = vmatpush1.msra.mxu0 0.0
        %1302 = vmatprep.subr.mxu0 0.0
        %1303 = vmatpush1.msra.mxu0 0.0
        %1304 = vmatprep.subr.mxu0 0.0
        %1305 = vmatpush1.msra.mxu0 0.0
        %1306 = vmatprep.subr.mxu0 0.0
        %1307 = vmatpush1.msra.mxu0 0.0
        %1308 = vmatprep.subr.mxu0 0.0
        %1309 = vmatpush1.msra.mxu0 0.0
        %1310 = vmatprep.subr.mxu0 0.0
        %1311 = vmatpush1.msra.mxu0 0.0
        %1312 = vmatprep.subr.mxu0 0.0
        %1313 = vmatpush1.msra.mxu0 0.0
        %1314 = vmatprep.subr.mxu0 0.0
        %1315 = vmatpush1.msra.mxu0 0.0
        %1316 = vmatprep.subr.mxu0 0.0
        %1317 = vmatpush1.msra.mxu0 0.0
        %1318 = vmatprep.subr.mxu0 0.0
        %1319 = vmatpush1.msra.mxu0 0.0
        %1320 = vmatprep.subr.mxu0 0.0
        %1321 = vmatpush1.msra.mxu0 0.0
        %1322 = vmatprep.subr.mxu0 0.0
        %1323 = vmatpush1.msra.mxu0 0.0
        %1324 = vmatprep.subr.mxu0 0.0
        %1325 = vmatpush1.msra.mxu0 0.0
        %1326 = vmatprep.subr.mxu0 0.0
        %1327 = vmatpush1.msra.mxu0 0.0
        %1328 = vmatprep.subr.mxu0 0.0
        %1329 = vmatpush1.msra.mxu0 0.0
        %1330 = vmatprep.mubr.f32.mxu0 0.0
        %v1331 = vand.u32 %v775, 4294901760
        %1332 = vmatmul.mubr.f32.gmra.mrb[0].mxu0 %v1331
        %v1333 = vpop.f32.mrb[0].mxu0
        %v1334 = vadd.f32 %v1215, %v1333
        %v1335 = vpop.f32.mrb[0].mxu0
        %1336 = vmatprep.mubr.f32.mxu0 0.0
        %v1337 = vand.u32 %v778, 4294901760
        %1338 = vmatmul.mubr.f32.gmra.mrb[0].mxu0 %v1337
        %v1339 = vpop.f32.mrb[0].mxu0
        %v1340 = vadd.f32 %v1223, %v1339
        %v1341 = vpop.f32.mrb[0].mxu0
        %1342 = vmatprep.mubr.f32.mxu0 0.0
        %v1343 = vand.u32 %v781, 4294901760
        %1344 = vmatmul.mubr.f32.gmra.mrb[0].mxu0 %v1343
        %v1345 = vpop.f32.mrb[0].mxu0
        %v1346 = vadd.f32 %v1231, %v1345
        %v1347 = vpop.f32.mrb[0].mxu0
        %1348 = vmatprep.mubr.f32.mxu0 0.0
        %v1349 = vand.u32 %v784, 4294901760
        %1350 = vmatmul.mubr.f32.gmra.mrb[0].mxu0 %v1349
        %v1351 = vpop.f32.mrb[0].mxu0
        %v1352 = vadd.f32 %v1239, %v1351
        %v1353 = vpop.f32.mrb[0].mxu0
        %1354 = vdwg.mxu0
        %1355 = vmatprep.subr.mxu0 0.0
        %v1356 = vand.u32 %v765, 4294901760
        %1357 = vmatpush1.msra.mxu0 %v1356
        %1358 = vmatprep.subr.mxu0 0.0
        %v1359 = vand.u32 %v766, 4294901760
        %1360 = vmatpush1.msra.mxu0 %v1359
        %1361 = vmatprep.subr.mxu0 0.0
        %v1362 = vand.u32 %v767, 4294901760
        %1363 = vmatpush1.msra.mxu0 %v1362
        %1364 = vmatprep.subr.mxu0 0.0
        %v1365 = vand.u32 %v768, 4294901760
        %1366 = vmatpush1.msra.mxu0 %v1365
        %1367 = vmatprep.subr.mxu0 0.0
        %v1368 = vand.u32 %v769, 4294901760
        %1369 = vmatpush1.msra.mxu0 %v1368
        %1370 = vmatprep.subr.mxu0 0.0
        %v1371 = vand.u32 %v770, 4294901760
        %1372 = vmatpush1.msra.mxu0 %v1371
        %1373 = vmatprep.subr.mxu0 0.0
        %v1374 = vand.u32 %v771, 4294901760
        %1375 = vmatpush1.msra.mxu0 %v1374
        %1376 = vmatprep.subr.mxu0 0.0
        %v1377 = vand.u32 %v772, 4294901760
        %1378 = vmatpush1.msra.mxu0 %v1377
        %1379 = vmatprep.subr.mxu0 0.0
        %1380 = vmatpush1.msra.mxu0 0.0
        %1381 = vmatprep.subr.mxu0 0.0
        %1382 = vmatpush1.msra.mxu0 0.0
        %1383 = vmatprep.subr.mxu0 0.0
        %1384 = vmatpush1.msra.mxu0 0.0
        %1385 = vmatprep.subr.mxu0 0.0
        %1386 = vmatpush1.msra.mxu0 0.0
        %1387 = vmatprep.subr.mxu0 0.0
        %1388 = vmatpush1.msra.mxu0 0.0
        %1389 = vmatprep.subr.mxu0 0.0
        %1390 = vmatpush1.msra.mxu0 0.0
        %1391 = vmatprep.subr.mxu0 0.0
        %1392 = vmatpush1.msra.mxu0 0.0
        %1393 = vmatprep.subr.mxu0 0.0
        %1394 = vmatpush1.msra.mxu0 0.0
        %1395 = vmatprep.subr.mxu0 0.0
        %1396 = vmatpush1.msra.mxu0 0.0
        %1397 = vmatprep.subr.mxu0 0.0
        %1398 = vmatpush1.msra.mxu0 0.0
        %1399 = vmatprep.subr.mxu0 0.0
        %1400 = vmatpush1.msra.mxu0 0.0
        %1401 = vmatprep.subr.mxu0 0.0
        %1402 = vmatpush1.msra.mxu0 0.0
        %1403 = vmatprep.subr.mxu0 0.0
        %1404 = vmatpush1.msra.mxu0 0.0
        %1405 = vmatprep.subr.mxu0 0.0
        %1406 = vmatpush1.msra.mxu0 0.0
        %1407 = vmatprep.subr.mxu0 0.0
        %1408 = vmatpush1.msra.mxu0 0.0
        %1409 = vmatprep.subr.mxu0 0.0
        %1410 = vmatpush1.msra.mxu0 0.0
        %1411 = vmatprep.subr.mxu0 0.0
        %1412 = vmatpush1.msra.mxu0 0.0
        %1413 = vmatprep.subr.mxu0 0.0
        %1414 = vmatpush1.msra.mxu0 0.0
        %1415 = vmatprep.subr.mxu0 0.0
        %1416 = vmatpush1.msra.mxu0 0.0
        %1417 = vmatprep.subr.mxu0 0.0
        %1418 = vmatpush1.msra.mxu0 0.0
        %1419 = vmatprep.subr.mxu0 0.0
        %1420 = vmatpush1.msra.mxu0 0.0
        %1421 = vmatprep.subr.mxu0 0.0
        %1422 = vmatpush1.msra.mxu0 0.0
        %1423 = vmatprep.subr.mxu0 0.0
        %1424 = vmatpush1.msra.mxu0 0.0
        %1425 = vmatprep.subr.mxu0 0.0
        %1426 = vmatpush1.msra.mxu0 0.0
        %1427 = vmatprep.mubr.f32.mxu0 0.0
        %v1428 = vand.u32 %v775, 4294901760
        %1429 = vmatmul.mubr.f32.gmra.mrb[0].mxu0 %v1428
        %v1430 = vpop.f32.mrb[0].mxu0
        %v1431 = vadd.f32 %v1334, %v1430
        %v1432 = vpop.f32.mrb[0].mxu0
        %1433 = vmatprep.mubr.f32.mxu0 0.0
        %v1434 = vand.u32 %v778, 4294901760
        %1435 = vmatmul.mubr.f32.gmra.mrb[0].mxu0 %v1434
        %v1436 = vpop.f32.mrb[0].mxu0
        %v1437 = vadd.f32 %v1340, %v1436
        %v1438 = vpop.f32.mrb[0].mxu0
        %1439 = vmatprep.mubr.f32.mxu0 0.0
        %v1440 = vand.u32 %v781, 4294901760
        %1441 = vmatmul.mubr.f32.gmra.mrb[0].mxu0 %v1440
        %v1442 = vpop.f32.mrb[0].mxu0
        %v1443 = vadd.f32 %v1346, %v1442
        %v1444 = vpop.f32.mrb[0].mxu0
        %1445 = vmatprep.mubr.f32.mxu0 0.0
        %v1446 = vand.u32 %v784, 4294901760
        %1447 = vmatmul.mubr.f32.gmra.mrb[0].mxu0 %v1446
        %v1448 = vpop.f32.mrb[0].mxu0
        %v1449 = vadd.f32 %v1352, %v1448
        %v1450 = vpop.f32.mrb[0].mxu0
        %1451 = vdwg.mxu0
        %v1452 = vld [vmem:[%s5] sm:$0xff]
        %v1453 = vld [vmem:[%s5 + $0x8] sm:$0xff]
        %v1454 = vld [vmem:[%s5 + $0x10] sm:$0xff]
        %v1455 = vld [vmem:[%s5 + $0x18] sm:$0xff]
        %v1456 = vld [vmem:[%s5 + $0x20] sm:$0xff]
        %v1457 = vld [vmem:[%s5 + $0x28] sm:$0xff]
        %v1458 = vld [vmem:[%s5 + $0x30] sm:$0xff]
        %v1459 = vld [vmem:[%s5 + $0x38] sm:$0xff]
        %v1460 = vld [vmem:[%s5 + $0x40] sm:$0xff]
        %v1461 = vld [vmem:[%s5 + $0x48] sm:$0xff]
        %v1462 = vld [vmem:[%s5 + $0x50] sm:$0xff]
        %v1463 = vld [vmem:[%s5 + $0x58] sm:$0xff]
        %v1464 = vld [vmem:[%s5 + $0x60] sm:$0xff]
        %v1465 = vld [vmem:[%s5 + $0x68] sm:$0xff]
        %v1466 = vld [vmem:[%s5 + $0x70] sm:$0xff]
        %v1467 = vld [vmem:[%s5 + $0x78] sm:$0xff]
        %v1468 = vld [vmem:[%s5 + $0x80] sm:$0xff]
        %v1469 = vld [vmem:[%s5 + $0x88] sm:$0xff]
        %v1470 = vld [vmem:[%s5 + $0x90] sm:$0xff]
        %v1471 = vld [vmem:[%s5 + $0x98] sm:$0xff]
        %v1472 = vld [vmem:[%s5 + $0xa0] sm:$0xff]
        %v1473 = vld [vmem:[%s5 + $0xa8] sm:$0xff]
        %v1474 = vld [vmem:[%s5 + $0xb0] sm:$0xff]
        %v1475 = vld [vmem:[%s5 + $0xb8] sm:$0xff]
        %v1476 = vld [vmem:[%s5 + $0xc0] sm:$0xff]
        %v1477 = vld [vmem:[%s5 + $0xc8] sm:$0xff]
        %v1478 = vld [vmem:[%s5 + $0xd0] sm:$0xff]
        %v1479 = vld [vmem:[%s5 + $0xd8] sm:$0xff]
        %v1480 = vld [vmem:[%s5 + $0xe0] sm:$0xff]
        %v1481 = vld [vmem:[%s5 + $0xe8] sm:$0xff]
        %v1482 = vld [vmem:[%s5 + $0xf0] sm:$0xff]
        %v1483 = vld [vmem:[%s5 + $0xf8] sm:$0xff]
        %v1485 = vcombine.high %v758, %v758
        %v1487 = vunpack.c.l.s4 1966171168
        %v1488 = vunpack.c.0.s8 %v1487
        %v1489 = vlaneseq
        %v1490 = vshrl.u32 %v1489, 7
        %v1491 = vsub.s32 %v1488, %v1490
        %v1492 = vrot.slane %v758, %v1491
        %v1494 = vunpack.c.l.s4 1966171168
        %v1495 = vunpack.c.0.s8 %v1494
        %v1496 = vlaneseq
        %v1497 = vshrl.u32 %v1496, 7
        %v1498 = vsub.s32 %v1495, %v1497
        %v1499 = vrot.slane %v1485, %v1498
        %v1500 = vcombine.high %v1492, %v1492
        %v1501 = vcombine.high %v1499, %v1499
        %v1503 = vunpack.c.l.s4 1966171168
        %v1504 = vunpack.c.0.s8 %v1503
        %v1505 = vlaneseq
        %v1506 = vshrl.u32 %v1505, 7
        %v1507 = vsub.s32 %v1504, %v1506
        %v1508 = vrot.slane %v1492, %v1507
        %v1510 = vunpack.c.l.s4 1966171168
        %v1511 = vunpack.c.0.s8 %v1510
        %v1512 = vlaneseq
        %v1513 = vshrl.u32 %v1512, 7
        %v1514 = vsub.s32 %v1511, %v1513
        %v1515 = vrot.slane %v1499, %v1514
        %v1517 = vunpack.c.l.s4 1966171168
        %v1518 = vunpack.c.0.s8 %v1517
        %v1519 = vlaneseq
        %v1520 = vshrl.u32 %v1519, 7
        %v1521 = vsub.s32 %v1518, %v1520
        %v1522 = vrot.slane %v1500, %v1521
        %v1524 = vunpack.c.l.s4 1966171168
        %v1525 = vunpack.c.0.s8 %v1524
        %v1526 = vlaneseq
        %v1527 = vshrl.u32 %v1526, 7
        %v1528 = vsub.s32 %v1525, %v1527
        %v1529 = vrot.slane %v1501, %v1528
        %v1530 = vcombine.high %v1508, %v1508
        %v1531 = vcombine.high %v1515, %v1515
        %v1532 = vcombine.high %v1522, %v1522
        %v1533 = vcombine.high %v1529, %v1529
        %v1534 = vlaneseq
        %v1535 = vshrl.u32 %v1534, 7
        %v1536 = vsub.s32 0, %v1535
        %v1537 = vrot.slane %v1508, %v1536
        %v1538 = vlaneseq
        %v1539 = vshrl.u32 %v1538, 7
        %v1540 = vsub.s32 0, %v1539
        %v1541 = vrot.slane %v1522, %v1540
        %v1542 = vlaneseq
        %v1543 = vshrl.u32 %v1542, 7
        %v1544 = vsub.s32 0, %v1543
        %v1545 = vrot.slane %v1530, %v1544
        %v1546 = vlaneseq
        %v1547 = vshrl.u32 %v1546, 7
        %v1548 = vsub.s32 0, %v1547
        %v1549 = vrot.slane %v1532, %v1548
        %v1550 = vlaneseq
        %v1551 = vshrl.u32 %v1550, 7
        %v1552 = vsub.s32 0, %v1551
        %v1553 = vrot.slane %v1515, %v1552
        %v1554 = vlaneseq
        %v1555 = vshrl.u32 %v1554, 7
        %v1556 = vsub.s32 0, %v1555
        %v1557 = vrot.slane %v1529, %v1556
        %v1558 = vlaneseq
        %v1559 = vshrl.u32 %v1558, 7
        %v1560 = vsub.s32 0, %v1559
        %v1561 = vrot.slane %v1531, %v1560
        %v1562 = vlaneseq
        %v1563 = vshrl.u32 %v1562, 7
        %v1564 = vsub.s32 0, %v1563
        %v1565 = vrot.slane %v1533, %v1564
        %v1574 = vmul.f32 %v1537, %v1452
        %v1575 = vmul.f32 %v1537, %v1453
        %v1576 = vmul.f32 %v1537, %v1454
        %v1577 = vmul.f32 %v1537, %v1455
        %v1578 = vmul.f32 %v1541, %v1456
        %v1579 = vmul.f32 %v1541, %v1457
        %v1580 = vmul.f32 %v1541, %v1458
        %v1581 = vmul.f32 %v1541, %v1459
        %v1582 = vmul.f32 %v1545, %v1460
        %v1583 = vmul.f32 %v1545, %v1461
        %v1584 = vmul.f32 %v1545, %v1462
        %v1585 = vmul.f32 %v1545, %v1463
        %v1586 = vmul.f32 %v1549, %v1464
        %v1587 = vmul.f32 %v1549, %v1465
        %v1588 = vmul.f32 %v1549, %v1466
        %v1589 = vmul.f32 %v1549, %v1467
        %v1590 = vmul.f32 %v1553, %v1468
        %v1591 = vmul.f32 %v1553, %v1469
        %v1592 = vmul.f32 %v1553, %v1470
        %v1593 = vmul.f32 %v1553, %v1471
        %v1594 = vmul.f32 %v1557, %v1472
        %v1595 = vmul.f32 %v1557, %v1473
        %v1596 = vmul.f32 %v1557, %v1474
        %v1597 = vmul.f32 %v1557, %v1475
        %v1598 = vmul.f32 %v1561, %v1476
        %v1599 = vmul.f32 %v1561, %v1477
        %v1600 = vmul.f32 %v1561, %v1478
        %v1601 = vmul.f32 %v1561, %v1479
        %v1602 = vmul.f32 %v1565, %v1480
        %v1603 = vmul.f32 %v1565, %v1481
        %v1604 = vmul.f32 %v1565, %v1482
        %v1605 = vmul.f32 %v1565, %v1483
        %vm1606 = vcmask 130048
        %v1607 = vsel %vm1606, %v1574, 0.0
        %1608 = vadd.xlane.f32.xlu0 %v1607
        %v1609 = vpop.xlane.xlu0 %1608
        %v1610 = vsel %vm1606, %v1575, 0.0
        %1611 = vadd.xlane.f32.xlu0 %v1610
        %v1612 = vpop.xlane.xlu0 %1611
        %v1613 = vsel %vm1606, %v1576, 0.0
        %1614 = vadd.xlane.f32.xlu0 %v1613
        %v1615 = vpop.xlane.xlu0 %1614
        %v1616 = vsel %vm1606, %v1577, 0.0
        %1617 = vadd.xlane.f32.xlu0 %v1616
        %v1618 = vpop.xlane.xlu0 %1617
        %v1619 = vsel %vm1606, %v1578, 0.0
        %1620 = vadd.xlane.f32.xlu0 %v1619
        %v1621 = vpop.xlane.xlu0 %1620
        %v1622 = vsel %vm1606, %v1579, 0.0
        %1623 = vadd.xlane.f32.xlu0 %v1622
        %v1624 = vpop.xlane.xlu0 %1623
        %v1625 = vsel %vm1606, %v1580, 0.0
        %1626 = vadd.xlane.f32.xlu0 %v1625
        %v1627 = vpop.xlane.xlu0 %1626
        %v1628 = vsel %vm1606, %v1581, 0.0
        %1629 = vadd.xlane.f32.xlu0 %v1628
        %v1630 = vpop.xlane.xlu0 %1629
        %v1631 = vsel %vm1606, %v1582, 0.0
        %1632 = vadd.xlane.f32.xlu0 %v1631
        %v1633 = vpop.xlane.xlu0 %1632
        %v1634 = vsel %vm1606, %v1583, 0.0
        %1635 = vadd.xlane.f32.xlu0 %v1634
        %v1636 = vpop.xlane.xlu0 %1635
        %v1637 = vsel %vm1606, %v1584, 0.0
        %1638 = vadd.xlane.f32.xlu0 %v1637
        %v1639 = vpop.xlane.xlu0 %1638
        %v1640 = vsel %vm1606, %v1585, 0.0
        %1641 = vadd.xlane.f32.xlu0 %v1640
        %v1642 = vpop.xlane.xlu0 %1641
        %v1643 = vsel %vm1606, %v1586, 0.0
        %1644 = vadd.xlane.f32.xlu0 %v1643
        %v1645 = vpop.xlane.xlu0 %1644
        %v1646 = vsel %vm1606, %v1587, 0.0
        %1647 = vadd.xlane.f32.xlu0 %v1646
        %v1648 = vpop.xlane.xlu0 %1647
        %v1649 = vsel %vm1606, %v1588, 0.0
        %1650 = vadd.xlane.f32.xlu0 %v1649
        %v1651 = vpop.xlane.xlu0 %1650
        %v1652 = vsel %vm1606, %v1589, 0.0
        %1653 = vadd.xlane.f32.xlu0 %v1652
        %v1654 = vpop.xlane.xlu0 %1653
        %v1655 = vsel %vm1606, %v1590, 0.0
        %1656 = vadd.xlane.f32.xlu0 %v1655
        %v1657 = vpop.xlane.xlu0 %1656
        %v1658 = vsel %vm1606, %v1591, 0.0
        %1659 = vadd.xlane.f32.xlu0 %v1658
        %v1660 = vpop.xlane.xlu0 %1659
        %v1661 = vsel %vm1606, %v1592, 0.0
        %1662 = vadd.xlane.f32.xlu0 %v1661
        %v1663 = vpop.xlane.xlu0 %1662
        %v1664 = vsel %vm1606, %v1593, 0.0
        %1665 = vadd.xlane.f32.xlu0 %v1664
        %v1666 = vpop.xlane.xlu0 %1665
        %v1667 = vsel %vm1606, %v1594, 0.0
        %1668 = vadd.xlane.f32.xlu0 %v1667
        %v1669 = vpop.xlane.xlu0 %1668
        %v1670 = vsel %vm1606, %v1595, 0.0
        %1671 = vadd.xlane.f32.xlu0 %v1670
        %v1672 = vpop.xlane.xlu0 %1671
        %v1673 = vsel %vm1606, %v1596, 0.0
        %1674 = vadd.xlane.f32.xlu0 %v1673
        %v1675 = vpop.xlane.xlu0 %1674
        %v1676 = vsel %vm1606, %v1597, 0.0
        %1677 = vadd.xlane.f32.xlu0 %v1676
        %v1678 = vpop.xlane.xlu0 %1677
        %v1679 = vsel %vm1606, %v1598, 0.0
        %1680 = vadd.xlane.f32.xlu0 %v1679
        %v1681 = vpop.xlane.xlu0 %1680
        %v1682 = vsel %vm1606, %v1599, 0.0
        %1683 = vadd.xlane.f32.xlu0 %v1682
        %v1684 = vpop.xlane.xlu0 %1683
        %v1685 = vsel %vm1606, %v1600, 0.0
        %1686 = vadd.xlane.f32.xlu0 %v1685
        %v1687 = vpop.xlane.xlu0 %1686
        %v1688 = vsel %vm1606, %v1601, 0.0
        %1689 = vadd.xlane.f32.xlu0 %v1688
        %v1690 = vpop.xlane.xlu0 %1689
        %v1691 = vsel %vm1606, %v1602, 0.0
        %1692 = vadd.xlane.f32.xlu0 %v1691
        %v1693 = vpop.xlane.xlu0 %1692
        %v1694 = vsel %vm1606, %v1603, 0.0
        %1695 = vadd.xlane.f32.xlu0 %v1694
        %v1696 = vpop.xlane.xlu0 %1695
        %v1697 = vsel %vm1606, %v1604, 0.0
        %1698 = vadd.xlane.f32.xlu0 %v1697
        %v1699 = vpop.xlane.xlu0 %1698
        %v1700 = vsel %vm1606, %v1605, 0.0
        %1701 = vadd.xlane.f32.xlu0 %v1700
        %v1702 = vpop.xlane.xlu0 %1701
        %v1735 = vlaneseq
        %v1736 = vand.u32 %v1735, 127
        %v1737 = vlaneseq
        %v1738 = vshrl.u32 %v1737, 7
        %v1739 = vsub.s32 %v1736, %v1738
        %v1740 = vrot.slane %v1609, %v1739
        %v1741 = vadd.s32 %v1736, 4294967288
        %v1742 = vlaneseq
        %v1743 = vshrl.u32 %v1742, 7
        %v1744 = vsub.s32 %v1741, %v1743
        %v1745 = vrot.slane %v1612, %v1744
        %vm1746 = vcmask 130112
        %v1747 = vsel %vm1746, %v1745, %v1740
        %v1748 = vadd.s32 %v1736, 4294967280
        %v1749 = vlaneseq
        %v1750 = vshrl.u32 %v1749, 7
        %v1751 = vsub.s32 %v1748, %v1750
        %v1752 = vrot.slane %v1615, %v1751
        %vm1753 = vcmask 195712
        %v1754 = vsel %vm1753, %v1752, %v1747
        %v1755 = vadd.s32 %v1736, 4294967272
        %v1756 = vlaneseq
        %v1757 = vshrl.u32 %v1756, 7
        %v1758 = vsub.s32 %v1755, %v1757
        %v1759 = vrot.slane %v1618, %v1758
        %vm1760 = vcmask 261312
        %v1761 = vsel %vm1760, %v1759, %v1754
        %v1762 = vlaneseq
        %v1763 = vshrl.u32 %v1762, 7
        %v1764 = vsub.s32 %v1736, %v1763
        %v1765 = vrot.slane %v1621, %v1764
        %v1766 = vlaneseq
        %v1767 = vshrl.u32 %v1766, 7
        %v1768 = vsub.s32 %v1741, %v1767
        %v1769 = vrot.slane %v1624, %v1768
        %v1770 = vsel %vm1746, %v1769, %v1765
        %v1771 = vlaneseq
        %v1772 = vshrl.u32 %v1771, 7
        %v1773 = vsub.s32 %v1748, %v1772
        %v1774 = vrot.slane %v1627, %v1773
        %v1775 = vsel %vm1753, %v1774, %v1770
        %v1776 = vlaneseq
        %v1777 = vshrl.u32 %v1776, 7
        %v1778 = vsub.s32 %v1755, %v1777
        %v1779 = vrot.slane %v1630, %v1778
        %v1780 = vsel %vm1760, %v1779, %v1775
        %v1781 = vlaneseq
        %v1782 = vshrl.u32 %v1781, 7
        %v1783 = vsub.s32 %v1736, %v1782
        %v1784 = vrot.slane %v1633, %v1783
        %v1785 = vlaneseq
        %v1786 = vshrl.u32 %v1785, 7
        %v1787 = vsub.s32 %v1741, %v1786
        %v1788 = vrot.slane %v1636, %v1787
        %v1789 = vsel %vm1746, %v1788, %v1784
        %v1790 = vlaneseq
        %v1791 = vshrl.u32 %v1790, 7
        %v1792 = vsub.s32 %v1748, %v1791
        %v1793 = vrot.slane %v1639, %v1792
        %v1794 = vsel %vm1753, %v1793, %v1789
        %v1795 = vlaneseq
        %v1796 = vshrl.u32 %v1795, 7
        %v1797 = vsub.s32 %v1755, %v1796
        %v1798 = vrot.slane %v1642, %v1797
        %v1799 = vsel %vm1760, %v1798, %v1794
        %v1800 = vlaneseq
        %v1801 = vshrl.u32 %v1800, 7
        %v1802 = vsub.s32 %v1736, %v1801
        %v1803 = vrot.slane %v1645, %v1802
        %v1804 = vlaneseq
        %v1805 = vshrl.u32 %v1804, 7
        %v1806 = vsub.s32 %v1741, %v1805
        %v1807 = vrot.slane %v1648, %v1806
        %v1808 = vsel %vm1746, %v1807, %v1803
        %v1809 = vlaneseq
        %v1810 = vshrl.u32 %v1809, 7
        %v1811 = vsub.s32 %v1748, %v1810
        %v1812 = vrot.slane %v1651, %v1811
        %v1813 = vsel %vm1753, %v1812, %v1808
        %v1814 = vlaneseq
        %v1815 = vshrl.u32 %v1814, 7
        %v1816 = vsub.s32 %v1755, %v1815
        %v1817 = vrot.slane %v1654, %v1816
        %v1818 = vsel %vm1760, %v1817, %v1813
        %v1819 = vlaneseq
        %v1820 = vshrl.u32 %v1819, 7
        %v1821 = vsub.s32 %v1736, %v1820
        %v1822 = vrot.slane %v1657, %v1821
        %v1823 = vlaneseq
        %v1824 = vshrl.u32 %v1823, 7
        %v1825 = vsub.s32 %v1741, %v1824
        %v1826 = vrot.slane %v1660, %v1825
        %v1827 = vsel %vm1746, %v1826, %v1822
        %v1828 = vlaneseq
        %v1829 = vshrl.u32 %v1828, 7
        %v1830 = vsub.s32 %v1748, %v1829
        %v1831 = vrot.slane %v1663, %v1830
        %v1832 = vsel %vm1753, %v1831, %v1827
        %v1833 = vlaneseq
        %v1834 = vshrl.u32 %v1833, 7
        %v1835 = vsub.s32 %v1755, %v1834
        %v1836 = vrot.slane %v1666, %v1835
        %v1837 = vsel %vm1760, %v1836, %v1832
        %v1838 = vlaneseq
        %v1839 = vshrl.u32 %v1838, 7
        %v1840 = vsub.s32 %v1736, %v1839
        %v1841 = vrot.slane %v1669, %v1840
        %v1842 = vlaneseq
        %v1843 = vshrl.u32 %v1842, 7
        %v1844 = vsub.s32 %v1741, %v1843
        %v1845 = vrot.slane %v1672, %v1844
        %v1846 = vsel %vm1746, %v1845, %v1841
        %v1847 = vlaneseq
        %v1848 = vshrl.u32 %v1847, 7
        %v1849 = vsub.s32 %v1748, %v1848
        %v1850 = vrot.slane %v1675, %v1849
        %v1851 = vsel %vm1753, %v1850, %v1846
        %v1852 = vlaneseq
        %v1853 = vshrl.u32 %v1852, 7
        %v1854 = vsub.s32 %v1755, %v1853
        %v1855 = vrot.slane %v1678, %v1854
        %v1856 = vsel %vm1760, %v1855, %v1851
        %v1857 = vlaneseq
        %v1858 = vshrl.u32 %v1857, 7
        %v1859 = vsub.s32 %v1736, %v1858
        %v1860 = vrot.slane %v1681, %v1859
        %v1861 = vlaneseq
        %v1862 = vshrl.u32 %v1861, 7
        %v1863 = vsub.s32 %v1741, %v1862
        %v1864 = vrot.slane %v1684, %v1863
        %v1865 = vsel %vm1746, %v1864, %v1860
        %v1866 = vlaneseq
        %v1867 = vshrl.u32 %v1866, 7
        %v1868 = vsub.s32 %v1748, %v1867
        %v1869 = vrot.slane %v1687, %v1868
        %v1870 = vsel %vm1753, %v1869, %v1865
        %v1871 = vlaneseq
        %v1872 = vshrl.u32 %v1871, 7
        %v1873 = vsub.s32 %v1755, %v1872
        %v1874 = vrot.slane %v1690, %v1873
        %v1875 = vsel %vm1760, %v1874, %v1870
        %v1876 = vlaneseq
        %v1877 = vshrl.u32 %v1876, 7
        %v1878 = vsub.s32 %v1736, %v1877
        %v1879 = vrot.slane %v1693, %v1878
        %v1880 = vlaneseq
        %v1881 = vshrl.u32 %v1880, 7
        %v1882 = vsub.s32 %v1741, %v1881
        %v1883 = vrot.slane %v1696, %v1882
        %v1884 = vsel %vm1746, %v1883, %v1879
        %v1885 = vlaneseq
        %v1886 = vshrl.u32 %v1885, 7
        %v1887 = vsub.s32 %v1748, %v1886
        %v1888 = vrot.slane %v1699, %v1887
        %v1889 = vsel %vm1753, %v1888, %v1884
        %v1890 = vlaneseq
        %v1891 = vshrl.u32 %v1890, 7
        %v1892 = vsub.s32 %v1755, %v1891
        %v1893 = vrot.slane %v1702, %v1892
        %v1894 = vsel %vm1760, %v1893, %v1889
        %vm1895 = vcmask 1041409
        %v1896 = vsel %vm1895, %v1780, %v1761
        %vm1897 = vcmask 1042434
        %v1898 = vsel %vm1897, %v1799, %v1896
        %vm1899 = vcmask 1043459
        %v1900 = vsel %vm1899, %v1818, %v1898
        %vm1901 = vcmask 1044484
        %v1902 = vsel %vm1901, %v1837, %v1900
        %vm1903 = vcmask 1045509
        %v1904 = vsel %vm1903, %v1856, %v1902
        %vm1905 = vcmask 1046534
        %v1906 = vsel %vm1905, %v1875, %v1904
        %vm1907 = vcmask 1047559
        %v1908 = vsel %vm1907, %v1894, %v1906
        %v1910 = vsel %vm1606, %v758, 0
        %v1913 = vsel %vm1606, %v1431, 0
        %v1916 = vsel %vm1606, %v1437, 0
        %v1919 = vsel %vm1606, %v1443, 0
        %v1922 = vsel %vm1606, %v1449, 0
        %1924 = vmatprep.subr.mxu0 0.0
        %v1925 = vand.u32 %v1913, 4294901760
        %1926 = vmatpush1.xpose.msra.mxu0 %v1925
        %1927 = vmatprep.subr.mxu0 0.0
        %v1928 = vand.u32 %v1916, 4294901760
        %1929 = vmatpush1.xpose.msra.mxu0 %v1928
        %1930 = vmatprep.subr.mxu0 0.0
        %v1931 = vand.u32 %v1919, 4294901760
        %1932 = vmatpush1.xpose.msra.mxu0 %v1931
        %1933 = vmatprep.subr.mxu0 0.0
        %v1934 = vand.u32 %v1922, 4294901760
        %1935 = vmatpush1.xpose.msra.mxu0 %v1934
        %1936 = vmatprep.subr.mxu0 0.0
        %1937 = vmatpush1.xpose.msra.mxu0 0.0
        %1938 = vmatprep.subr.mxu0 0.0
        %1939 = vmatpush1.xpose.msra.mxu0 0.0
        %1940 = vmatprep.subr.mxu0 0.0
        %1941 = vmatpush1.xpose.msra.mxu0 0.0
        %1942 = vmatprep.subr.mxu0 0.0
        %1943 = vmatpush1.xpose.msra.mxu0 0.0
        %1944 = vmatprep.subr.mxu0 0.0
        %1945 = vmatpush1.xpose.msra.mxu0 0.0
        %1946 = vmatprep.subr.mxu0 0.0
        %1947 = vmatpush1.xpose.msra.mxu0 0.0
        %1948 = vmatprep.subr.mxu0 0.0
        %1949 = vmatpush1.xpose.msra.mxu0 0.0
        %1950 = vmatprep.subr.mxu0 0.0
        %1951 = vmatpush1.xpose.msra.mxu0 0.0
        %1952 = vmatprep.subr.mxu0 0.0
        %1953 = vmatpush1.xpose.msra.mxu0 0.0
        %1954 = vmatprep.subr.mxu0 0.0
        %1955 = vmatpush1.xpose.msra.mxu0 0.0
        %1956 = vmatprep.subr.mxu0 0.0
        %1957 = vmatpush1.xpose.msra.mxu0 0.0
        %1958 = vmatprep.subr.mxu0 0.0
        %1959 = vmatpush1.xpose.msra.mxu0 0.0
        %1960 = vmatprep.subr.mxu0 0.0
        %1961 = vmatpush1.xpose.msra.mxu0 0.0
        %1962 = vmatprep.subr.mxu0 0.0
        %1963 = vmatpush1.xpose.msra.mxu0 0.0
        %1964 = vmatprep.subr.mxu0 0.0
        %1965 = vmatpush1.xpose.msra.mxu0 0.0
        %1966 = vmatprep.subr.mxu0 0.0
        %1967 = vmatpush1.xpose.msra.mxu0 0.0
        %1968 = vmatprep.subr.mxu0 0.0
        %1969 = vmatpush1.xpose.msra.mxu0 0.0
        %1970 = vmatprep.subr.mxu0 0.0
        %1971 = vmatpush1.xpose.msra.mxu0 0.0
        %1972 = vmatprep.subr.mxu0 0.0
        %1973 = vmatpush1.xpose.msra.mxu0 0.0
        %1974 = vmatprep.subr.mxu0 0.0
        %1975 = vmatpush1.xpose.msra.mxu0 0.0
        %1976 = vmatprep.subr.mxu0 0.0
        %1977 = vmatpush1.xpose.msra.mxu0 0.0
        %1978 = vmatprep.subr.mxu0 0.0
        %1979 = vmatpush1.xpose.msra.mxu0 0.0
        %1980 = vmatprep.subr.mxu0 0.0
        %1981 = vmatpush1.xpose.msra.mxu0 0.0
        %1982 = vmatprep.subr.mxu0 0.0
        %1983 = vmatpush1.xpose.msra.mxu0 0.0
        %1984 = vmatprep.subr.mxu0 0.0
        %1985 = vmatpush1.xpose.msra.mxu0 0.0
        %1986 = vmatprep.subr.mxu0 0.0
        %1987 = vmatpush1.xpose.msra.mxu0 0.0
        %1988 = vmatprep.subr.mxu0 0.0
        %1989 = vmatpush1.xpose.msra.mxu0 0.0
        %1990 = vmatprep.subr.mxu0 0.0
        %1991 = vmatpush1.xpose.msra.mxu0 0.0
        %1992 = vmatprep.mubr.f32.mxu0 0.0
        %v1993 = vand.u32 %v1910, 4294901760
        %v1994 = vsub.f32 %v1910, %v1993
        %v1995 = vand.u32 %v1994, 4294901760
        %v1996 = vsub.f32 %v1994, %v1995
        %v1997 = vand.u32 %v1996, 4294901760
        %1998 = vmatmul.mubr.f32.gmra.mrb[0].mxu0 %v1997
        %v1999 = vpop.f32.mrb[0].mxu0
        %v2000 = vadd.f32 %v1908, %v1999
        %v2001 = vpop.f32.mrb[0].mxu0
        %2002 = vdwg.mxu0
        %2003 = vmatprep.subr.mxu0 0.0
        %v2004 = vand.u32 %v1913, 4294901760
        %v2005 = vsub.f32 %v1913, %v2004
        %v2006 = vand.u32 %v2005, 4294901760
        %v2007 = vsub.f32 %v2005, %v2006
        %v2008 = vand.u32 %v2007, 4294901760
        %2009 = vmatpush1.xpose.msra.mxu0 %v2008
        %2010 = vmatprep.subr.mxu0 0.0
        %v2011 = vand.u32 %v1916, 4294901760
        %v2012 = vsub.f32 %v1916, %v2011
        %v2013 = vand.u32 %v2012, 4294901760
        %v2014 = vsub.f32 %v2012, %v2013
        %v2015 = vand.u32 %v2014, 4294901760
        %2016 = vmatpush1.xpose.msra.mxu0 %v2015
        %2017 = vmatprep.subr.mxu0 0.0
        %v2018 = vand.u32 %v1919, 4294901760
        %v2019 = vsub.f32 %v1919, %v2018
        %v2020 = vand.u32 %v2019, 4294901760
        %v2021 = vsub.f32 %v2019, %v2020
        %v2022 = vand.u32 %v2021, 4294901760
        %2023 = vmatpush1.xpose.msra.mxu0 %v2022
        %2024 = vmatprep.subr.mxu0 0.0
        %v2025 = vand.u32 %v1922, 4294901760
        %v2026 = vsub.f32 %v1922, %v2025
        %v2027 = vand.u32 %v2026, 4294901760
        %v2028 = vsub.f32 %v2026, %v2027
        %v2029 = vand.u32 %v2028, 4294901760
        %2030 = vmatpush1.xpose.msra.mxu0 %v2029
        %2031 = vmatprep.subr.mxu0 0.0
        %2032 = vmatpush1.xpose.msra.mxu0 0.0
        %2033 = vmatprep.subr.mxu0 0.0
        %2034 = vmatpush1.xpose.msra.mxu0 0.0
        %2035 = vmatprep.subr.mxu0 0.0
        %2036 = vmatpush1.xpose.msra.mxu0 0.0
        %2037 = vmatprep.subr.mxu0 0.0
        %2038 = vmatpush1.xpose.msra.mxu0 0.0
        %2039 = vmatprep.subr.mxu0 0.0
        %2040 = vmatpush1.xpose.msra.mxu0 0.0
        %2041 = vmatprep.subr.mxu0 0.0
        %2042 = vmatpush1.xpose.msra.mxu0 0.0
        %2043 = vmatprep.subr.mxu0 0.0
        %2044 = vmatpush1.xpose.msra.mxu0 0.0
        %2045 = vmatprep.subr.mxu0 0.0
        %2046 = vmatpush1.xpose.msra.mxu0 0.0
        %2047 = vmatprep.subr.mxu0 0.0
        %2048 = vmatpush1.xpose.msra.mxu0 0.0
        %2049 = vmatprep.subr.mxu0 0.0
        %2050 = vmatpush1.xpose.msra.mxu0 0.0
        %2051 = vmatprep.subr.mxu0 0.0
        %2052 = vmatpush1.xpose.msra.mxu0 0.0
        %2053 = vmatprep.subr.mxu0 0.0
        %2054 = vmatpush1.xpose.msra.mxu0 0.0
        %2055 = vmatprep.subr.mxu0 0.0
        %2056 = vmatpush1.xpose.msra.mxu0 0.0
        %2057 = vmatprep.subr.mxu0 0.0
        %2058 = vmatpush1.xpose.msra.mxu0 0.0
        %2059 = vmatprep.subr.mxu0 0.0
        %2060 = vmatpush1.xpose.msra.mxu0 0.0
        %2061 = vmatprep.subr.mxu0 0.0
        %2062 = vmatpush1.xpose.msra.mxu0 0.0
        %2063 = vmatprep.subr.mxu0 0.0
        %2064 = vmatpush1.xpose.msra.mxu0 0.0
        %2065 = vmatprep.subr.mxu0 0.0
        %2066 = vmatpush1.xpose.msra.mxu0 0.0
        %2067 = vmatprep.subr.mxu0 0.0
        %2068 = vmatpush1.xpose.msra.mxu0 0.0
        %2069 = vmatprep.subr.mxu0 0.0
        %2070 = vmatpush1.xpose.msra.mxu0 0.0
        %2071 = vmatprep.subr.mxu0 0.0
        %2072 = vmatpush1.xpose.msra.mxu0 0.0
        %2073 = vmatprep.subr.mxu0 0.0
        %2074 = vmatpush1.xpose.msra.mxu0 0.0
        %2075 = vmatprep.subr.mxu0 0.0
        %2076 = vmatpush1.xpose.msra.mxu0 0.0
        %2077 = vmatprep.subr.mxu0 0.0
        %2078 = vmatpush1.xpose.msra.mxu0 0.0
        %2079 = vmatprep.subr.mxu0 0.0
        %2080 = vmatpush1.xpose.msra.mxu0 0.0
        %2081 = vmatprep.subr.mxu0 0.0
        %2082 = vmatpush1.xpose.msra.mxu0 0.0
        %2083 = vmatprep.subr.mxu0 0.0
        %2084 = vmatpush1.xpose.msra.mxu0 0.0
        %2085 = vmatprep.subr.mxu0 0.0
        %2086 = vmatpush1.xpose.msra.mxu0 0.0
        %2087 = vmatprep.mubr.f32.mxu0 0.0
        %v2088 = vand.u32 %v1910, 4294901760
        %2089 = vmatmul.mubr.f32.gmra.mrb[0].mxu0 %v2088
        %v2090 = vpop.f32.mrb[0].mxu0
        %v2091 = vadd.f32 %v2000, %v2090
        %v2092 = vpop.f32.mrb[0].mxu0
        %2093 = vdwg.mxu0
        %2094 = vmatprep.subr.mxu0 0.0
        %v2095 = vand.u32 %v1913, 4294901760
        %v2096 = vsub.f32 %v1913, %v2095
        %2097 = vmatpush1.xpose.msra.mxu0 %v2096
        %2098 = vmatprep.subr.mxu0 0.0
        %v2099 = vand.u32 %v1916, 4294901760
        %v2100 = vsub.f32 %v1916, %v2099
        %2101 = vmatpush1.xpose.msra.mxu0 %v2100
        %2102 = vmatprep.subr.mxu0 0.0
        %v2103 = vand.u32 %v1919, 4294901760
        %v2104 = vsub.f32 %v1919, %v2103
        %2105 = vmatpush1.xpose.msra.mxu0 %v2104
        %2106 = vmatprep.subr.mxu0 0.0
        %v2107 = vand.u32 %v1922, 4294901760
        %v2108 = vsub.f32 %v1922, %v2107
        %2109 = vmatpush1.xpose.msra.mxu0 %v2108
        %2110 = vmatprep.subr.mxu0 0.0
        %2111 = vmatpush1.xpose.msra.mxu0 0.0
        %2112 = vmatprep.subr.mxu0 0.0
        %2113 = vmatpush1.xpose.msra.mxu0 0.0
        %2114 = vmatprep.subr.mxu0 0.0
        %2115 = vmatpush1.xpose.msra.mxu0 0.0
        %2116 = vmatprep.subr.mxu0 0.0
        %2117 = vmatpush1.xpose.msra.mxu0 0.0
        %2118 = vmatprep.subr.mxu0 0.0
        %2119 = vmatpush1.xpose.msra.mxu0 0.0
        %2120 = vmatprep.subr.mxu0 0.0
        %2121 = vmatpush1.xpose.msra.mxu0 0.0
        %2122 = vmatprep.subr.mxu0 0.0
        %2123 = vmatpush1.xpose.msra.mxu0 0.0
        %2124 = vmatprep.subr.mxu0 0.0
        %2125 = vmatpush1.xpose.msra.mxu0 0.0
        %2126 = vmatprep.subr.mxu0 0.0
        %2127 = vmatpush1.xpose.msra.mxu0 0.0
        %2128 = vmatprep.subr.mxu0 0.0
        %2129 = vmatpush1.xpose.msra.mxu0 0.0
        %2130 = vmatprep.subr.mxu0 0.0
        %2131 = vmatpush1.xpose.msra.mxu0 0.0
        %2132 = vmatprep.subr.mxu0 0.0
        %2133 = vmatpush1.xpose.msra.mxu0 0.0
        %2134 = vmatprep.subr.mxu0 0.0
        %2135 = vmatpush1.xpose.msra.mxu0 0.0
        %2136 = vmatprep.subr.mxu0 0.0
        %2137 = vmatpush1.xpose.msra.mxu0 0.0
        %2138 = vmatprep.subr.mxu0 0.0
        %2139 = vmatpush1.xpose.msra.mxu0 0.0
        %2140 = vmatprep.subr.mxu0 0.0
        %2141 = vmatpush1.xpose.msra.mxu0 0.0
        %2142 = vmatprep.subr.mxu0 0.0
        %2143 = vmatpush1.xpose.msra.mxu0 0.0
        %2144 = vmatprep.subr.mxu0 0.0
        %2145 = vmatpush1.xpose.msra.mxu0 0.0
        %2146 = vmatprep.subr.mxu0 0.0
        %2147 = vmatpush1.xpose.msra.mxu0 0.0
        %2148 = vmatprep.subr.mxu0 0.0
        %2149 = vmatpush1.xpose.msra.mxu0 0.0
        %2150 = vmatprep.subr.mxu0 0.0
        %2151 = vmatpush1.xpose.msra.mxu0 0.0
        %2152 = vmatprep.subr.mxu0 0.0
        %2153 = vmatpush1.xpose.msra.mxu0 0.0
        %2154 = vmatprep.subr.mxu0 0.0
        %2155 = vmatpush1.xpose.msra.mxu0 0.0
        %2156 = vmatprep.subr.mxu0 0.0
        %2157 = vmatpush1.xpose.msra.mxu0 0.0
        %2158 = vmatprep.subr.mxu0 0.0
        %2159 = vmatpush1.xpose.msra.mxu0 0.0
        %2160 = vmatprep.subr.mxu0 0.0
        %2161 = vmatpush1.xpose.msra.mxu0 0.0
        %2162 = vmatprep.subr.mxu0 0.0
        %2163 = vmatpush1.xpose.msra.mxu0 0.0
        %2164 = vmatprep.subr.mxu0 0.0
        %2165 = vmatpush1.xpose.msra.mxu0 0.0
        %2166 = vmatprep.mubr.f32.mxu0 0.0
        %v2167 = vand.u32 %v1910, 4294901760
        %v2168 = vsub.f32 %v1910, %v2167
        %2169 = vmatmul.mubr.f32.gmra.mrb[0].mxu0 %v2168
        %v2170 = vpop.f32.mrb[0].mxu0
        %v2171 = vadd.f32 %v2091, %v2170
        %v2172 = vpop.f32.mrb[0].mxu0
        %2173 = vdwg.mxu0
        %2174 = vmatprep.subr.mxu0 0.0
        %v2175 = vand.u32 %v1913, 4294901760
        %2176 = vmatpush1.xpose.msra.mxu0 %v2175
        %2177 = vmatprep.subr.mxu0 0.0
        %v2178 = vand.u32 %v1916, 4294901760
        %2179 = vmatpush1.xpose.msra.mxu0 %v2178
        %2180 = vmatprep.subr.mxu0 0.0
        %v2181 = vand.u32 %v1919, 4294901760
        %2182 = vmatpush1.xpose.msra.mxu0 %v2181
        %2183 = vmatprep.subr.mxu0 0.0
        %v2184 = vand.u32 %v1922, 4294901760
        %2185 = vmatpush1.xpose.msra.mxu0 %v2184
        %2186 = vmatprep.subr.mxu0 0.0
        %2187 = vmatpush1.xpose.msra.mxu0 0.0
        %2188 = vmatprep.subr.mxu0 0.0
        %2189 = vmatpush1.xpose.msra.mxu0 0.0
        %2190 = vmatprep.subr.mxu0 0.0
        %2191 = vmatpush1.xpose.msra.mxu0 0.0
        %2192 = vmatprep.subr.mxu0 0.0
        %2193 = vmatpush1.xpose.msra.mxu0 0.0
        %2194 = vmatprep.subr.mxu0 0.0
        %2195 = vmatpush1.xpose.msra.mxu0 0.0
        %2196 = vmatprep.subr.mxu0 0.0
        %2197 = vmatpush1.xpose.msra.mxu0 0.0
        %2198 = vmatprep.subr.mxu0 0.0
        %2199 = vmatpush1.xpose.msra.mxu0 0.0
        %2200 = vmatprep.subr.mxu0 0.0
        %2201 = vmatpush1.xpose.msra.mxu0 0.0
        %2202 = vmatprep.subr.mxu0 0.0
        %2203 = vmatpush1.xpose.msra.mxu0 0.0
        %2204 = vmatprep.subr.mxu0 0.0
        %2205 = vmatpush1.xpose.msra.mxu0 0.0
        %2206 = vmatprep.subr.mxu0 0.0
        %2207 = vmatpush1.xpose.msra.mxu0 0.0
        %2208 = vmatprep.subr.mxu0 0.0
        %2209 = vmatpush1.xpose.msra.mxu0 0.0
        %2210 = vmatprep.subr.mxu0 0.0
        %2211 = vmatpush1.xpose.msra.mxu0 0.0
        %2212 = vmatprep.subr.mxu0 0.0
        %2213 = vmatpush1.xpose.msra.mxu0 0.0
        %2214 = vmatprep.subr.mxu0 0.0
        %2215 = vmatpush1.xpose.msra.mxu0 0.0
        %2216 = vmatprep.subr.mxu0 0.0
        %2217 = vmatpush1.xpose.msra.mxu0 0.0
        %2218 = vmatprep.subr.mxu0 0.0
        %2219 = vmatpush1.xpose.msra.mxu0 0.0
        %2220 = vmatprep.subr.mxu0 0.0
        %2221 = vmatpush1.xpose.msra.mxu0 0.0
        %2222 = vmatprep.subr.mxu0 0.0
        %2223 = vmatpush1.xpose.msra.mxu0 0.0
        %2224 = vmatprep.subr.mxu0 0.0
        %2225 = vmatpush1.xpose.msra.mxu0 0.0
        %2226 = vmatprep.subr.mxu0 0.0
        %2227 = vmatpush1.xpose.msra.mxu0 0.0
        %2228 = vmatprep.subr.mxu0 0.0
        %2229 = vmatpush1.xpose.msra.mxu0 0.0
        %2230 = vmatprep.subr.mxu0 0.0
        %2231 = vmatpush1.xpose.msra.mxu0 0.0
        %2232 = vmatprep.subr.mxu0 0.0
        %2233 = vmatpush1.xpose.msra.mxu0 0.0
        %2234 = vmatprep.subr.mxu0 0.0
        %2235 = vmatpush1.xpose.msra.mxu0 0.0
        %2236 = vmatprep.subr.mxu0 0.0
        %2237 = vmatpush1.xpose.msra.mxu0 0.0
        %2238 = vmatprep.subr.mxu0 0.0
        %2239 = vmatpush1.xpose.msra.mxu0 0.0
        %2240 = vmatprep.subr.mxu0 0.0
        %2241 = vmatpush1.xpose.msra.mxu0 0.0
        %2242 = vmatprep.mubr.f32.mxu0 0.0
        %v2243 = vand.u32 %v1910, 4294901760
        %v2244 = vsub.f32 %v1910, %v2243
        %v2245 = vand.u32 %v2244, 4294901760
        %2246 = vmatmul.mubr.f32.gmra.mrb[0].mxu0 %v2245
        %v2247 = vpop.f32.mrb[0].mxu0
        %v2248 = vadd.f32 %v2171, %v2247
        %v2249 = vpop.f32.mrb[0].mxu0
        %2250 = vdwg.mxu0
        %2251 = vmatprep.subr.mxu0 0.0
        %v2252 = vand.u32 %v1913, 4294901760
        %v2253 = vsub.f32 %v1913, %v2252
        %v2254 = vand.u32 %v2253, 4294901760
        %2255 = vmatpush1.xpose.msra.mxu0 %v2254
        %2256 = vmatprep.subr.mxu0 0.0
        %v2257 = vand.u32 %v1916, 4294901760
        %v2258 = vsub.f32 %v1916, %v2257
        %v2259 = vand.u32 %v2258, 4294901760
        %2260 = vmatpush1.xpose.msra.mxu0 %v2259
        %2261 = vmatprep.subr.mxu0 0.0
        %v2262 = vand.u32 %v1919, 4294901760
        %v2263 = vsub.f32 %v1919, %v2262
        %v2264 = vand.u32 %v2263, 4294901760
        %2265 = vmatpush1.xpose.msra.mxu0 %v2264
        %2266 = vmatprep.subr.mxu0 0.0
        %v2267 = vand.u32 %v1922, 4294901760
        %v2268 = vsub.f32 %v1922, %v2267
        %v2269 = vand.u32 %v2268, 4294901760
        %2270 = vmatpush1.xpose.msra.mxu0 %v2269
        %2271 = vmatprep.subr.mxu0 0.0
        %2272 = vmatpush1.xpose.msra.mxu0 0.0
        %2273 = vmatprep.subr.mxu0 0.0
        %2274 = vmatpush1.xpose.msra.mxu0 0.0
        %2275 = vmatprep.subr.mxu0 0.0
        %2276 = vmatpush1.xpose.msra.mxu0 0.0
        %2277 = vmatprep.subr.mxu0 0.0
        %2278 = vmatpush1.xpose.msra.mxu0 0.0
        %2279 = vmatprep.subr.mxu0 0.0
        %2280 = vmatpush1.xpose.msra.mxu0 0.0
        %2281 = vmatprep.subr.mxu0 0.0
        %2282 = vmatpush1.xpose.msra.mxu0 0.0
        %2283 = vmatprep.subr.mxu0 0.0
        %2284 = vmatpush1.xpose.msra.mxu0 0.0
        %2285 = vmatprep.subr.mxu0 0.0
        %2286 = vmatpush1.xpose.msra.mxu0 0.0
        %2287 = vmatprep.subr.mxu0 0.0
        %2288 = vmatpush1.xpose.msra.mxu0 0.0
        %2289 = vmatprep.subr.mxu0 0.0
        %2290 = vmatpush1.xpose.msra.mxu0 0.0
        %2291 = vmatprep.subr.mxu0 0.0
        %2292 = vmatpush1.xpose.msra.mxu0 0.0
        %2293 = vmatprep.subr.mxu0 0.0
        %2294 = vmatpush1.xpose.msra.mxu0 0.0
        %2295 = vmatprep.subr.mxu0 0.0
        %2296 = vmatpush1.xpose.msra.mxu0 0.0
        %2297 = vmatprep.subr.mxu0 0.0
        %2298 = vmatpush1.xpose.msra.mxu0 0.0
        %2299 = vmatprep.subr.mxu0 0.0
        %2300 = vmatpush1.xpose.msra.mxu0 0.0
        %2301 = vmatprep.subr.mxu0 0.0
        %2302 = vmatpush1.xpose.msra.mxu0 0.0
        %2303 = vmatprep.subr.mxu0 0.0
        %2304 = vmatpush1.xpose.msra.mxu0 0.0
        %2305 = vmatprep.subr.mxu0 0.0
        %2306 = vmatpush1.xpose.msra.mxu0 0.0
        %2307 = vmatprep.subr.mxu0 0.0
        %2308 = vmatpush1.xpose.msra.mxu0 0.0
        %2309 = vmatprep.subr.mxu0 0.0
        %2310 = vmatpush1.xpose.msra.mxu0 0.0
        %2311 = vmatprep.subr.mxu0 0.0
        %2312 = vmatpush1.xpose.msra.mxu0 0.0
        %2313 = vmatprep.subr.mxu0 0.0
        %2314 = vmatpush1.xpose.msra.mxu0 0.0
        %2315 = vmatprep.subr.mxu0 0.0
        %2316 = vmatpush1.xpose.msra.mxu0 0.0
        %2317 = vmatprep.subr.mxu0 0.0
        %2318 = vmatpush1.xpose.msra.mxu0 0.0
        %2319 = vmatprep.subr.mxu0 0.0
        %2320 = vmatpush1.xpose.msra.mxu0 0.0
        %2321 = vmatprep.subr.mxu0 0.0
        %2322 = vmatpush1.xpose.msra.mxu0 0.0
        %2323 = vmatprep.subr.mxu0 0.0
        %2324 = vmatpush1.xpose.msra.mxu0 0.0
        %2325 = vmatprep.subr.mxu0 0.0
        %2326 = vmatpush1.xpose.msra.mxu0 0.0
        %2327 = vmatprep.mubr.f32.mxu0 0.0
        %v2328 = vand.u32 %v1910, 4294901760
        %2329 = vmatmul.mubr.f32.gmra.mrb[0].mxu0 %v2328
        %v2330 = vpop.f32.mrb[0].mxu0
        %v2331 = vadd.f32 %v2248, %v2330
        %v2332 = vpop.f32.mrb[0].mxu0
        %2333 = vdwg.mxu0
        %2334 = vmatprep.subr.mxu0 0.0
        %v2335 = vand.u32 %v1913, 4294901760
        %2336 = vmatpush1.xpose.msra.mxu0 %v2335
        %2337 = vmatprep.subr.mxu0 0.0
        %v2338 = vand.u32 %v1916, 4294901760
        %2339 = vmatpush1.xpose.msra.mxu0 %v2338
        %2340 = vmatprep.subr.mxu0 0.0
        %v2341 = vand.u32 %v1919, 4294901760
        %2342 = vmatpush1.xpose.msra.mxu0 %v2341
        %2343 = vmatprep.subr.mxu0 0.0
        %v2344 = vand.u32 %v1922, 4294901760
        %2345 = vmatpush1.xpose.msra.mxu0 %v2344
        %2346 = vmatprep.subr.mxu0 0.0
        %2347 = vmatpush1.xpose.msra.mxu0 0.0
        %2348 = vmatprep.subr.mxu0 0.0
        %2349 = vmatpush1.xpose.msra.mxu0 0.0
        %2350 = vmatprep.subr.mxu0 0.0
        %2351 = vmatpush1.xpose.msra.mxu0 0.0
        %2352 = vmatprep.subr.mxu0 0.0
        %2353 = vmatpush1.xpose.msra.mxu0 0.0
        %2354 = vmatprep.subr.mxu0 0.0
        %2355 = vmatpush1.xpose.msra.mxu0 0.0
        %2356 = vmatprep.subr.mxu0 0.0
        %2357 = vmatpush1.xpose.msra.mxu0 0.0
        %2358 = vmatprep.subr.mxu0 0.0
        %2359 = vmatpush1.xpose.msra.mxu0 0.0
        %2360 = vmatprep.subr.mxu0 0.0
        %2361 = vmatpush1.xpose.msra.mxu0 0.0
        %2362 = vmatprep.subr.mxu0 0.0
        %2363 = vmatpush1.xpose.msra.mxu0 0.0
        %2364 = vmatprep.subr.mxu0 0.0
        %2365 = vmatpush1.xpose.msra.mxu0 0.0
        %2366 = vmatprep.subr.mxu0 0.0
        %2367 = vmatpush1.xpose.msra.mxu0 0.0
        %2368 = vmatprep.subr.mxu0 0.0
        %2369 = vmatpush1.xpose.msra.mxu0 0.0
        %2370 = vmatprep.subr.mxu0 0.0
        %2371 = vmatpush1.xpose.msra.mxu0 0.0
        %2372 = vmatprep.subr.mxu0 0.0
        %2373 = vmatpush1.xpose.msra.mxu0 0.0
        %2374 = vmatprep.subr.mxu0 0.0
        %2375 = vmatpush1.xpose.msra.mxu0 0.0
        %2376 = vmatprep.subr.mxu0 0.0
        %2377 = vmatpush1.xpose.msra.mxu0 0.0
        %2378 = vmatprep.subr.mxu0 0.0
        %2379 = vmatpush1.xpose.msra.mxu0 0.0
        %2380 = vmatprep.subr.mxu0 0.0
        %2381 = vmatpush1.xpose.msra.mxu0 0.0
        %2382 = vmatprep.subr.mxu0 0.0
        %2383 = vmatpush1.xpose.msra.mxu0 0.0
        %2384 = vmatprep.subr.mxu0 0.0
        %2385 = vmatpush1.xpose.msra.mxu0 0.0
        %2386 = vmatprep.subr.mxu0 0.0
        %2387 = vmatpush1.xpose.msra.mxu0 0.0
        %2388 = vmatprep.subr.mxu0 0.0
        %2389 = vmatpush1.xpose.msra.mxu0 0.0
        %2390 = vmatprep.subr.mxu0 0.0
        %2391 = vmatpush1.xpose.msra.mxu0 0.0
        %2392 = vmatprep.subr.mxu0 0.0
        %2393 = vmatpush1.xpose.msra.mxu0 0.0
        %2394 = vmatprep.subr.mxu0 0.0
        %2395 = vmatpush1.xpose.msra.mxu0 0.0
        %2396 = vmatprep.subr.mxu0 0.0
        %2397 = vmatpush1.xpose.msra.mxu0 0.0
        %2398 = vmatprep.subr.mxu0 0.0
        %2399 = vmatpush1.xpose.msra.mxu0 0.0
        %2400 = vmatprep.subr.mxu0 0.0
        %2401 = vmatpush1.xpose.msra.mxu0 0.0
        %2402 = vmatprep.mubr.f32.mxu0 0.0
        %v2403 = vand.u32 %v1910, 4294901760
        %2404 = vmatmul.mubr.f32.gmra.mrb[0].mxu0 %v2403
        %v2405 = vpop.f32.mrb[0].mxu0
        %v2406 = vadd.f32 %v2331, %v2405
        %v2407 = vpop.f32.mrb[0].mxu0
        %2408 = vdwg.mxu0
        %v2409 = vsel %vm272, %v2406, -inf
        %2410 = vmax.xlane.f32.xlu0 %v2409
        %v2411 = vpop.xlane.xlu0 %2410
        %v2412 = vsub.f32 %v2406, %v2411
        %v2413 = vmul.f32 %v2412, 1.442695
        %v2414 = vpow.pop %v2413
        %v2415 = vsel %vm272, %v2414, 0.0
        %2416 = vadd.xlane.f32.xlu0 %v2415
        %v2417 = vpop.xlane.xlu0 %2416
        %2418 = vrot.lane.b32.xlu0 %v1431, 112
        %v2419 = vpop.permute.xlu0 %2418
        %2420 = vrot.lane.b32.xlu0 %v1437, 112
        %v2421 = vpop.permute.xlu0 %2420
        %2422 = vrot.lane.b32.xlu0 %v1443, 112
        %v2423 = vpop.permute.xlu0 %2422
        %2424 = vrot.lane.b32.xlu0 %v1449, 112
        %v2425 = vpop.permute.xlu0 %2424
        %v2431 = vsel %vm272, %v2414, 0
        %2433 = vmatprep.subr.mxu0 0.0
        %v2434 = vand.u32 %v2419, 4294901760
        %2435 = vmatpush1.msra.mxu0 %v2434
        %2436 = vmatprep.subr.mxu0 0.0
        %v2437 = vand.u32 %v2421, 4294901760
        %2438 = vmatpush1.msra.mxu0 %v2437
        %2439 = vmatprep.subr.mxu0 0.0
        %v2440 = vand.u32 %v2423, 4294901760
        %2441 = vmatpush1.msra.mxu0 %v2440
        %2442 = vmatprep.subr.mxu0 0.0
        %v2443 = vand.u32 %v2425, 4294901760
        %2444 = vmatpush1.msra.mxu0 %v2443
        %2445 = vmatprep.subr.mxu0 0.0
        %2446 = vmatpush1.msra.mxu0 0.0
        %2447 = vmatprep.subr.mxu0 0.0
        %2448 = vmatpush1.msra.mxu0 0.0
        %2449 = vmatprep.subr.mxu0 0.0
        %2450 = vmatpush1.msra.mxu0 0.0
        %2451 = vmatprep.subr.mxu0 0.0
        %2452 = vmatpush1.msra.mxu0 0.0
        %2453 = vmatprep.subr.mxu0 0.0
        %2454 = vmatpush1.msra.mxu0 0.0
        %2455 = vmatprep.subr.mxu0 0.0
        %2456 = vmatpush1.msra.mxu0 0.0
        %2457 = vmatprep.subr.mxu0 0.0
        %2458 = vmatpush1.msra.mxu0 0.0
        %2459 = vmatprep.subr.mxu0 0.0
        %2460 = vmatpush1.msra.mxu0 0.0
        %2461 = vmatprep.subr.mxu0 0.0
        %2462 = vmatpush1.msra.mxu0 0.0
        %2463 = vmatprep.subr.mxu0 0.0
        %2464 = vmatpush1.msra.mxu0 0.0
        %2465 = vmatprep.subr.mxu0 0.0
        %2466 = vmatpush1.msra.mxu0 0.0
        %2467 = vmatprep.subr.mxu0 0.0
        %2468 = vmatpush1.msra.mxu0 0.0
        %2469 = vmatprep.subr.mxu0 0.0
        %2470 = vmatpush1.msra.mxu0 0.0
        %2471 = vmatprep.subr.mxu0 0.0
        %2472 = vmatpush1.msra.mxu0 0.0
        %2473 = vmatprep.subr.mxu0 0.0
        %2474 = vmatpush1.msra.mxu0 0.0
        %2475 = vmatprep.subr.mxu0 0.0
        %2476 = vmatpush1.msra.mxu0 0.0
        %2477 = vmatprep.subr.mxu0 0.0
        %2478 = vmatpush1.msra.mxu0 0.0
        %2479 = vmatprep.subr.mxu0 0.0
        %2480 = vmatpush1.msra.mxu0 0.0
        %2481 = vmatprep.subr.mxu0 0.0
        %2482 = vmatpush1.msra.mxu0 0.0
        %2483 = vmatprep.subr.mxu0 0.0
        %2484 = vmatpush1.msra.mxu0 0.0
        %2485 = vmatprep.subr.mxu0 0.0
        %2486 = vmatpush1.msra.mxu0 0.0
        %2487 = vmatprep.subr.mxu0 0.0
        %2488 = vmatpush1.msra.mxu0 0.0
        %2489 = vmatprep.subr.mxu0 0.0
        %2490 = vmatpush1.msra.mxu0 0.0
        %2491 = vmatprep.subr.mxu0 0.0
        %2492 = vmatpush1.msra.mxu0 0.0
        %2493 = vmatprep.subr.mxu0 0.0
        %2494 = vmatpush1.msra.mxu0 0.0
        %2495 = vmatprep.subr.mxu0 0.0
        %2496 = vmatpush1.msra.mxu0 0.0
        %2497 = vmatprep.subr.mxu0 0.0
        %2498 = vmatpush1.msra.mxu0 0.0
        %2499 = vmatprep.subr.mxu0 0.0
        %2500 = vmatpush1.msra.mxu0 0.0
        %2501 = vmatprep.mubr.f32.mxu0 0.0
        %v2502 = vand.u32 %v2431, 4294901760
        %v2503 = vsub.f32 %v2431, %v2502
        %v2504 = vand.u32 %v2503, 4294901760
        %v2505 = vsub.f32 %v2503, %v2504
        %v2506 = vand.u32 %v2505, 4294901760
        %2507 = vmatmul.mubr.f32.gmra.mrb[0].mxu0 %v2506
        %v2508 = vpop.f32.mrb[0].mxu0
        %v2509 = vadd.f32 0.0, %v2508
        %v2510 = vpop.f32.mrb[0].mxu0
        %2511 = vdwg.mxu0
        %2512 = vmatprep.subr.mxu0 0.0
        %v2513 = vand.u32 %v2419, 4294901760
        %v2514 = vsub.f32 %v2419, %v2513
        %v2515 = vand.u32 %v2514, 4294901760
        %v2516 = vsub.f32 %v2514, %v2515
        %v2517 = vand.u32 %v2516, 4294901760
        %2518 = vmatpush1.msra.mxu0 %v2517
        %2519 = vmatprep.subr.mxu0 0.0
        %v2520 = vand.u32 %v2421, 4294901760
        %v2521 = vsub.f32 %v2421, %v2520
        %v2522 = vand.u32 %v2521, 4294901760
        %v2523 = vsub.f32 %v2521, %v2522
        %v2524 = vand.u32 %v2523, 4294901760
        %2525 = vmatpush1.msra.mxu0 %v2524
        %2526 = vmatprep.subr.mxu0 0.0
        %v2527 = vand.u32 %v2423, 4294901760
        %v2528 = vsub.f32 %v2423, %v2527
        %v2529 = vand.u32 %v2528, 4294901760
        %v2530 = vsub.f32 %v2528, %v2529
        %v2531 = vand.u32 %v2530, 4294901760
        %2532 = vmatpush1.msra.mxu0 %v2531
        %2533 = vmatprep.subr.mxu0 0.0
        %v2534 = vand.u32 %v2425, 4294901760
        %v2535 = vsub.f32 %v2425, %v2534
        %v2536 = vand.u32 %v2535, 4294901760
        %v2537 = vsub.f32 %v2535, %v2536
        %v2538 = vand.u32 %v2537, 4294901760
        %2539 = vmatpush1.msra.mxu0 %v2538
        %2540 = vmatprep.subr.mxu0 0.0
        %2541 = vmatpush1.msra.mxu0 0.0
        %2542 = vmatprep.subr.mxu0 0.0
        %2543 = vmatpush1.msra.mxu0 0.0
        %2544 = vmatprep.subr.mxu0 0.0
        %2545 = vmatpush1.msra.mxu0 0.0
        %2546 = vmatprep.subr.mxu0 0.0
        %2547 = vmatpush1.msra.mxu0 0.0
        %2548 = vmatprep.subr.mxu0 0.0
        %2549 = vmatpush1.msra.mxu0 0.0
        %2550 = vmatprep.subr.mxu0 0.0
        %2551 = vmatpush1.msra.mxu0 0.0
        %2552 = vmatprep.subr.mxu0 0.0
        %2553 = vmatpush1.msra.mxu0 0.0
        %2554 = vmatprep.subr.mxu0 0.0
        %2555 = vmatpush1.msra.mxu0 0.0
        %2556 = vmatprep.subr.mxu0 0.0
        %2557 = vmatpush1.msra.mxu0 0.0
        %2558 = vmatprep.subr.mxu0 0.0
        %2559 = vmatpush1.msra.mxu0 0.0
        %2560 = vmatprep.subr.mxu0 0.0
        %2561 = vmatpush1.msra.mxu0 0.0
        %2562 = vmatprep.subr.mxu0 0.0
        %2563 = vmatpush1.msra.mxu0 0.0
        %2564 = vmatprep.subr.mxu0 0.0
        %2565 = vmatpush1.msra.mxu0 0.0
        %2566 = vmatprep.subr.mxu0 0.0
        %2567 = vmatpush1.msra.mxu0 0.0
        %2568 = vmatprep.subr.mxu0 0.0
        %2569 = vmatpush1.msra.mxu0 0.0
        %2570 = vmatprep.subr.mxu0 0.0
        %2571 = vmatpush1.msra.mxu0 0.0
        %2572 = vmatprep.subr.mxu0 0.0
        %2573 = vmatpush1.msra.mxu0 0.0
        %2574 = vmatprep.subr.mxu0 0.0
        %2575 = vmatpush1.msra.mxu0 0.0
        %2576 = vmatprep.subr.mxu0 0.0
        %2577 = vmatpush1.msra.mxu0 0.0
        %2578 = vmatprep.subr.mxu0 0.0
        %2579 = vmatpush1.msra.mxu0 0.0
        %2580 = vmatprep.subr.mxu0 0.0
        %2581 = vmatpush1.msra.mxu0 0.0
        %2582 = vmatprep.subr.mxu0 0.0
        %2583 = vmatpush1.msra.mxu0 0.0
        %2584 = vmatprep.subr.mxu0 0.0
        %2585 = vmatpush1.msra.mxu0 0.0
        %2586 = vmatprep.subr.mxu0 0.0
        %2587 = vmatpush1.msra.mxu0 0.0
        %2588 = vmatprep.subr.mxu0 0.0
        %2589 = vmatpush1.msra.mxu0 0.0
        %2590 = vmatprep.subr.mxu0 0.0
        %2591 = vmatpush1.msra.mxu0 0.0
        %2592 = vmatprep.subr.mxu0 0.0
        %2593 = vmatpush1.msra.mxu0 0.0
        %2594 = vmatprep.subr.mxu0 0.0
        %2595 = vmatpush1.msra.mxu0 0.0
        %2596 = vmatprep.mubr.f32.mxu0 0.0
        %v2597 = vand.u32 %v2431, 4294901760
        %2598 = vmatmul.mubr.f32.gmra.mrb[0].mxu0 %v2597
        %v2599 = vpop.f32.mrb[0].mxu0
        %v2600 = vadd.f32 %v2509, %v2599
        %v2601 = vpop.f32.mrb[0].mxu0
        %2602 = vdwg.mxu0
        %2603 = vmatprep.subr.mxu0 0.0
        %v2604 = vand.u32 %v2419, 4294901760
        %v2605 = vsub.f32 %v2419, %v2604
        %2606 = vmatpush1.msra.mxu0 %v2605
        %2607 = vmatprep.subr.mxu0 0.0
        %v2608 = vand.u32 %v2421, 4294901760
        %v2609 = vsub.f32 %v2421, %v2608
        %2610 = vmatpush1.msra.mxu0 %v2609
        %2611 = vmatprep.subr.mxu0 0.0
        %v2612 = vand.u32 %v2423, 4294901760
        %v2613 = vsub.f32 %v2423, %v2612
        %2614 = vmatpush1.msra.mxu0 %v2613
        %2615 = vmatprep.subr.mxu0 0.0
        %v2616 = vand.u32 %v2425, 4294901760
        %v2617 = vsub.f32 %v2425, %v2616
        %2618 = vmatpush1.msra.mxu0 %v2617
        %2619 = vmatprep.subr.mxu0 0.0
        %2620 = vmatpush1.msra.mxu0 0.0
        %2621 = vmatprep.subr.mxu0 0.0
        %2622 = vmatpush1.msra.mxu0 0.0
        %2623 = vmatprep.subr.mxu0 0.0
        %2624 = vmatpush1.msra.mxu0 0.0
        %2625 = vmatprep.subr.mxu0 0.0
        %2626 = vmatpush1.msra.mxu0 0.0
        %2627 = vmatprep.subr.mxu0 0.0
        %2628 = vmatpush1.msra.mxu0 0.0
        %2629 = vmatprep.subr.mxu0 0.0
        %2630 = vmatpush1.msra.mxu0 0.0
        %2631 = vmatprep.subr.mxu0 0.0
        %2632 = vmatpush1.msra.mxu0 0.0
        %2633 = vmatprep.subr.mxu0 0.0
        %2634 = vmatpush1.msra.mxu0 0.0
        %2635 = vmatprep.subr.mxu0 0.0
        %2636 = vmatpush1.msra.mxu0 0.0
        %2637 = vmatprep.subr.mxu0 0.0
        %2638 = vmatpush1.msra.mxu0 0.0
        %2639 = vmatprep.subr.mxu0 0.0
        %2640 = vmatpush1.msra.mxu0 0.0
        %2641 = vmatprep.subr.mxu0 0.0
        %2642 = vmatpush1.msra.mxu0 0.0
        %2643 = vmatprep.subr.mxu0 0.0
        %2644 = vmatpush1.msra.mxu0 0.0
        %2645 = vmatprep.subr.mxu0 0.0
        %2646 = vmatpush1.msra.mxu0 0.0
        %2647 = vmatprep.subr.mxu0 0.0
        %2648 = vmatpush1.msra.mxu0 0.0
        %2649 = vmatprep.subr.mxu0 0.0
        %2650 = vmatpush1.msra.mxu0 0.0
        %2651 = vmatprep.subr.mxu0 0.0
        %2652 = vmatpush1.msra.mxu0 0.0
        %2653 = vmatprep.subr.mxu0 0.0
        %2654 = vmatpush1.msra.mxu0 0.0
        %2655 = vmatprep.subr.mxu0 0.0
        %2656 = vmatpush1.msra.mxu0 0.0
        %2657 = vmatprep.subr.mxu0 0.0
        %2658 = vmatpush1.msra.mxu0 0.0
        %2659 = vmatprep.subr.mxu0 0.0
        %2660 = vmatpush1.msra.mxu0 0.0
        %2661 = vmatprep.subr.mxu0 0.0
        %2662 = vmatpush1.msra.mxu0 0.0
        %2663 = vmatprep.subr.mxu0 0.0
        %2664 = vmatpush1.msra.mxu0 0.0
        %2665 = vmatprep.subr.mxu0 0.0
        %2666 = vmatpush1.msra.mxu0 0.0
        %2667 = vmatprep.subr.mxu0 0.0
        %2668 = vmatpush1.msra.mxu0 0.0
        %2669 = vmatprep.subr.mxu0 0.0
        %2670 = vmatpush1.msra.mxu0 0.0
        %2671 = vmatprep.subr.mxu0 0.0
        %2672 = vmatpush1.msra.mxu0 0.0
        %2673 = vmatprep.subr.mxu0 0.0
        %2674 = vmatpush1.msra.mxu0 0.0
        %2675 = vmatprep.mubr.f32.mxu0 0.0
        %v2676 = vand.u32 %v2431, 4294901760
        %v2677 = vsub.f32 %v2431, %v2676
        %2678 = vmatmul.mubr.f32.gmra.mrb[0].mxu0 %v2677
        %v2679 = vpop.f32.mrb[0].mxu0
        %v2680 = vadd.f32 %v2600, %v2679
        %v2681 = vpop.f32.mrb[0].mxu0
        %2682 = vdwg.mxu0
        %2683 = vmatprep.subr.mxu0 0.0
        %v2684 = vand.u32 %v2419, 4294901760
        %2685 = vmatpush1.msra.mxu0 %v2684
        %2686 = vmatprep.subr.mxu0 0.0
        %v2687 = vand.u32 %v2421, 4294901760
        %2688 = vmatpush1.msra.mxu0 %v2687
        %2689 = vmatprep.subr.mxu0 0.0
        %v2690 = vand.u32 %v2423, 4294901760
        %2691 = vmatpush1.msra.mxu0 %v2690
        %2692 = vmatprep.subr.mxu0 0.0
        %v2693 = vand.u32 %v2425, 4294901760
        %2694 = vmatpush1.msra.mxu0 %v2693
        %2695 = vmatprep.subr.mxu0 0.0
        %2696 = vmatpush1.msra.mxu0 0.0
        %2697 = vmatprep.subr.mxu0 0.0
        %2698 = vmatpush1.msra.mxu0 0.0
        %2699 = vmatprep.subr.mxu0 0.0
        %2700 = vmatpush1.msra.mxu0 0.0
        %2701 = vmatprep.subr.mxu0 0.0
        %2702 = vmatpush1.msra.mxu0 0.0
        %2703 = vmatprep.subr.mxu0 0.0
        %2704 = vmatpush1.msra.mxu0 0.0
        %2705 = vmatprep.subr.mxu0 0.0
        %2706 = vmatpush1.msra.mxu0 0.0
        %2707 = vmatprep.subr.mxu0 0.0
        %2708 = vmatpush1.msra.mxu0 0.0
        %2709 = vmatprep.subr.mxu0 0.0
        %2710 = vmatpush1.msra.mxu0 0.0
        %2711 = vmatprep.subr.mxu0 0.0
        %2712 = vmatpush1.msra.mxu0 0.0
        %2713 = vmatprep.subr.mxu0 0.0
        %2714 = vmatpush1.msra.mxu0 0.0
        %2715 = vmatprep.subr.mxu0 0.0
        %2716 = vmatpush1.msra.mxu0 0.0
        %2717 = vmatprep.subr.mxu0 0.0
        %2718 = vmatpush1.msra.mxu0 0.0
        %2719 = vmatprep.subr.mxu0 0.0
        %2720 = vmatpush1.msra.mxu0 0.0
        %2721 = vmatprep.subr.mxu0 0.0
        %2722 = vmatpush1.msra.mxu0 0.0
        %2723 = vmatprep.subr.mxu0 0.0
        %2724 = vmatpush1.msra.mxu0 0.0
        %2725 = vmatprep.subr.mxu0 0.0
        %2726 = vmatpush1.msra.mxu0 0.0
        %2727 = vmatprep.subr.mxu0 0.0
        %2728 = vmatpush1.msra.mxu0 0.0
        %2729 = vmatprep.subr.mxu0 0.0
        %2730 = vmatpush1.msra.mxu0 0.0
        %2731 = vmatprep.subr.mxu0 0.0
        %2732 = vmatpush1.msra.mxu0 0.0
        %2733 = vmatprep.subr.mxu0 0.0
        %2734 = vmatpush1.msra.mxu0 0.0
        %2735 = vmatprep.subr.mxu0 0.0
        %2736 = vmatpush1.msra.mxu0 0.0
        %2737 = vmatprep.subr.mxu0 0.0
        %2738 = vmatpush1.msra.mxu0 0.0
        %2739 = vmatprep.subr.mxu0 0.0
        %2740 = vmatpush1.msra.mxu0 0.0
        %2741 = vmatprep.subr.mxu0 0.0
        %2742 = vmatpush1.msra.mxu0 0.0
        %2743 = vmatprep.subr.mxu0 0.0
        %2744 = vmatpush1.msra.mxu0 0.0
        %2745 = vmatprep.subr.mxu0 0.0
        %2746 = vmatpush1.msra.mxu0 0.0
        %2747 = vmatprep.subr.mxu0 0.0
        %2748 = vmatpush1.msra.mxu0 0.0
        %2749 = vmatprep.subr.mxu0 0.0
        %2750 = vmatpush1.msra.mxu0 0.0
        %2751 = vmatprep.mubr.f32.mxu0 0.0
        %v2752 = vand.u32 %v2431, 4294901760
        %v2753 = vsub.f32 %v2431, %v2752
        %v2754 = vand.u32 %v2753, 4294901760
        %2755 = vmatmul.mubr.f32.gmra.mrb[0].mxu0 %v2754
        %v2756 = vpop.f32.mrb[0].mxu0
        %v2757 = vadd.f32 %v2680, %v2756
        %v2758 = vpop.f32.mrb[0].mxu0
        %2759 = vdwg.mxu0
        %2760 = vmatprep.subr.mxu0 0.0
        %v2761 = vand.u32 %v2419, 4294901760
        %v2762 = vsub.f32 %v2419, %v2761
        %v2763 = vand.u32 %v2762, 4294901760
        %2764 = vmatpush1.msra.mxu0 %v2763
        %2765 = vmatprep.subr.mxu0 0.0
        %v2766 = vand.u32 %v2421, 4294901760
        %v2767 = vsub.f32 %v2421, %v2766
        %v2768 = vand.u32 %v2767, 4294901760
        %2769 = vmatpush1.msra.mxu0 %v2768
        %2770 = vmatprep.subr.mxu0 0.0
        %v2771 = vand.u32 %v2423, 4294901760
        %v2772 = vsub.f32 %v2423, %v2771
        %v2773 = vand.u32 %v2772, 4294901760
        %2774 = vmatpush1.msra.mxu0 %v2773
        %2775 = vmatprep.subr.mxu0 0.0
        %v2776 = vand.u32 %v2425, 4294901760
        %v2777 = vsub.f32 %v2425, %v2776
        %v2778 = vand.u32 %v2777, 4294901760
        %2779 = vmatpush1.msra.mxu0 %v2778
        %2780 = vmatprep.subr.mxu0 0.0
        %2781 = vmatpush1.msra.mxu0 0.0
        %2782 = vmatprep.subr.mxu0 0.0
        %2783 = vmatpush1.msra.mxu0 0.0
        %2784 = vmatprep.subr.mxu0 0.0
        %2785 = vmatpush1.msra.mxu0 0.0
        %2786 = vmatprep.subr.mxu0 0.0
        %2787 = vmatpush1.msra.mxu0 0.0
        %2788 = vmatprep.subr.mxu0 0.0
        %2789 = vmatpush1.msra.mxu0 0.0
        %2790 = vmatprep.subr.mxu0 0.0
        %2791 = vmatpush1.msra.mxu0 0.0
        %2792 = vmatprep.subr.mxu0 0.0
        %2793 = vmatpush1.msra.mxu0 0.0
        %2794 = vmatprep.subr.mxu0 0.0
        %2795 = vmatpush1.msra.mxu0 0.0
        %2796 = vmatprep.subr.mxu0 0.0
        %2797 = vmatpush1.msra.mxu0 0.0
        %2798 = vmatprep.subr.mxu0 0.0
        %2799 = vmatpush1.msra.mxu0 0.0
        %2800 = vmatprep.subr.mxu0 0.0
        %2801 = vmatpush1.msra.mxu0 0.0
        %2802 = vmatprep.subr.mxu0 0.0
        %2803 = vmatpush1.msra.mxu0 0.0
        %2804 = vmatprep.subr.mxu0 0.0
        %2805 = vmatpush1.msra.mxu0 0.0
        %2806 = vmatprep.subr.mxu0 0.0
        %2807 = vmatpush1.msra.mxu0 0.0
        %2808 = vmatprep.subr.mxu0 0.0
        %2809 = vmatpush1.msra.mxu0 0.0
        %2810 = vmatprep.subr.mxu0 0.0
        %2811 = vmatpush1.msra.mxu0 0.0
        %2812 = vmatprep.subr.mxu0 0.0
        %2813 = vmatpush1.msra.mxu0 0.0
        %2814 = vmatprep.subr.mxu0 0.0
        %2815 = vmatpush1.msra.mxu0 0.0
        %2816 = vmatprep.subr.mxu0 0.0
        %2817 = vmatpush1.msra.mxu0 0.0
        %2818 = vmatprep.subr.mxu0 0.0
        %2819 = vmatpush1.msra.mxu0 0.0
        %2820 = vmatprep.subr.mxu0 0.0
        %2821 = vmatpush1.msra.mxu0 0.0
        %2822 = vmatprep.subr.mxu0 0.0
        %2823 = vmatpush1.msra.mxu0 0.0
        %2824 = vmatprep.subr.mxu0 0.0
        %2825 = vmatpush1.msra.mxu0 0.0
        %2826 = vmatprep.subr.mxu0 0.0
        %2827 = vmatpush1.msra.mxu0 0.0
        %2828 = vmatprep.subr.mxu0 0.0
        %2829 = vmatpush1.msra.mxu0 0.0
        %2830 = vmatprep.subr.mxu0 0.0
        %2831 = vmatpush1.msra.mxu0 0.0
        %2832 = vmatprep.subr.mxu0 0.0
        %2833 = vmatpush1.msra.mxu0 0.0
        %2834 = vmatprep.subr.mxu0 0.0
        %2835 = vmatpush1.msra.mxu0 0.0
        %2836 = vmatprep.mubr.f32.mxu0 0.0
        %v2837 = vand.u32 %v2431, 4294901760
        %2838 = vmatmul.mubr.f32.gmra.mrb[0].mxu0 %v2837
        %v2839 = vpop.f32.mrb[0].mxu0
        %v2840 = vadd.f32 %v2757, %v2839
        %v2841 = vpop.f32.mrb[0].mxu0
        %2842 = vdwg.mxu0
        %2843 = vmatprep.subr.mxu0 0.0
        %v2844 = vand.u32 %v2419, 4294901760
        %2845 = vmatpush1.msra.mxu0 %v2844
        %2846 = vmatprep.subr.mxu0 0.0
        %v2847 = vand.u32 %v2421, 4294901760
        %2848 = vmatpush1.msra.mxu0 %v2847
        %2849 = vmatprep.subr.mxu0 0.0
        %v2850 = vand.u32 %v2423, 4294901760
        %2851 = vmatpush1.msra.mxu0 %v2850
        %2852 = vmatprep.subr.mxu0 0.0
        %v2853 = vand.u32 %v2425, 4294901760
        %2854 = vmatpush1.msra.mxu0 %v2853
        %2855 = vmatprep.subr.mxu0 0.0
        %2856 = vmatpush1.msra.mxu0 0.0
        %2857 = vmatprep.subr.mxu0 0.0
        %2858 = vmatpush1.msra.mxu0 0.0
        %2859 = vmatprep.subr.mxu0 0.0
        %2860 = vmatpush1.msra.mxu0 0.0
        %2861 = vmatprep.subr.mxu0 0.0
        %2862 = vmatpush1.msra.mxu0 0.0
        %2863 = vmatprep.subr.mxu0 0.0
        %2864 = vmatpush1.msra.mxu0 0.0
        %2865 = vmatprep.subr.mxu0 0.0
        %2866 = vmatpush1.msra.mxu0 0.0
        %2867 = vmatprep.subr.mxu0 0.0
        %2868 = vmatpush1.msra.mxu0 0.0
        %2869 = vmatprep.subr.mxu0 0.0
        %2870 = vmatpush1.msra.mxu0 0.0
        %2871 = vmatprep.subr.mxu0 0.0
        %2872 = vmatpush1.msra.mxu0 0.0
        %2873 = vmatprep.subr.mxu0 0.0
        %2874 = vmatpush1.msra.mxu0 0.0
        %2875 = vmatprep.subr.mxu0 0.0
        %2876 = vmatpush1.msra.mxu0 0.0
        %2877 = vmatprep.subr.mxu0 0.0
        %2878 = vmatpush1.msra.mxu0 0.0
        %2879 = vmatprep.subr.mxu0 0.0
        %2880 = vmatpush1.msra.mxu0 0.0
        %2881 = vmatprep.subr.mxu0 0.0
        %2882 = vmatpush1.msra.mxu0 0.0
        %2883 = vmatprep.subr.mxu0 0.0
        %2884 = vmatpush1.msra.mxu0 0.0
        %2885 = vmatprep.subr.mxu0 0.0
        %2886 = vmatpush1.msra.mxu0 0.0
        %2887 = vmatprep.subr.mxu0 0.0
        %2888 = vmatpush1.msra.mxu0 0.0
        %2889 = vmatprep.subr.mxu0 0.0
        %2890 = vmatpush1.msra.mxu0 0.0
        %2891 = vmatprep.subr.mxu0 0.0
        %2892 = vmatpush1.msra.mxu0 0.0
        %2893 = vmatprep.subr.mxu0 0.0
        %2894 = vmatpush1.msra.mxu0 0.0
        %2895 = vmatprep.subr.mxu0 0.0
        %2896 = vmatpush1.msra.mxu0 0.0
        %2897 = vmatprep.subr.mxu0 0.0
        %2898 = vmatpush1.msra.mxu0 0.0
        %2899 = vmatprep.subr.mxu0 0.0
        %2900 = vmatpush1.msra.mxu0 0.0
        %2901 = vmatprep.subr.mxu0 0.0
        %2902 = vmatpush1.msra.mxu0 0.0
        %2903 = vmatprep.subr.mxu0 0.0
        %2904 = vmatpush1.msra.mxu0 0.0
        %2905 = vmatprep.subr.mxu0 0.0
        %2906 = vmatpush1.msra.mxu0 0.0
        %2907 = vmatprep.subr.mxu0 0.0
        %2908 = vmatpush1.msra.mxu0 0.0
        %2909 = vmatprep.subr.mxu0 0.0
        %2910 = vmatpush1.msra.mxu0 0.0
        %2911 = vmatprep.mubr.f32.mxu0 0.0
        %v2912 = vand.u32 %v2431, 4294901760
        %2913 = vmatmul.mubr.f32.gmra.mrb[0].mxu0 %v2912
        %v2914 = vpop.f32.mrb[0].mxu0
        %v2915 = vadd.f32 %v2840, %v2914
        %v2916 = vpop.f32.mrb[0].mxu0
        %2917 = vdwg.mxu0
        %v2918 = vrcp.pop %v2417
        %v2919 = vmul.f32 %v2915, %v2918
        %s2920 = scalar_lea.vmem %s5, 256
        %v2921 = vld [vmem:[%s2920] sm:$0xff]
        %v2922 = vld [vmem:[%s2920 + $0x8] sm:$0xff]
        %v2923 = vld [vmem:[%s2920 + $0x10] sm:$0xff]
        %v2924 = vld [vmem:[%s2920 + $0x18] sm:$0xff]
        %v2925 = vld [vmem:[%s2920 + $0x20] sm:$0xff]
        %v2926 = vld [vmem:[%s2920 + $0x28] sm:$0xff]
        %v2927 = vld [vmem:[%s2920 + $0x30] sm:$0xff]
        %v2928 = vld [vmem:[%s2920 + $0x38] sm:$0xff]
        %v2929 = vld [vmem:[%s2920 + $0x40] sm:$0xff]
        %v2930 = vld [vmem:[%s2920 + $0x48] sm:$0xff]
        %v2931 = vld [vmem:[%s2920 + $0x50] sm:$0xff]
        %v2932 = vld [vmem:[%s2920 + $0x58] sm:$0xff]
        %v2933 = vld [vmem:[%s2920 + $0x60] sm:$0xff]
        %v2934 = vld [vmem:[%s2920 + $0x68] sm:$0xff]
        %v2935 = vld [vmem:[%s2920 + $0x70] sm:$0xff]
        %v2936 = vld [vmem:[%s2920 + $0x78] sm:$0xff]
        %v2937 = vld [vmem:[%s2920 + $0x80] sm:$0xff]
        %v2938 = vld [vmem:[%s2920 + $0x88] sm:$0xff]
        %v2939 = vld [vmem:[%s2920 + $0x90] sm:$0xff]
        %v2940 = vld [vmem:[%s2920 + $0x98] sm:$0xff]
        %v2941 = vld [vmem:[%s2920 + $0xa0] sm:$0xff]
        %v2942 = vld [vmem:[%s2920 + $0xa8] sm:$0xff]
        %v2943 = vld [vmem:[%s2920 + $0xb0] sm:$0xff]
        %v2944 = vld [vmem:[%s2920 + $0xb8] sm:$0xff]
        %v2945 = vld [vmem:[%s2920 + $0xc0] sm:$0xff]
        %v2946 = vld [vmem:[%s2920 + $0xc8] sm:$0xff]
        %v2947 = vld [vmem:[%s2920 + $0xd0] sm:$0xff]
        %v2948 = vld [vmem:[%s2920 + $0xd8] sm:$0xff]
        %v2949 = vld [vmem:[%s2920 + $0xe0] sm:$0xff]
        %v2950 = vld [vmem:[%s2920 + $0xe8] sm:$0xff]
        %v2951 = vld [vmem:[%s2920 + $0xf0] sm:$0xff]
        %v2952 = vld [vmem:[%s2920 + $0xf8] sm:$0xff]
        %2985 = vrot.lane.b32.xlu0 %v2921, 16
        %v2986 = vpop.permute.xlu0 %2985
        %2987 = vrot.lane.b32.xlu0 %v2922, 16
        %v2988 = vpop.permute.xlu0 %2987
        %2989 = vrot.lane.b32.xlu0 %v2923, 16
        %v2990 = vpop.permute.xlu0 %2989
        %2991 = vrot.lane.b32.xlu0 %v2924, 16
        %v2992 = vpop.permute.xlu0 %2991
        %2993 = vrot.lane.b32.xlu0 %v2925, 16
        %v2994 = vpop.permute.xlu0 %2993
        %2995 = vrot.lane.b32.xlu0 %v2926, 16
        %v2996 = vpop.permute.xlu0 %2995
        %2997 = vrot.lane.b32.xlu0 %v2927, 16
        %v2998 = vpop.permute.xlu0 %2997
        %2999 = vrot.lane.b32.xlu0 %v2928, 16
        %v3000 = vpop.permute.xlu0 %2999
        %3001 = vrot.lane.b32.xlu0 %v2929, 16
        %v3002 = vpop.permute.xlu0 %3001
        %3003 = vrot.lane.b32.xlu0 %v2930, 16
        %v3004 = vpop.permute.xlu0 %3003
        %3005 = vrot.lane.b32.xlu0 %v2931, 16
        %v3006 = vpop.permute.xlu0 %3005
        %3007 = vrot.lane.b32.xlu0 %v2932, 16
        %v3008 = vpop.permute.xlu0 %3007
        %3009 = vrot.lane.b32.xlu0 %v2933, 16
        %v3010 = vpop.permute.xlu0 %3009
        %3011 = vrot.lane.b32.xlu0 %v2934, 16
        %v3012 = vpop.permute.xlu0 %3011
        %3013 = vrot.lane.b32.xlu0 %v2935, 16
        %v3014 = vpop.permute.xlu0 %3013
        %3015 = vrot.lane.b32.xlu0 %v2936, 16
        %v3016 = vpop.permute.xlu0 %3015
        %3017 = vrot.lane.b32.xlu0 %v2937, 16
        %v3018 = vpop.permute.xlu0 %3017
        %3019 = vrot.lane.b32.xlu0 %v2938, 16
        %v3020 = vpop.permute.xlu0 %3019
        %3021 = vrot.lane.b32.xlu0 %v2939, 16
        %v3022 = vpop.permute.xlu0 %3021
        %3023 = vrot.lane.b32.xlu0 %v2940, 16
        %v3024 = vpop.permute.xlu0 %3023
        %3025 = vrot.lane.b32.xlu0 %v2941, 16
        %v3026 = vpop.permute.xlu0 %3025
        %3027 = vrot.lane.b32.xlu0 %v2942, 16
        %v3028 = vpop.permute.xlu0 %3027
        %3029 = vrot.lane.b32.xlu0 %v2943, 16
        %v3030 = vpop.permute.xlu0 %3029
        %3031 = vrot.lane.b32.xlu0 %v2944, 16
        %v3032 = vpop.permute.xlu0 %3031
        %3033 = vrot.lane.b32.xlu0 %v2945, 16
        %v3034 = vpop.permute.xlu0 %3033
        %3035 = vrot.lane.b32.xlu0 %v2946, 16
        %v3036 = vpop.permute.xlu0 %3035
        %3037 = vrot.lane.b32.xlu0 %v2947, 16
        %v3038 = vpop.permute.xlu0 %3037
        %3039 = vrot.lane.b32.xlu0 %v2948, 16
        %v3040 = vpop.permute.xlu0 %3039
        %3041 = vrot.lane.b32.xlu0 %v2949, 16
        %v3042 = vpop.permute.xlu0 %3041
        %3043 = vrot.lane.b32.xlu0 %v2950, 16
        %v3044 = vpop.permute.xlu0 %3043
        %3045 = vrot.lane.b32.xlu0 %v2951, 16
        %v3046 = vpop.permute.xlu0 %3045
        %3047 = vrot.lane.b32.xlu0 %v2952, 16
        %v3048 = vpop.permute.xlu0 %3047
        %v3081 = vmul.f32 %v1537, %v2986
        %v3082 = vmul.f32 %v1537, %v2988
        %v3083 = vmul.f32 %v1537, %v2990
        %v3084 = vmul.f32 %v1537, %v2992
        %v3085 = vmul.f32 %v1541, %v2994
        %v3086 = vmul.f32 %v1541, %v2996
        %v3087 = vmul.f32 %v1541, %v2998
        %v3088 = vmul.f32 %v1541, %v3000
        %v3089 = vmul.f32 %v1545, %v3002
        %v3090 = vmul.f32 %v1545, %v3004
        %v3091 = vmul.f32 %v1545, %v3006
        %v3092 = vmul.f32 %v1545, %v3008
        %v3093 = vmul.f32 %v1549, %v3010
        %v3094 = vmul.f32 %v1549, %v3012
        %v3095 = vmul.f32 %v1549, %v3014
        %v3096 = vmul.f32 %v1549, %v3016
        %v3097 = vmul.f32 %v1553, %v3018
        %v3098 = vmul.f32 %v1553, %v3020
        %v3099 = vmul.f32 %v1553, %v3022
        %v3100 = vmul.f32 %v1553, %v3024
        %v3101 = vmul.f32 %v1557, %v3026
        %v3102 = vmul.f32 %v1557, %v3028
        %v3103 = vmul.f32 %v1557, %v3030
        %v3104 = vmul.f32 %v1557, %v3032
        %v3105 = vmul.f32 %v1561, %v3034
        %v3106 = vmul.f32 %v1561, %v3036
        %v3107 = vmul.f32 %v1561, %v3038
        %v3108 = vmul.f32 %v1561, %v3040
        %v3109 = vmul.f32 %v1565, %v3042
        %v3110 = vmul.f32 %v1565, %v3044
        %v3111 = vmul.f32 %v1565, %v3046
        %v3112 = vmul.f32 %v1565, %v3048
        %3145 = vrot.lane.b32.xlu0 %v3081, 112
        %v3146 = vpop.permute.xlu0 %3145
        %3147 = vrot.lane.b32.xlu0 %v3082, 112
        %v3148 = vpop.permute.xlu0 %3147
        %3149 = vrot.lane.b32.xlu0 %v3083, 112
        %v3150 = vpop.permute.xlu0 %3149
        %3151 = vrot.lane.b32.xlu0 %v3084, 112
        %v3152 = vpop.permute.xlu0 %3151
        %3153 = vrot.lane.b32.xlu0 %v3085, 112
        %v3154 = vpop.permute.xlu0 %3153
        %3155 = vrot.lane.b32.xlu0 %v3086, 112
        %v3156 = vpop.permute.xlu0 %3155
        %3157 = vrot.lane.b32.xlu0 %v3087, 112
        %v3158 = vpop.permute.xlu0 %3157
        %3159 = vrot.lane.b32.xlu0 %v3088, 112
        %v3160 = vpop.permute.xlu0 %3159
        %3161 = vrot.lane.b32.xlu0 %v3089, 112
        %v3162 = vpop.permute.xlu0 %3161
        %3163 = vrot.lane.b32.xlu0 %v3090, 112
        %v3164 = vpop.permute.xlu0 %3163
        %3165 = vrot.lane.b32.xlu0 %v3091, 112
        %v3166 = vpop.permute.xlu0 %3165
        %3167 = vrot.lane.b32.xlu0 %v3092, 112
        %v3168 = vpop.permute.xlu0 %3167
        %3169 = vrot.lane.b32.xlu0 %v3093, 112
        %v3170 = vpop.permute.xlu0 %3169
        %3171 = vrot.lane.b32.xlu0 %v3094, 112
        %v3172 = vpop.permute.xlu0 %3171
        %3173 = vrot.lane.b32.xlu0 %v3095, 112
        %v3174 = vpop.permute.xlu0 %3173
        %3175 = vrot.lane.b32.xlu0 %v3096, 112
        %v3176 = vpop.permute.xlu0 %3175
        %3177 = vrot.lane.b32.xlu0 %v3097, 112
        %v3178 = vpop.permute.xlu0 %3177
        %3179 = vrot.lane.b32.xlu0 %v3098, 112
        %v3180 = vpop.permute.xlu0 %3179
        %3181 = vrot.lane.b32.xlu0 %v3099, 112
        %v3182 = vpop.permute.xlu0 %3181
        %3183 = vrot.lane.b32.xlu0 %v3100, 112
        %v3184 = vpop.permute.xlu0 %3183
        %3185 = vrot.lane.b32.xlu0 %v3101, 112
        %v3186 = vpop.permute.xlu0 %3185
        %3187 = vrot.lane.b32.xlu0 %v3102, 112
        %v3188 = vpop.permute.xlu0 %3187
        %3189 = vrot.lane.b32.xlu0 %v3103, 112
        %v3190 = vpop.permute.xlu0 %3189
        %3191 = vrot.lane.b32.xlu0 %v3104, 112
        %v3192 = vpop.permute.xlu0 %3191
        %3193 = vrot.lane.b32.xlu0 %v3105, 112
        %v3194 = vpop.permute.xlu0 %3193
        %3195 = vrot.lane.b32.xlu0 %v3106, 112
        %v3196 = vpop.permute.xlu0 %3195
        %3197 = vrot.lane.b32.xlu0 %v3107, 112
        %v3198 = vpop.permute.xlu0 %3197
        %3199 = vrot.lane.b32.xlu0 %v3108, 112
        %v3200 = vpop.permute.xlu0 %3199
        %3201 = vrot.lane.b32.xlu0 %v3109, 112
        %v3202 = vpop.permute.xlu0 %3201
        %3203 = vrot.lane.b32.xlu0 %v3110, 112
        %v3204 = vpop.permute.xlu0 %3203
        %3205 = vrot.lane.b32.xlu0 %v3111, 112
        %v3206 = vpop.permute.xlu0 %3205
        %3207 = vrot.lane.b32.xlu0 %v3112, 112
        %v3208 = vpop.permute.xlu0 %3207
        %v3241 = vsel %vm1606, %v3146, 0.0
        %3242 = vadd.xlane.f32.xlu0 %v3241
        %v3243 = vpop.xlane.xlu0 %3242
        %v3244 = vsel %vm1606, %v3148, 0.0
        %3245 = vadd.xlane.f32.xlu0 %v3244
        %v3246 = vpop.xlane.xlu0 %3245
        %v3247 = vsel %vm1606, %v3150, 0.0
        %3248 = vadd.xlane.f32.xlu0 %v3247
        %v3249 = vpop.xlane.xlu0 %3248
        %v3250 = vsel %vm1606, %v3152, 0.0
        %3251 = vadd.xlane.f32.xlu0 %v3250
        %v3252 = vpop.xlane.xlu0 %3251
        %v3253 = vsel %vm1606, %v3154, 0.0
        %3254 = vadd.xlane.f32.xlu0 %v3253
        %v3255 = vpop.xlane.xlu0 %3254
        %v3256 = vsel %vm1606, %v3156, 0.0
        %3257 = vadd.xlane.f32.xlu0 %v3256
        %v3258 = vpop.xlane.xlu0 %3257
        %v3259 = vsel %vm1606, %v3158, 0.0
        %3260 = vadd.xlane.f32.xlu0 %v3259
        %v3261 = vpop.xlane.xlu0 %3260
        %v3262 = vsel %vm1606, %v3160, 0.0
        %3263 = vadd.xlane.f32.xlu0 %v3262
        %v3264 = vpop.xlane.xlu0 %3263
        %v3265 = vsel %vm1606, %v3162, 0.0
        %3266 = vadd.xlane.f32.xlu0 %v3265
        %v3267 = vpop.xlane.xlu0 %3266
        %v3268 = vsel %vm1606, %v3164, 0.0
        %3269 = vadd.xlane.f32.xlu0 %v3268
        %v3270 = vpop.xlane.xlu0 %3269
        %v3271 = vsel %vm1606, %v3166, 0.0
        %3272 = vadd.xlane.f32.xlu0 %v3271
        %v3273 = vpop.xlane.xlu0 %3272
        %v3274 = vsel %vm1606, %v3168, 0.0
        %3275 = vadd.xlane.f32.xlu0 %v3274
        %v3276 = vpop.xlane.xlu0 %3275
        %v3277 = vsel %vm1606, %v3170, 0.0
        %3278 = vadd.xlane.f32.xlu0 %v3277
        %v3279 = vpop.xlane.xlu0 %3278
        %v3280 = vsel %vm1606, %v3172, 0.0
        %3281 = vadd.xlane.f32.xlu0 %v3280
        %v3282 = vpop.xlane.xlu0 %3281
        %v3283 = vsel %vm1606, %v3174, 0.0
        %3284 = vadd.xlane.f32.xlu0 %v3283
        %v3285 = vpop.xlane.xlu0 %3284
        %v3286 = vsel %vm1606, %v3176, 0.0
        %3287 = vadd.xlane.f32.xlu0 %v3286
        %v3288 = vpop.xlane.xlu0 %3287
        %v3289 = vsel %vm1606, %v3178, 0.0
        %3290 = vadd.xlane.f32.xlu0 %v3289
        %v3291 = vpop.xlane.xlu0 %3290
        %v3292 = vsel %vm1606, %v3180, 0.0
        %3293 = vadd.xlane.f32.xlu0 %v3292
        %v3294 = vpop.xlane.xlu0 %3293
        %v3295 = vsel %vm1606, %v3182, 0.0
        %3296 = vadd.xlane.f32.xlu0 %v3295
        %v3297 = vpop.xlane.xlu0 %3296
        %v3298 = vsel %vm1606, %v3184, 0.0
        %3299 = vadd.xlane.f32.xlu0 %v3298
        %v3300 = vpop.xlane.xlu0 %3299
        %v3301 = vsel %vm1606, %v3186, 0.0
        %3302 = vadd.xlane.f32.xlu0 %v3301
        %v3303 = vpop.xlane.xlu0 %3302
        %v3304 = vsel %vm1606, %v3188, 0.0
        %3305 = vadd.xlane.f32.xlu0 %v3304
        %v3306 = vpop.xlane.xlu0 %3305
        %v3307 = vsel %vm1606, %v3190, 0.0
        %3308 = vadd.xlane.f32.xlu0 %v3307
        %v3309 = vpop.xlane.xlu0 %3308
        %v3310 = vsel %vm1606, %v3192, 0.0
        %3311 = vadd.xlane.f32.xlu0 %v3310
        %v3312 = vpop.xlane.xlu0 %3311
        %v3313 = vsel %vm1606, %v3194, 0.0
        %3314 = vadd.xlane.f32.xlu0 %v3313
        %v3315 = vpop.xlane.xlu0 %3314
        %v3316 = vsel %vm1606, %v3196, 0.0
        %3317 = vadd.xlane.f32.xlu0 %v3316
        %v3318 = vpop.xlane.xlu0 %3317
        %v3319 = vsel %vm1606, %v3198, 0.0
        %3320 = vadd.xlane.f32.xlu0 %v3319
        %v3321 = vpop.xlane.xlu0 %3320
        %v3322 = vsel %vm1606, %v3200, 0.0
        %3323 = vadd.xlane.f32.xlu0 %v3322
        %v3324 = vpop.xlane.xlu0 %3323
        %v3325 = vsel %vm1606, %v3202, 0.0
        %3326 = vadd.xlane.f32.xlu0 %v3325
        %v3327 = vpop.xlane.xlu0 %3326
        %v3328 = vsel %vm1606, %v3204, 0.0
        %3329 = vadd.xlane.f32.xlu0 %v3328
        %v3330 = vpop.xlane.xlu0 %3329
        %v3331 = vsel %vm1606, %v3206, 0.0
        %3332 = vadd.xlane.f32.xlu0 %v3331
        %v3333 = vpop.xlane.xlu0 %3332
        %v3334 = vsel %vm1606, %v3208, 0.0
        %3335 = vadd.xlane.f32.xlu0 %v3334
        %v3336 = vpop.xlane.xlu0 %3335
        %3337 = vrot.lane.b32.xlu0 %v758, 112
        %v3338 = vpop.permute.xlu0 %3337
        %3339 = vrot.lane.b32.xlu0 %v1431, 96
        %v3340 = vpop.permute.xlu0 %3339
        %3341 = vrot.lane.b32.xlu0 %v1437, 96
        %v3342 = vpop.permute.xlu0 %3341
        %3343 = vrot.lane.b32.xlu0 %v1443, 96
        %v3344 = vpop.permute.xlu0 %3343
        %3345 = vrot.lane.b32.xlu0 %v1449, 96
        %v3346 = vpop.permute.xlu0 %3345
        %v3379 = vlaneseq
        %v3380 = vshrl.u32 %v3379, 7
        %v3381 = vsub.s32 %v1736, %v3380
        %v3382 = vrot.slane %v3243, %v3381
        %v3383 = vlaneseq
        %v3384 = vshrl.u32 %v3383, 7
        %v3385 = vsub.s32 %v1741, %v3384
        %v3386 = vrot.slane %v3246, %v3385
        %v3387 = vsel %vm1746, %v3386, %v3382
        %v3388 = vlaneseq
        %v3389 = vshrl.u32 %v3388, 7
        %v3390 = vsub.s32 %v1748, %v3389
        %v3391 = vrot.slane %v3249, %v3390
        %v3392 = vsel %vm1753, %v3391, %v3387
        %v3393 = vlaneseq
        %v3394 = vshrl.u32 %v3393, 7
        %v3395 = vsub.s32 %v1755, %v3394
        %v3396 = vrot.slane %v3252, %v3395
        %v3397 = vsel %vm1760, %v3396, %v3392
        %v3398 = vlaneseq
        %v3399 = vshrl.u32 %v3398, 7
        %v3400 = vsub.s32 %v1736, %v3399
        %v3401 = vrot.slane %v3255, %v3400
        %v3402 = vlaneseq
        %v3403 = vshrl.u32 %v3402, 7
        %v3404 = vsub.s32 %v1741, %v3403
        %v3405 = vrot.slane %v3258, %v3404
        %v3406 = vsel %vm1746, %v3405, %v3401
        %v3407 = vlaneseq
        %v3408 = vshrl.u32 %v3407, 7
        %v3409 = vsub.s32 %v1748, %v3408
        %v3410 = vrot.slane %v3261, %v3409
        %v3411 = vsel %vm1753, %v3410, %v3406
        %v3412 = vlaneseq
        %v3413 = vshrl.u32 %v3412, 7
        %v3414 = vsub.s32 %v1755, %v3413
        %v3415 = vrot.slane %v3264, %v3414
        %v3416 = vsel %vm1760, %v3415, %v3411
        %v3417 = vlaneseq
        %v3418 = vshrl.u32 %v3417, 7
        %v3419 = vsub.s32 %v1736, %v3418
        %v3420 = vrot.slane %v3267, %v3419
        %v3421 = vlaneseq
        %v3422 = vshrl.u32 %v3421, 7
        %v3423 = vsub.s32 %v1741, %v3422
        %v3424 = vrot.slane %v3270, %v3423
        %v3425 = vsel %vm1746, %v3424, %v3420
        %v3426 = vlaneseq
        %v3427 = vshrl.u32 %v3426, 7
        %v3428 = vsub.s32 %v1748, %v3427
        %v3429 = vrot.slane %v3273, %v3428
        %v3430 = vsel %vm1753, %v3429, %v3425
        %v3431 = vlaneseq
        %v3432 = vshrl.u32 %v3431, 7
        %v3433 = vsub.s32 %v1755, %v3432
        %v3434 = vrot.slane %v3276, %v3433
        %v3435 = vsel %vm1760, %v3434, %v3430
        %v3436 = vlaneseq
        %v3437 = vshrl.u32 %v3436, 7
        %v3438 = vsub.s32 %v1736, %v3437
        %v3439 = vrot.slane %v3279, %v3438
        %v3440 = vlaneseq
        %v3441 = vshrl.u32 %v3440, 7
        %v3442 = vsub.s32 %v1741, %v3441
        %v3443 = vrot.slane %v3282, %v3442
        %v3444 = vsel %vm1746, %v3443, %v3439
        %v3445 = vlaneseq
        %v3446 = vshrl.u32 %v3445, 7
        %v3447 = vsub.s32 %v1748, %v3446
        %v3448 = vrot.slane %v3285, %v3447
        %v3449 = vsel %vm1753, %v3448, %v3444
        %v3450 = vlaneseq
        %v3451 = vshrl.u32 %v3450, 7
        %v3452 = vsub.s32 %v1755, %v3451
        %v3453 = vrot.slane %v3288, %v3452
        %v3454 = vsel %vm1760, %v3453, %v3449
        %v3455 = vlaneseq
        %v3456 = vshrl.u32 %v3455, 7
        %v3457 = vsub.s32 %v1736, %v3456
        %v3458 = vrot.slane %v3291, %v3457
        %v3459 = vlaneseq
        %v3460 = vshrl.u32 %v3459, 7
        %v3461 = vsub.s32 %v1741, %v3460
        %v3462 = vrot.slane %v3294, %v3461
        %v3463 = vsel %vm1746, %v3462, %v3458
        %v3464 = vlaneseq
        %v3465 = vshrl.u32 %v3464, 7
        %v3466 = vsub.s32 %v1748, %v3465
        %v3467 = vrot.slane %v3297, %v3466
        %v3468 = vsel %vm1753, %v3467, %v3463
        %v3469 = vlaneseq
        %v3470 = vshrl.u32 %v3469, 7
        %v3471 = vsub.s32 %v1755, %v3470
        %v3472 = vrot.slane %v3300, %v3471
        %v3473 = vsel %vm1760, %v3472, %v3468
        %v3474 = vlaneseq
        %v3475 = vshrl.u32 %v3474, 7
        %v3476 = vsub.s32 %v1736, %v3475
        %v3477 = vrot.slane %v3303, %v3476
        %v3478 = vlaneseq
        %v3479 = vshrl.u32 %v3478, 7
        %v3480 = vsub.s32 %v1741, %v3479
        %v3481 = vrot.slane %v3306, %v3480
        %v3482 = vsel %vm1746, %v3481, %v3477
        %v3483 = vlaneseq
        %v3484 = vshrl.u32 %v3483, 7
        %v3485 = vsub.s32 %v1748, %v3484
        %v3486 = vrot.slane %v3309, %v3485
        %v3487 = vsel %vm1753, %v3486, %v3482
        %v3488 = vlaneseq
        %v3489 = vshrl.u32 %v3488, 7
        %v3490 = vsub.s32 %v1755, %v3489
        %v3491 = vrot.slane %v3312, %v3490
        %v3492 = vsel %vm1760, %v3491, %v3487
        %v3493 = vlaneseq
        %v3494 = vshrl.u32 %v3493, 7
        %v3495 = vsub.s32 %v1736, %v3494
        %v3496 = vrot.slane %v3315, %v3495
        %v3497 = vlaneseq
        %v3498 = vshrl.u32 %v3497, 7
        %v3499 = vsub.s32 %v1741, %v3498
        %v3500 = vrot.slane %v3318, %v3499
        %v3501 = vsel %vm1746, %v3500, %v3496
        %v3502 = vlaneseq
        %v3503 = vshrl.u32 %v3502, 7
        %v3504 = vsub.s32 %v1748, %v3503
        %v3505 = vrot.slane %v3321, %v3504
        %v3506 = vsel %vm1753, %v3505, %v3501
        %v3507 = vlaneseq
        %v3508 = vshrl.u32 %v3507, 7
        %v3509 = vsub.s32 %v1755, %v3508
        %v3510 = vrot.slane %v3324, %v3509
        %v3511 = vsel %vm1760, %v3510, %v3506
        %v3512 = vlaneseq
        %v3513 = vshrl.u32 %v3512, 7
        %v3514 = vsub.s32 %v1736, %v3513
        %v3515 = vrot.slane %v3327, %v3514
        %v3516 = vlaneseq
        %v3517 = vshrl.u32 %v3516, 7
        %v3518 = vsub.s32 %v1741, %v3517
        %v3519 = vrot.slane %v3330, %v3518
        %v3520 = vsel %vm1746, %v3519, %v3515
        %v3521 = vlaneseq
        %v3522 = vshrl.u32 %v3521, 7
        %v3523 = vsub.s32 %v1748, %v3522
        %v3524 = vrot.slane %v3333, %v3523
        %v3525 = vsel %vm1753, %v3524, %v3520
        %v3526 = vlaneseq
        %v3527 = vshrl.u32 %v3526, 7
        %v3528 = vsub.s32 %v1755, %v3527
        %v3529 = vrot.slane %v3336, %v3528
        %v3530 = vsel %vm1760, %v3529, %v3525
        %v3531 = vsel %vm1895, %v3416, %v3397
        %v3532 = vsel %vm1897, %v3435, %v3531
        %v3533 = vsel %vm1899, %v3454, %v3532
        %v3534 = vsel %vm1901, %v3473, %v3533
        %v3535 = vsel %vm1903, %v3492, %v3534
        %v3536 = vsel %vm1905, %v3511, %v3535
        %v3537 = vsel %vm1907, %v3530, %v3536
        %v3539 = vsel %vm1606, %v3338, 0
        %v3541 = vsel %vm1606, %v3340, 0
        %v3543 = vsel %vm1606, %v3342, 0
        %v3545 = vsel %vm1606, %v3344, 0
        %v3547 = vsel %vm1606, %v3346, 0
        %3549 = vmatprep.subr.mxu0 0.0
        %v3550 = vand.u32 %v3541, 4294901760
        %3551 = vmatpush1.xpose.msra.mxu0 %v3550
        %3552 = vmatprep.subr.mxu0 0.0
        %v3553 = vand.u32 %v3543, 4294901760
        %3554 = vmatpush1.xpose.msra.mxu0 %v3553
        %3555 = vmatprep.subr.mxu0 0.0
        %v3556 = vand.u32 %v3545, 4294901760
        %3557 = vmatpush1.xpose.msra.mxu0 %v3556
        %3558 = vmatprep.subr.mxu0 0.0
        %v3559 = vand.u32 %v3547, 4294901760
        %3560 = vmatpush1.xpose.msra.mxu0 %v3559
        %3561 = vmatprep.subr.mxu0 0.0
        %3562 = vmatpush1.xpose.msra.mxu0 0.0
        %3563 = vmatprep.subr.mxu0 0.0
        %3564 = vmatpush1.xpose.msra.mxu0 0.0
        %3565 = vmatprep.subr.mxu0 0.0
        %3566 = vmatpush1.xpose.msra.mxu0 0.0
        %3567 = vmatprep.subr.mxu0 0.0
        %3568 = vmatpush1.xpose.msra.mxu0 0.0
        %3569 = vmatprep.subr.mxu0 0.0
        %3570 = vmatpush1.xpose.msra.mxu0 0.0
        %3571 = vmatprep.subr.mxu0 0.0
        %3572 = vmatpush1.xpose.msra.mxu0 0.0
        %3573 = vmatprep.subr.mxu0 0.0
        %3574 = vmatpush1.xpose.msra.mxu0 0.0
        %3575 = vmatprep.subr.mxu0 0.0
        %3576 = vmatpush1.xpose.msra.mxu0 0.0
        %3577 = vmatprep.subr.mxu0 0.0
        %3578 = vmatpush1.xpose.msra.mxu0 0.0
        %3579 = vmatprep.subr.mxu0 0.0
        %3580 = vmatpush1.xpose.msra.mxu0 0.0
        %3581 = vmatprep.subr.mxu0 0.0
        %3582 = vmatpush1.xpose.msra.mxu0 0.0
        %3583 = vmatprep.subr.mxu0 0.0
        %3584 = vmatpush1.xpose.msra.mxu0 0.0
        %3585 = vmatprep.subr.mxu0 0.0
        %3586 = vmatpush1.xpose.msra.mxu0 0.0
        %3587 = vmatprep.subr.mxu0 0.0
        %3588 = vmatpush1.xpose.msra.mxu0 0.0
        %3589 = vmatprep.subr.mxu0 0.0
        %3590 = vmatpush1.xpose.msra.mxu0 0.0
        %3591 = vmatprep.subr.mxu0 0.0
        %3592 = vmatpush1.xpose.msra.mxu0 0.0
        %3593 = vmatprep.subr.mxu0 0.0
        %3594 = vmatpush1.xpose.msra.mxu0 0.0
        %3595 = vmatprep.subr.mxu0 0.0
        %3596 = vmatpush1.xpose.msra.mxu0 0.0
        %3597 = vmatprep.subr.mxu0 0.0
        %3598 = vmatpush1.xpose.msra.mxu0 0.0
        %3599 = vmatprep.subr.mxu0 0.0
        %3600 = vmatpush1.xpose.msra.mxu0 0.0
        %3601 = vmatprep.subr.mxu0 0.0
        %3602 = vmatpush1.xpose.msra.mxu0 0.0
        %3603 = vmatprep.subr.mxu0 0.0
        %3604 = vmatpush1.xpose.msra.mxu0 0.0
        %3605 = vmatprep.subr.mxu0 0.0
        %3606 = vmatpush1.xpose.msra.mxu0 0.0
        %3607 = vmatprep.subr.mxu0 0.0
        %3608 = vmatpush1.xpose.msra.mxu0 0.0
        %3609 = vmatprep.subr.mxu0 0.0
        %3610 = vmatpush1.xpose.msra.mxu0 0.0
        %3611 = vmatprep.subr.mxu0 0.0
        %3612 = vmatpush1.xpose.msra.mxu0 0.0
        %3613 = vmatprep.subr.mxu0 0.0
        %3614 = vmatpush1.xpose.msra.mxu0 0.0
        %3615 = vmatprep.subr.mxu0 0.0
        %3616 = vmatpush1.xpose.msra.mxu0 0.0
        %3617 = vmatprep.mubr.f32.mxu0 0.0
        %v3618 = vand.u32 %v3539, 4294901760
        %v3619 = vsub.f32 %v3539, %v3618
        %v3620 = vand.u32 %v3619, 4294901760
        %v3621 = vsub.f32 %v3619, %v3620
        %v3622 = vand.u32 %v3621, 4294901760
        %3623 = vmatmul.mubr.f32.gmra.mrb[0].mxu0 %v3622
        %v3624 = vpop.f32.mrb[0].mxu0
        %v3625 = vadd.f32 %v3537, %v3624
        %v3626 = vpop.f32.mrb[0].mxu0
        %3627 = vdwg.mxu0
        %3628 = vmatprep.subr.mxu0 0.0
        %v3629 = vand.u32 %v3541, 4294901760
        %v3630 = vsub.f32 %v3541, %v3629
        %v3631 = vand.u32 %v3630, 4294901760
        %v3632 = vsub.f32 %v3630, %v3631
        %v3633 = vand.u32 %v3632, 4294901760
        %3634 = vmatpush1.xpose.msra.mxu0 %v3633
        %3635 = vmatprep.subr.mxu0 0.0
        %v3636 = vand.u32 %v3543, 4294901760
        %v3637 = vsub.f32 %v3543, %v3636
        %v3638 = vand.u32 %v3637, 4294901760
        %v3639 = vsub.f32 %v3637, %v3638
        %v3640 = vand.u32 %v3639, 4294901760
        %3641 = vmatpush1.xpose.msra.mxu0 %v3640
        %3642 = vmatprep.subr.mxu0 0.0
        %v3643 = vand.u32 %v3545, 4294901760
        %v3644 = vsub.f32 %v3545, %v3643
        %v3645 = vand.u32 %v3644, 4294901760
        %v3646 = vsub.f32 %v3644, %v3645
        %v3647 = vand.u32 %v3646, 4294901760
        %3648 = vmatpush1.xpose.msra.mxu0 %v3647
        %3649 = vmatprep.subr.mxu0 0.0
        %v3650 = vand.u32 %v3547, 4294901760
        %v3651 = vsub.f32 %v3547, %v3650
        %v3652 = vand.u32 %v3651, 4294901760
        %v3653 = vsub.f32 %v3651, %v3652
        %v3654 = vand.u32 %v3653, 4294901760
        %3655 = vmatpush1.xpose.msra.mxu0 %v3654
        %3656 = vmatprep.subr.mxu0 0.0
        %3657 = vmatpush1.xpose.msra.mxu0 0.0
        %3658 = vmatprep.subr.mxu0 0.0
        %3659 = vmatpush1.xpose.msra.mxu0 0.0
        %3660 = vmatprep.subr.mxu0 0.0
        %3661 = vmatpush1.xpose.msra.mxu0 0.0
        %3662 = vmatprep.subr.mxu0 0.0
        %3663 = vmatpush1.xpose.msra.mxu0 0.0
        %3664 = vmatprep.subr.mxu0 0.0
        %3665 = vmatpush1.xpose.msra.mxu0 0.0
        %3666 = vmatprep.subr.mxu0 0.0
        %3667 = vmatpush1.xpose.msra.mxu0 0.0
        %3668 = vmatprep.subr.mxu0 0.0
        %3669 = vmatpush1.xpose.msra.mxu0 0.0
        %3670 = vmatprep.subr.mxu0 0.0
        %3671 = vmatpush1.xpose.msra.mxu0 0.0
        %3672 = vmatprep.subr.mxu0 0.0
        %3673 = vmatpush1.xpose.msra.mxu0 0.0
        %3674 = vmatprep.subr.mxu0 0.0
        %3675 = vmatpush1.xpose.msra.mxu0 0.0
        %3676 = vmatprep.subr.mxu0 0.0
        %3677 = vmatpush1.xpose.msra.mxu0 0.0
        %3678 = vmatprep.subr.mxu0 0.0
        %3679 = vmatpush1.xpose.msra.mxu0 0.0
        %3680 = vmatprep.subr.mxu0 0.0
        %3681 = vmatpush1.xpose.msra.mxu0 0.0
        %3682 = vmatprep.subr.mxu0 0.0
        %3683 = vmatpush1.xpose.msra.mxu0 0.0
        %3684 = vmatprep.subr.mxu0 0.0
        %3685 = vmatpush1.xpose.msra.mxu0 0.0
        %3686 = vmatprep.subr.mxu0 0.0
        %3687 = vmatpush1.xpose.msra.mxu0 0.0
        %3688 = vmatprep.subr.mxu0 0.0
        %3689 = vmatpush1.xpose.msra.mxu0 0.0
        %3690 = vmatprep.subr.mxu0 0.0
        %3691 = vmatpush1.xpose.msra.mxu0 0.0
        %3692 = vmatprep.subr.mxu0 0.0
        %3693 = vmatpush1.xpose.msra.mxu0 0.0
        %3694 = vmatprep.subr.mxu0 0.0
        %3695 = vmatpush1.xpose.msra.mxu0 0.0
        %3696 = vmatprep.subr.mxu0 0.0
        %3697 = vmatpush1.xpose.msra.mxu0 0.0
        %3698 = vmatprep.subr.mxu0 0.0
        %3699 = vmatpush1.xpose.msra.mxu0 0.0
        %3700 = vmatprep.subr.mxu0 0.0
        %3701 = vmatpush1.xpose.msra.mxu0 0.0
        %3702 = vmatprep.subr.mxu0 0.0
        %3703 = vmatpush1.xpose.msra.mxu0 0.0
        %3704 = vmatprep.subr.mxu0 0.0
        %3705 = vmatpush1.xpose.msra.mxu0 0.0
        %3706 = vmatprep.subr.mxu0 0.0
        %3707 = vmatpush1.xpose.msra.mxu0 0.0
        %3708 = vmatprep.subr.mxu0 0.0
        %3709 = vmatpush1.xpose.msra.mxu0 0.0
        %3710 = vmatprep.subr.mxu0 0.0
        %3711 = vmatpush1.xpose.msra.mxu0 0.0
        %3712 = vmatprep.mubr.f32.mxu0 0.0
        %v3713 = vand.u32 %v3539, 4294901760
        %3714 = vmatmul.mubr.f32.gmra.mrb[0].mxu0 %v3713
        %v3715 = vpop.f32.mrb[0].mxu0
        %v3716 = vadd.f32 %v3625, %v3715
        %v3717 = vpop.f32.mrb[0].mxu0
        %3718 = vdwg.mxu0
        %3719 = vmatprep.subr.mxu0 0.0
        %v3720 = vand.u32 %v3541, 4294901760
        %v3721 = vsub.f32 %v3541, %v3720
        %3722 = vmatpush1.xpose.msra.mxu0 %v3721
        %3723 = vmatprep.subr.mxu0 0.0
        %v3724 = vand.u32 %v3543, 4294901760
        %v3725 = vsub.f32 %v3543, %v3724
        %3726 = vmatpush1.xpose.msra.mxu0 %v3725
        %3727 = vmatprep.subr.mxu0 0.0
        %v3728 = vand.u32 %v3545, 4294901760
        %v3729 = vsub.f32 %v3545, %v3728
        %3730 = vmatpush1.xpose.msra.mxu0 %v3729
        %3731 = vmatprep.subr.mxu0 0.0
        %v3732 = vand.u32 %v3547, 4294901760
        %v3733 = vsub.f32 %v3547, %v3732
        %3734 = vmatpush1.xpose.msra.mxu0 %v3733
        %3735 = vmatprep.subr.mxu0 0.0
        %3736 = vmatpush1.xpose.msra.mxu0 0.0
        %3737 = vmatprep.subr.mxu0 0.0
        %3738 = vmatpush1.xpose.msra.mxu0 0.0
        %3739 = vmatprep.subr.mxu0 0.0
        %3740 = vmatpush1.xpose.msra.mxu0 0.0
        %3741 = vmatprep.subr.mxu0 0.0
        %3742 = vmatpush1.xpose.msra.mxu0 0.0
        %3743 = vmatprep.subr.mxu0 0.0
        %3744 = vmatpush1.xpose.msra.mxu0 0.0
        %3745 = vmatprep.subr.mxu0 0.0
        %3746 = vmatpush1.xpose.msra.mxu0 0.0
        %3747 = vmatprep.subr.mxu0 0.0
        %3748 = vmatpush1.xpose.msra.mxu0 0.0
        %3749 = vmatprep.subr.mxu0 0.0
        %3750 = vmatpush1.xpose.msra.mxu0 0.0
        %3751 = vmatprep.subr.mxu0 0.0
        %3752 = vmatpush1.xpose.msra.mxu0 0.0
        %3753 = vmatprep.subr.mxu0 0.0
        %3754 = vmatpush1.xpose.msra.mxu0 0.0
        %3755 = vmatprep.subr.mxu0 0.0
        %3756 = vmatpush1.xpose.msra.mxu0 0.0
        %3757 = vmatprep.subr.mxu0 0.0
        %3758 = vmatpush1.xpose.msra.mxu0 0.0
        %3759 = vmatprep.subr.mxu0 0.0
        %3760 = vmatpush1.xpose.msra.mxu0 0.0
        %3761 = vmatprep.subr.mxu0 0.0
        %3762 = vmatpush1.xpose.msra.mxu0 0.0
        %3763 = vmatprep.subr.mxu0 0.0
        %3764 = vmatpush1.xpose.msra.mxu0 0.0
        %3765 = vmatprep.subr.mxu0 0.0
        %3766 = vmatpush1.xpose.msra.mxu0 0.0
        %3767 = vmatprep.subr.mxu0 0.0
        %3768 = vmatpush1.xpose.msra.mxu0 0.0
        %3769 = vmatprep.subr.mxu0 0.0
        %3770 = vmatpush1.xpose.msra.mxu0 0.0
        %3771 = vmatprep.subr.mxu0 0.0
        %3772 = vmatpush1.xpose.msra.mxu0 0.0
        %3773 = vmatprep.subr.mxu0 0.0
        %3774 = vmatpush1.xpose.msra.mxu0 0.0
        %3775 = vmatprep.subr.mxu0 0.0
        %3776 = vmatpush1.xpose.msra.mxu0 0.0
        %3777 = vmatprep.subr.mxu0 0.0
        %3778 = vmatpush1.xpose.msra.mxu0 0.0
        %3779 = vmatprep.subr.mxu0 0.0
        %3780 = vmatpush1.xpose.msra.mxu0 0.0
        %3781 = vmatprep.subr.mxu0 0.0
        %3782 = vmatpush1.xpose.msra.mxu0 0.0
        %3783 = vmatprep.subr.mxu0 0.0
        %3784 = vmatpush1.xpose.msra.mxu0 0.0
        %3785 = vmatprep.subr.mxu0 0.0
        %3786 = vmatpush1.xpose.msra.mxu0 0.0
        %3787 = vmatprep.subr.mxu0 0.0
        %3788 = vmatpush1.xpose.msra.mxu0 0.0
        %3789 = vmatprep.subr.mxu0 0.0
        %3790 = vmatpush1.xpose.msra.mxu0 0.0
        %3791 = vmatprep.mubr.f32.mxu0 0.0
        %v3792 = vand.u32 %v3539, 4294901760
        %v3793 = vsub.f32 %v3539, %v3792
        %3794 = vmatmul.mubr.f32.gmra.mrb[0].mxu0 %v3793
        %v3795 = vpop.f32.mrb[0].mxu0
        %v3796 = vadd.f32 %v3716, %v3795
        %v3797 = vpop.f32.mrb[0].mxu0
        %3798 = vdwg.mxu0
        %3799 = vmatprep.subr.mxu0 0.0
        %v3800 = vand.u32 %v3541, 4294901760
        %3801 = vmatpush1.xpose.msra.mxu0 %v3800
        %3802 = vmatprep.subr.mxu0 0.0
        %v3803 = vand.u32 %v3543, 4294901760
        %3804 = vmatpush1.xpose.msra.mxu0 %v3803
        %3805 = vmatprep.subr.mxu0 0.0
        %v3806 = vand.u32 %v3545, 4294901760
        %3807 = vmatpush1.xpose.msra.mxu0 %v3806
        %3808 = vmatprep.subr.mxu0 0.0
        %v3809 = vand.u32 %v3547, 4294901760
        %3810 = vmatpush1.xpose.msra.mxu0 %v3809
        %3811 = vmatprep.subr.mxu0 0.0
        %3812 = vmatpush1.xpose.msra.mxu0 0.0
        %3813 = vmatprep.subr.mxu0 0.0
        %3814 = vmatpush1.xpose.msra.mxu0 0.0
        %3815 = vmatprep.subr.mxu0 0.0
        %3816 = vmatpush1.xpose.msra.mxu0 0.0
        %3817 = vmatprep.subr.mxu0 0.0
        %3818 = vmatpush1.xpose.msra.mxu0 0.0
        %3819 = vmatprep.subr.mxu0 0.0
        %3820 = vmatpush1.xpose.msra.mxu0 0.0
        %3821 = vmatprep.subr.mxu0 0.0
        %3822 = vmatpush1.xpose.msra.mxu0 0.0
        %3823 = vmatprep.subr.mxu0 0.0
        %3824 = vmatpush1.xpose.msra.mxu0 0.0
        %3825 = vmatprep.subr.mxu0 0.0
        %3826 = vmatpush1.xpose.msra.mxu0 0.0
        %3827 = vmatprep.subr.mxu0 0.0
        %3828 = vmatpush1.xpose.msra.mxu0 0.0
        %3829 = vmatprep.subr.mxu0 0.0
        %3830 = vmatpush1.xpose.msra.mxu0 0.0
        %3831 = vmatprep.subr.mxu0 0.0
        %3832 = vmatpush1.xpose.msra.mxu0 0.0
        %3833 = vmatprep.subr.mxu0 0.0
        %3834 = vmatpush1.xpose.msra.mxu0 0.0
        %3835 = vmatprep.subr.mxu0 0.0
        %3836 = vmatpush1.xpose.msra.mxu0 0.0
        %3837 = vmatprep.subr.mxu0 0.0
        %3838 = vmatpush1.xpose.msra.mxu0 0.0
        %3839 = vmatprep.subr.mxu0 0.0
        %3840 = vmatpush1.xpose.msra.mxu0 0.0
        %3841 = vmatprep.subr.mxu0 0.0
        %3842 = vmatpush1.xpose.msra.mxu0 0.0
        %3843 = vmatprep.subr.mxu0 0.0
        %3844 = vmatpush1.xpose.msra.mxu0 0.0
        %3845 = vmatprep.subr.mxu0 0.0
        %3846 = vmatpush1.xpose.msra.mxu0 0.0
        %3847 = vmatprep.subr.mxu0 0.0
        %3848 = vmatpush1.xpose.msra.mxu0 0.0
        %3849 = vmatprep.subr.mxu0 0.0
        %3850 = vmatpush1.xpose.msra.mxu0 0.0
        %3851 = vmatprep.subr.mxu0 0.0
        %3852 = vmatpush1.xpose.msra.mxu0 0.0
        %3853 = vmatprep.subr.mxu0 0.0
        %3854 = vmatpush1.xpose.msra.mxu0 0.0
        %3855 = vmatprep.subr.mxu0 0.0
        %3856 = vmatpush1.xpose.msra.mxu0 0.0
        %3857 = vmatprep.subr.mxu0 0.0
        %3858 = vmatpush1.xpose.msra.mxu0 0.0
        %3859 = vmatprep.subr.mxu0 0.0
        %3860 = vmatpush1.xpose.msra.mxu0 0.0
        %3861 = vmatprep.subr.mxu0 0.0
        %3862 = vmatpush1.xpose.msra.mxu0 0.0
        %3863 = vmatprep.subr.mxu0 0.0
        %3864 = vmatpush1.xpose.msra.mxu0 0.0
        %3865 = vmatprep.subr.mxu0 0.0
        %3866 = vmatpush1.xpose.msra.mxu0 0.0
        %3867 = vmatprep.mubr.f32.mxu0 0.0
        %v3868 = vand.u32 %v3539, 4294901760
        %v3869 = vsub.f32 %v3539, %v3868
        %v3870 = vand.u32 %v3869, 4294901760
        %3871 = vmatmul.mubr.f32.gmra.mrb[0].mxu0 %v3870
        %v3872 = vpop.f32.mrb[0].mxu0
        %v3873 = vadd.f32 %v3796, %v3872
        %v3874 = vpop.f32.mrb[0].mxu0
        %3875 = vdwg.mxu0
        %3876 = vmatprep.subr.mxu0 0.0
        %v3877 = vand.u32 %v3541, 4294901760
        %v3878 = vsub.f32 %v3541, %v3877
        %v3879 = vand.u32 %v3878, 4294901760
        %3880 = vmatpush1.xpose.msra.mxu0 %v3879
        %3881 = vmatprep.subr.mxu0 0.0
        %v3882 = vand.u32 %v3543, 4294901760
        %v3883 = vsub.f32 %v3543, %v3882
        %v3884 = vand.u32 %v3883, 4294901760
        %3885 = vmatpush1.xpose.msra.mxu0 %v3884
        %3886 = vmatprep.subr.mxu0 0.0
        %v3887 = vand.u32 %v3545, 4294901760
        %v3888 = vsub.f32 %v3545, %v3887
        %v3889 = vand.u32 %v3888, 4294901760
        %3890 = vmatpush1.xpose.msra.mxu0 %v3889
        %3891 = vmatprep.subr.mxu0 0.0
        %v3892 = vand.u32 %v3547, 4294901760
        %v3893 = vsub.f32 %v3547, %v3892
        %v3894 = vand.u32 %v3893, 4294901760
        %3895 = vmatpush1.xpose.msra.mxu0 %v3894
        %3896 = vmatprep.subr.mxu0 0.0
        %3897 = vmatpush1.xpose.msra.mxu0 0.0
        %3898 = vmatprep.subr.mxu0 0.0
        %3899 = vmatpush1.xpose.msra.mxu0 0.0
        %3900 = vmatprep.subr.mxu0 0.0
        %3901 = vmatpush1.xpose.msra.mxu0 0.0
        %3902 = vmatprep.subr.mxu0 0.0
        %3903 = vmatpush1.xpose.msra.mxu0 0.0
        %3904 = vmatprep.subr.mxu0 0.0
        %3905 = vmatpush1.xpose.msra.mxu0 0.0
        %3906 = vmatprep.subr.mxu0 0.0
        %3907 = vmatpush1.xpose.msra.mxu0 0.0
        %3908 = vmatprep.subr.mxu0 0.0
        %3909 = vmatpush1.xpose.msra.mxu0 0.0
        %3910 = vmatprep.subr.mxu0 0.0
        %3911 = vmatpush1.xpose.msra.mxu0 0.0
        %3912 = vmatprep.subr.mxu0 0.0
        %3913 = vmatpush1.xpose.msra.mxu0 0.0
        %3914 = vmatprep.subr.mxu0 0.0
        %3915 = vmatpush1.xpose.msra.mxu0 0.0
        %3916 = vmatprep.subr.mxu0 0.0
        %3917 = vmatpush1.xpose.msra.mxu0 0.0
        %3918 = vmatprep.subr.mxu0 0.0
        %3919 = vmatpush1.xpose.msra.mxu0 0.0
        %3920 = vmatprep.subr.mxu0 0.0
        %3921 = vmatpush1.xpose.msra.mxu0 0.0
        %3922 = vmatprep.subr.mxu0 0.0
        %3923 = vmatpush1.xpose.msra.mxu0 0.0
        %3924 = vmatprep.subr.mxu0 0.0
        %3925 = vmatpush1.xpose.msra.mxu0 0.0
        %3926 = vmatprep.subr.mxu0 0.0
        %3927 = vmatpush1.xpose.msra.mxu0 0.0
        %3928 = vmatprep.subr.mxu0 0.0
        %3929 = vmatpush1.xpose.msra.mxu0 0.0
        %3930 = vmatprep.subr.mxu0 0.0
        %3931 = vmatpush1.xpose.msra.mxu0 0.0
        %3932 = vmatprep.subr.mxu0 0.0
        %3933 = vmatpush1.xpose.msra.mxu0 0.0
        %3934 = vmatprep.subr.mxu0 0.0
        %3935 = vmatpush1.xpose.msra.mxu0 0.0
        %3936 = vmatprep.subr.mxu0 0.0
        %3937 = vmatpush1.xpose.msra.mxu0 0.0
        %3938 = vmatprep.subr.mxu0 0.0
        %3939 = vmatpush1.xpose.msra.mxu0 0.0
        %3940 = vmatprep.subr.mxu0 0.0
        %3941 = vmatpush1.xpose.msra.mxu0 0.0
        %3942 = vmatprep.subr.mxu0 0.0
        %3943 = vmatpush1.xpose.msra.mxu0 0.0
        %3944 = vmatprep.subr.mxu0 0.0
        %3945 = vmatpush1.xpose.msra.mxu0 0.0
        %3946 = vmatprep.subr.mxu0 0.0
        %3947 = vmatpush1.xpose.msra.mxu0 0.0
        %3948 = vmatprep.subr.mxu0 0.0
        %3949 = vmatpush1.xpose.msra.mxu0 0.0
        %3950 = vmatprep.subr.mxu0 0.0
        %3951 = vmatpush1.xpose.msra.mxu0 0.0
        %3952 = vmatprep.mubr.f32.mxu0 0.0
        %v3953 = vand.u32 %v3539, 4294901760
        %3954 = vmatmul.mubr.f32.gmra.mrb[0].mxu0 %v3953
        %v3955 = vpop.f32.mrb[0].mxu0
        %v3956 = vadd.f32 %v3873, %v3955
        %v3957 = vpop.f32.mrb[0].mxu0
        %3958 = vdwg.mxu0
        %3959 = vmatprep.subr.mxu0 0.0
        %v3960 = vand.u32 %v3541, 4294901760
        %3961 = vmatpush1.xpose.msra.mxu0 %v3960
        %3962 = vmatprep.subr.mxu0 0.0
        %v3963 = vand.u32 %v3543, 4294901760
        %3964 = vmatpush1.xpose.msra.mxu0 %v3963
        %3965 = vmatprep.subr.mxu0 0.0
        %v3966 = vand.u32 %v3545, 4294901760
        %3967 = vmatpush1.xpose.msra.mxu0 %v3966
        %3968 = vmatprep.subr.mxu0 0.0
        %v3969 = vand.u32 %v3547, 4294901760
        %3970 = vmatpush1.xpose.msra.mxu0 %v3969
        %3971 = vmatprep.subr.mxu0 0.0
        %3972 = vmatpush1.xpose.msra.mxu0 0.0
        %3973 = vmatprep.subr.mxu0 0.0
        %3974 = vmatpush1.xpose.msra.mxu0 0.0
        %3975 = vmatprep.subr.mxu0 0.0
        %3976 = vmatpush1.xpose.msra.mxu0 0.0
        %3977 = vmatprep.subr.mxu0 0.0
        %3978 = vmatpush1.xpose.msra.mxu0 0.0
        %3979 = vmatprep.subr.mxu0 0.0
        %3980 = vmatpush1.xpose.msra.mxu0 0.0
        %3981 = vmatprep.subr.mxu0 0.0
        %3982 = vmatpush1.xpose.msra.mxu0 0.0
        %3983 = vmatprep.subr.mxu0 0.0
        %3984 = vmatpush1.xpose.msra.mxu0 0.0
        %3985 = vmatprep.subr.mxu0 0.0
        %3986 = vmatpush1.xpose.msra.mxu0 0.0
        %3987 = vmatprep.subr.mxu0 0.0
        %3988 = vmatpush1.xpose.msra.mxu0 0.0
        %3989 = vmatprep.subr.mxu0 0.0
        %3990 = vmatpush1.xpose.msra.mxu0 0.0
        %3991 = vmatprep.subr.mxu0 0.0
        %3992 = vmatpush1.xpose.msra.mxu0 0.0
        %3993 = vmatprep.subr.mxu0 0.0
        %3994 = vmatpush1.xpose.msra.mxu0 0.0
        %3995 = vmatprep.subr.mxu0 0.0
        %3996 = vmatpush1.xpose.msra.mxu0 0.0
        %3997 = vmatprep.subr.mxu0 0.0
        %3998 = vmatpush1.xpose.msra.mxu0 0.0
        %3999 = vmatprep.subr.mxu0 0.0
        %4000 = vmatpush1.xpose.msra.mxu0 0.0
        %4001 = vmatprep.subr.mxu0 0.0
        %4002 = vmatpush1.xpose.msra.mxu0 0.0
        %4003 = vmatprep.subr.mxu0 0.0
        %4004 = vmatpush1.xpose.msra.mxu0 0.0
        %4005 = vmatprep.subr.mxu0 0.0
        %4006 = vmatpush1.xpose.msra.mxu0 0.0
        %4007 = vmatprep.subr.mxu0 0.0
        %4008 = vmatpush1.xpose.msra.mxu0 0.0
        %4009 = vmatprep.subr.mxu0 0.0
        %4010 = vmatpush1.xpose.msra.mxu0 0.0
        %4011 = vmatprep.subr.mxu0 0.0
        %4012 = vmatpush1.xpose.msra.mxu0 0.0
        %4013 = vmatprep.subr.mxu0 0.0
        %4014 = vmatpush1.xpose.msra.mxu0 0.0
        %4015 = vmatprep.subr.mxu0 0.0
        %4016 = vmatpush1.xpose.msra.mxu0 0.0
        %4017 = vmatprep.subr.mxu0 0.0
        %4018 = vmatpush1.xpose.msra.mxu0 0.0
        %4019 = vmatprep.subr.mxu0 0.0
        %4020 = vmatpush1.xpose.msra.mxu0 0.0
        %4021 = vmatprep.subr.mxu0 0.0
        %4022 = vmatpush1.xpose.msra.mxu0 0.0
        %4023 = vmatprep.subr.mxu0 0.0
        %4024 = vmatpush1.xpose.msra.mxu0 0.0
        %4025 = vmatprep.subr.mxu0 0.0
        %4026 = vmatpush1.xpose.msra.mxu0 0.0
        %4027 = vmatprep.mubr.f32.mxu0 0.0
        %v4028 = vand.u32 %v3539, 4294901760
        %4029 = vmatmul.mubr.f32.gmra.mrb[0].mxu0 %v4028
        %v4030 = vpop.f32.mrb[0].mxu0
        %v4031 = vadd.f32 %v3956, %v4030
        %v4032 = vpop.f32.mrb[0].mxu0
        %4033 = vdwg.mxu0
        %v4034 = vsel %vm272, %v4031, -inf
        %4035 = vmax.xlane.f32.xlu0 %v4034
        %v4036 = vpop.xlane.xlu0 %4035
        %v4037 = vsub.f32 %v4031, %v4036
        %v4038 = vmul.f32 %v4037, 1.442695
        %v4039 = vpow.pop %v4038
        %v4040 = vsel %vm272, %v4039, 0.0
        %4041 = vadd.xlane.f32.xlu0 %v4040
        %v4042 = vpop.xlane.xlu0 %4041
        %4043 = vrot.lane.b32.xlu0 %v1431, 80
        %v4044 = vpop.permute.xlu0 %4043
        %4045 = vrot.lane.b32.xlu0 %v1437, 80
        %v4046 = vpop.permute.xlu0 %4045
        %4047 = vrot.lane.b32.xlu0 %v1443, 80
        %v4048 = vpop.permute.xlu0 %4047
        %4049 = vrot.lane.b32.xlu0 %v1449, 80
        %v4050 = vpop.permute.xlu0 %4049
        %v4056 = vsel %vm272, %v4039, 0
        %4058 = vmatprep.subr.mxu0 0.0
        %v4059 = vand.u32 %v4044, 4294901760
        %4060 = vmatpush1.msra.mxu0 %v4059
        %4061 = vmatprep.subr.mxu0 0.0
        %v4062 = vand.u32 %v4046, 4294901760
        %4063 = vmatpush1.msra.mxu0 %v4062
        %4064 = vmatprep.subr.mxu0 0.0
        %v4065 = vand.u32 %v4048, 4294901760
        %4066 = vmatpush1.msra.mxu0 %v4065
        %4067 = vmatprep.subr.mxu0 0.0
        %v4068 = vand.u32 %v4050, 4294901760
        %4069 = vmatpush1.msra.mxu0 %v4068
        %4070 = vmatprep.subr.mxu0 0.0
        %4071 = vmatpush1.msra.mxu0 0.0
        %4072 = vmatprep.subr.mxu0 0.0
        %4073 = vmatpush1.msra.mxu0 0.0
        %4074 = vmatprep.subr.mxu0 0.0
        %4075 = vmatpush1.msra.mxu0 0.0
        %4076 = vmatprep.subr.mxu0 0.0
        %4077 = vmatpush1.msra.mxu0 0.0
        %4078 = vmatprep.subr.mxu0 0.0
        %4079 = vmatpush1.msra.mxu0 0.0
        %4080 = vmatprep.subr.mxu0 0.0
        %4081 = vmatpush1.msra.mxu0 0.0
        %4082 = vmatprep.subr.mxu0 0.0
        %4083 = vmatpush1.msra.mxu0 0.0
        %4084 = vmatprep.subr.mxu0 0.0
        %4085 = vmatpush1.msra.mxu0 0.0
        %4086 = vmatprep.subr.mxu0 0.0
        %4087 = vmatpush1.msra.mxu0 0.0
        %4088 = vmatprep.subr.mxu0 0.0
        %4089 = vmatpush1.msra.mxu0 0.0
        %4090 = vmatprep.subr.mxu0 0.0
        %4091 = vmatpush1.msra.mxu0 0.0
        %4092 = vmatprep.subr.mxu0 0.0
        %4093 = vmatpush1.msra.mxu0 0.0
        %4094 = vmatprep.subr.mxu0 0.0
        %4095 = vmatpush1.msra.mxu0 0.0
        %4096 = vmatprep.subr.mxu0 0.0
        %4097 = vmatpush1.msra.mxu0 0.0
        %4098 = vmatprep.subr.mxu0 0.0
        %4099 = vmatpush1.msra.mxu0 0.0
        %4100 = vmatprep.subr.mxu0 0.0
        %4101 = vmatpush1.msra.mxu0 0.0
        %4102 = vmatprep.subr.mxu0 0.0
        %4103 = vmatpush1.msra.mxu0 0.0
        %4104 = vmatprep.subr.mxu0 0.0
        %4105 = vmatpush1.msra.mxu0 0.0
        %4106 = vmatprep.subr.mxu0 0.0
        %4107 = vmatpush1.msra.mxu0 0.0
        %4108 = vmatprep.subr.mxu0 0.0
        %4109 = vmatpush1.msra.mxu0 0.0
        %4110 = vmatprep.subr.mxu0 0.0
        %4111 = vmatpush1.msra.mxu0 0.0
        %4112 = vmatprep.subr.mxu0 0.0
        %4113 = vmatpush1.msra.mxu0 0.0
        %4114 = vmatprep.subr.mxu0 0.0
        %4115 = vmatpush1.msra.mxu0 0.0
        %4116 = vmatprep.subr.mxu0 0.0
        %4117 = vmatpush1.msra.mxu0 0.0
        %4118 = vmatprep.subr.mxu0 0.0
        %4119 = vmatpush1.msra.mxu0 0.0
        %4120 = vmatprep.subr.mxu0 0.0
        %4121 = vmatpush1.msra.mxu0 0.0
        %4122 = vmatprep.subr.mxu0 0.0
        %4123 = vmatpush1.msra.mxu0 0.0
        %4124 = vmatprep.subr.mxu0 0.0
        %4125 = vmatpush1.msra.mxu0 0.0
        %4126 = vmatprep.mubr.f32.mxu0 0.0
        %v4127 = vand.u32 %v4056, 4294901760
        %v4128 = vsub.f32 %v4056, %v4127
        %v4129 = vand.u32 %v4128, 4294901760
        %v4130 = vsub.f32 %v4128, %v4129
        %v4131 = vand.u32 %v4130, 4294901760
        %4132 = vmatmul.mubr.f32.gmra.mrb[0].mxu0 %v4131
        %v4133 = vpop.f32.mrb[0].mxu0
        %v4134 = vadd.f32 0.0, %v4133
        %v4135 = vpop.f32.mrb[0].mxu0
        %4136 = vdwg.mxu0
        %4137 = vmatprep.subr.mxu0 0.0
        %v4138 = vand.u32 %v4044, 4294901760
        %v4139 = vsub.f32 %v4044, %v4138
        %v4140 = vand.u32 %v4139, 4294901760
        %v4141 = vsub.f32 %v4139, %v4140
        %v4142 = vand.u32 %v4141, 4294901760
        %4143 = vmatpush1.msra.mxu0 %v4142
        %4144 = vmatprep.subr.mxu0 0.0
        %v4145 = vand.u32 %v4046, 4294901760
        %v4146 = vsub.f32 %v4046, %v4145
        %v4147 = vand.u32 %v4146, 4294901760
        %v4148 = vsub.f32 %v4146, %v4147
        %v4149 = vand.u32 %v4148, 4294901760
        %4150 = vmatpush1.msra.mxu0 %v4149
        %4151 = vmatprep.subr.mxu0 0.0
        %v4152 = vand.u32 %v4048, 4294901760
        %v4153 = vsub.f32 %v4048, %v4152
        %v4154 = vand.u32 %v4153, 4294901760
        %v4155 = vsub.f32 %v4153, %v4154
        %v4156 = vand.u32 %v4155, 4294901760
        %4157 = vmatpush1.msra.mxu0 %v4156
        %4158 = vmatprep.subr.mxu0 0.0
        %v4159 = vand.u32 %v4050, 4294901760
        %v4160 = vsub.f32 %v4050, %v4159
        %v4161 = vand.u32 %v4160, 4294901760
        %v4162 = vsub.f32 %v4160, %v4161
        %v4163 = vand.u32 %v4162, 4294901760
        %4164 = vmatpush1.msra.mxu0 %v4163
        %4165 = vmatprep.subr.mxu0 0.0
        %4166 = vmatpush1.msra.mxu0 0.0
        %4167 = vmatprep.subr.mxu0 0.0
        %4168 = vmatpush1.msra.mxu0 0.0
        %4169 = vmatprep.subr.mxu0 0.0
        %4170 = vmatpush1.msra.mxu0 0.0
        %4171 = vmatprep.subr.mxu0 0.0
        %4172 = vmatpush1.msra.mxu0 0.0
        %4173 = vmatprep.subr.mxu0 0.0
        %4174 = vmatpush1.msra.mxu0 0.0
        %4175 = vmatprep.subr.mxu0 0.0
        %4176 = vmatpush1.msra.mxu0 0.0
        %4177 = vmatprep.subr.mxu0 0.0
        %4178 = vmatpush1.msra.mxu0 0.0
        %4179 = vmatprep.subr.mxu0 0.0
        %4180 = vmatpush1.msra.mxu0 0.0
        %4181 = vmatprep.subr.mxu0 0.0
        %4182 = vmatpush1.msra.mxu0 0.0
        %4183 = vmatprep.subr.mxu0 0.0
        %4184 = vmatpush1.msra.mxu0 0.0
        %4185 = vmatprep.subr.mxu0 0.0
        %4186 = vmatpush1.msra.mxu0 0.0
        %4187 = vmatprep.subr.mxu0 0.0
        %4188 = vmatpush1.msra.mxu0 0.0
        %4189 = vmatprep.subr.mxu0 0.0
        %4190 = vmatpush1.msra.mxu0 0.0
        %4191 = vmatprep.subr.mxu0 0.0
        %4192 = vmatpush1.msra.mxu0 0.0
        %4193 = vmatprep.subr.mxu0 0.0
        %4194 = vmatpush1.msra.mxu0 0.0
        %4195 = vmatprep.subr.mxu0 0.0
        %4196 = vmatpush1.msra.mxu0 0.0
        %4197 = vmatprep.subr.mxu0 0.0
        %4198 = vmatpush1.msra.mxu0 0.0
        %4199 = vmatprep.subr.mxu0 0.0
        %4200 = vmatpush1.msra.mxu0 0.0
        %4201 = vmatprep.subr.mxu0 0.0
        %4202 = vmatpush1.msra.mxu0 0.0
        %4203 = vmatprep.subr.mxu0 0.0
        %4204 = vmatpush1.msra.mxu0 0.0
        %4205 = vmatprep.subr.mxu0 0.0
        %4206 = vmatpush1.msra.mxu0 0.0
        %4207 = vmatprep.subr.mxu0 0.0
        %4208 = vmatpush1.msra.mxu0 0.0
        %4209 = vmatprep.subr.mxu0 0.0
        %4210 = vmatpush1.msra.mxu0 0.0
        %4211 = vmatprep.subr.mxu0 0.0
        %4212 = vmatpush1.msra.mxu0 0.0
        %4213 = vmatprep.subr.mxu0 0.0
        %4214 = vmatpush1.msra.mxu0 0.0
        %4215 = vmatprep.subr.mxu0 0.0
        %4216 = vmatpush1.msra.mxu0 0.0
        %4217 = vmatprep.subr.mxu0 0.0
        %4218 = vmatpush1.msra.mxu0 0.0
        %4219 = vmatprep.subr.mxu0 0.0
        %4220 = vmatpush1.msra.mxu0 0.0
        %4221 = vmatprep.mubr.f32.mxu0 0.0
        %v4222 = vand.u32 %v4056, 4294901760
        %4223 = vmatmul.mubr.f32.gmra.mrb[0].mxu0 %v4222
        %v4224 = vpop.f32.mrb[0].mxu0
        %v4225 = vadd.f32 %v4134, %v4224
        %v4226 = vpop.f32.mrb[0].mxu0
        %4227 = vdwg.mxu0
        %4228 = vmatprep.subr.mxu0 0.0
        %v4229 = vand.u32 %v4044, 4294901760
        %v4230 = vsub.f32 %v4044, %v4229
        %4231 = vmatpush1.msra.mxu0 %v4230
        %4232 = vmatprep.subr.mxu0 0.0
        %v4233 = vand.u32 %v4046, 4294901760
        %v4234 = vsub.f32 %v4046, %v4233
        %4235 = vmatpush1.msra.mxu0 %v4234
        %4236 = vmatprep.subr.mxu0 0.0
        %v4237 = vand.u32 %v4048, 4294901760
        %v4238 = vsub.f32 %v4048, %v4237
        %4239 = vmatpush1.msra.mxu0 %v4238
        %4240 = vmatprep.subr.mxu0 0.0
        %v4241 = vand.u32 %v4050, 4294901760
        %v4242 = vsub.f32 %v4050, %v4241
        %4243 = vmatpush1.msra.mxu0 %v4242
        %4244 = vmatprep.subr.mxu0 0.0
        %4245 = vmatpush1.msra.mxu0 0.0
        %4246 = vmatprep.subr.mxu0 0.0
        %4247 = vmatpush1.msra.mxu0 0.0
        %4248 = vmatprep.subr.mxu0 0.0
        %4249 = vmatpush1.msra.mxu0 0.0
        %4250 = vmatprep.subr.mxu0 0.0
        %4251 = vmatpush1.msra.mxu0 0.0
        %4252 = vmatprep.subr.mxu0 0.0
        %4253 = vmatpush1.msra.mxu0 0.0
        %4254 = vmatprep.subr.mxu0 0.0
        %4255 = vmatpush1.msra.mxu0 0.0
        %4256 = vmatprep.subr.mxu0 0.0
        %4257 = vmatpush1.msra.mxu0 0.0
        %4258 = vmatprep.subr.mxu0 0.0
        %4259 = vmatpush1.msra.mxu0 0.0
        %4260 = vmatprep.subr.mxu0 0.0
        %4261 = vmatpush1.msra.mxu0 0.0
        %4262 = vmatprep.subr.mxu0 0.0
        %4263 = vmatpush1.msra.mxu0 0.0
        %4264 = vmatprep.subr.mxu0 0.0
        %4265 = vmatpush1.msra.mxu0 0.0
        %4266 = vmatprep.subr.mxu0 0.0
        %4267 = vmatpush1.msra.mxu0 0.0
        %4268 = vmatprep.subr.mxu0 0.0
        %4269 = vmatpush1.msra.mxu0 0.0
        %4270 = vmatprep.subr.mxu0 0.0
        %4271 = vmatpush1.msra.mxu0 0.0
        %4272 = vmatprep.subr.mxu0 0.0
        %4273 = vmatpush1.msra.mxu0 0.0
        %4274 = vmatprep.subr.mxu0 0.0
        %4275 = vmatpush1.msra.mxu0 0.0
        %4276 = vmatprep.subr.mxu0 0.0
        %4277 = vmatpush1.msra.mxu0 0.0
        %4278 = vmatprep.subr.mxu0 0.0
        %4279 = vmatpush1.msra.mxu0 0.0
        %4280 = vmatprep.subr.mxu0 0.0
        %4281 = vmatpush1.msra.mxu0 0.0
        %4282 = vmatprep.subr.mxu0 0.0
        %4283 = vmatpush1.msra.mxu0 0.0
        %4284 = vmatprep.subr.mxu0 0.0
        %4285 = vmatpush1.msra.mxu0 0.0
        %4286 = vmatprep.subr.mxu0 0.0
        %4287 = vmatpush1.msra.mxu0 0.0
        %4288 = vmatprep.subr.mxu0 0.0
        %4289 = vmatpush1.msra.mxu0 0.0
        %4290 = vmatprep.subr.mxu0 0.0
        %4291 = vmatpush1.msra.mxu0 0.0
        %4292 = vmatprep.subr.mxu0 0.0
        %4293 = vmatpush1.msra.mxu0 0.0
        %4294 = vmatprep.subr.mxu0 0.0
        %4295 = vmatpush1.msra.mxu0 0.0
        %4296 = vmatprep.subr.mxu0 0.0
        %4297 = vmatpush1.msra.mxu0 0.0
        %4298 = vmatprep.subr.mxu0 0.0
        %4299 = vmatpush1.msra.mxu0 0.0
        %4300 = vmatprep.mubr.f32.mxu0 0.0
        %v4301 = vand.u32 %v4056, 4294901760
        %v4302 = vsub.f32 %v4056, %v4301
        %4303 = vmatmul.mubr.f32.gmra.mrb[0].mxu0 %v4302
        %v4304 = vpop.f32.mrb[0].mxu0
        %v4305 = vadd.f32 %v4225, %v4304
        %v4306 = vpop.f32.mrb[0].mxu0
        %4307 = vdwg.mxu0
        %4308 = vmatprep.subr.mxu0 0.0
        %v4309 = vand.u32 %v4044, 4294901760
        %4310 = vmatpush1.msra.mxu0 %v4309
        %4311 = vmatprep.subr.mxu0 0.0
        %v4312 = vand.u32 %v4046, 4294901760
        %4313 = vmatpush1.msra.mxu0 %v4312
        %4314 = vmatprep.subr.mxu0 0.0
        %v4315 = vand.u32 %v4048, 4294901760
        %4316 = vmatpush1.msra.mxu0 %v4315
        %4317 = vmatprep.subr.mxu0 0.0
        %v4318 = vand.u32 %v4050, 4294901760
        %4319 = vmatpush1.msra.mxu0 %v4318
        %4320 = vmatprep.subr.mxu0 0.0
        %4321 = vmatpush1.msra.mxu0 0.0
        %4322 = vmatprep.subr.mxu0 0.0
        %4323 = vmatpush1.msra.mxu0 0.0
        %4324 = vmatprep.subr.mxu0 0.0
        %4325 = vmatpush1.msra.mxu0 0.0
        %4326 = vmatprep.subr.mxu0 0.0
        %4327 = vmatpush1.msra.mxu0 0.0
        %4328 = vmatprep.subr.mxu0 0.0
        %4329 = vmatpush1.msra.mxu0 0.0
        %4330 = vmatprep.subr.mxu0 0.0
        %4331 = vmatpush1.msra.mxu0 0.0
        %4332 = vmatprep.subr.mxu0 0.0
        %4333 = vmatpush1.msra.mxu0 0.0
        %4334 = vmatprep.subr.mxu0 0.0
        %4335 = vmatpush1.msra.mxu0 0.0
        %4336 = vmatprep.subr.mxu0 0.0
        %4337 = vmatpush1.msra.mxu0 0.0
        %4338 = vmatprep.subr.mxu0 0.0
        %4339 = vmatpush1.msra.mxu0 0.0
        %4340 = vmatprep.subr.mxu0 0.0
        %4341 = vmatpush1.msra.mxu0 0.0
        %4342 = vmatprep.subr.mxu0 0.0
        %4343 = vmatpush1.msra.mxu0 0.0
        %4344 = vmatprep.subr.mxu0 0.0
        %4345 = vmatpush1.msra.mxu0 0.0
        %4346 = vmatprep.subr.mxu0 0.0
        %4347 = vmatpush1.msra.mxu0 0.0
        %4348 = vmatprep.subr.mxu0 0.0
        %4349 = vmatpush1.msra.mxu0 0.0
        %4350 = vmatprep.subr.mxu0 0.0
        %4351 = vmatpush1.msra.mxu0 0.0
        %4352 = vmatprep.subr.mxu0 0.0
        %4353 = vmatpush1.msra.mxu0 0.0
        %4354 = vmatprep.subr.mxu0 0.0
        %4355 = vmatpush1.msra.mxu0 0.0
        %4356 = vmatprep.subr.mxu0 0.0
        %4357 = vmatpush1.msra.mxu0 0.0
        %4358 = vmatprep.subr.mxu0 0.0
        %4359 = vmatpush1.msra.mxu0 0.0
        %4360 = vmatprep.subr.mxu0 0.0
        %4361 = vmatpush1.msra.mxu0 0.0
        %4362 = vmatprep.subr.mxu0 0.0
        %4363 = vmatpush1.msra.mxu0 0.0
        %4364 = vmatprep.subr.mxu0 0.0
        %4365 = vmatpush1.msra.mxu0 0.0
        %4366 = vmatprep.subr.mxu0 0.0
        %4367 = vmatpush1.msra.mxu0 0.0
        %4368 = vmatprep.subr.mxu0 0.0
        %4369 = vmatpush1.msra.mxu0 0.0
        %4370 = vmatprep.subr.mxu0 0.0
        %4371 = vmatpush1.msra.mxu0 0.0
        %4372 = vmatprep.subr.mxu0 0.0
        %4373 = vmatpush1.msra.mxu0 0.0
        %4374 = vmatprep.subr.mxu0 0.0
        %4375 = vmatpush1.msra.mxu0 0.0
        %4376 = vmatprep.mubr.f32.mxu0 0.0
        %v4377 = vand.u32 %v4056, 4294901760
        %v4378 = vsub.f32 %v4056, %v4377
        %v4379 = vand.u32 %v4378, 4294901760
        %4380 = vmatmul.mubr.f32.gmra.mrb[0].mxu0 %v4379
        %v4381 = vpop.f32.mrb[0].mxu0
        %v4382 = vadd.f32 %v4305, %v4381
        %v4383 = vpop.f32.mrb[0].mxu0
        %4384 = vdwg.mxu0
        %4385 = vmatprep.subr.mxu0 0.0
        %v4386 = vand.u32 %v4044, 4294901760
        %v4387 = vsub.f32 %v4044, %v4386
        %v4388 = vand.u32 %v4387, 4294901760
        %4389 = vmatpush1.msra.mxu0 %v4388
        %4390 = vmatprep.subr.mxu0 0.0
        %v4391 = vand.u32 %v4046, 4294901760
        %v4392 = vsub.f32 %v4046, %v4391
        %v4393 = vand.u32 %v4392, 4294901760
        %4394 = vmatpush1.msra.mxu0 %v4393
        %4395 = vmatprep.subr.mxu0 0.0
        %v4396 = vand.u32 %v4048, 4294901760
        %v4397 = vsub.f32 %v4048, %v4396
        %v4398 = vand.u32 %v4397, 4294901760
        %4399 = vmatpush1.msra.mxu0 %v4398
        %4400 = vmatprep.subr.mxu0 0.0
        %v4401 = vand.u32 %v4050, 4294901760
        %v4402 = vsub.f32 %v4050, %v4401
        %v4403 = vand.u32 %v4402, 4294901760
        %4404 = vmatpush1.msra.mxu0 %v4403
        %4405 = vmatprep.subr.mxu0 0.0
        %4406 = vmatpush1.msra.mxu0 0.0
        %4407 = vmatprep.subr.mxu0 0.0
        %4408 = vmatpush1.msra.mxu0 0.0
        %4409 = vmatprep.subr.mxu0 0.0
        %4410 = vmatpush1.msra.mxu0 0.0
        %4411 = vmatprep.subr.mxu0 0.0
        %4412 = vmatpush1.msra.mxu0 0.0
        %4413 = vmatprep.subr.mxu0 0.0
        %4414 = vmatpush1.msra.mxu0 0.0
        %4415 = vmatprep.subr.mxu0 0.0
        %4416 = vmatpush1.msra.mxu0 0.0
        %4417 = vmatprep.subr.mxu0 0.0
        %4418 = vmatpush1.msra.mxu0 0.0
        %4419 = vmatprep.subr.mxu0 0.0
        %4420 = vmatpush1.msra.mxu0 0.0
        %4421 = vmatprep.subr.mxu0 0.0
        %4422 = vmatpush1.msra.mxu0 0.0
        %4423 = vmatprep.subr.mxu0 0.0
        %4424 = vmatpush1.msra.mxu0 0.0
        %4425 = vmatprep.subr.mxu0 0.0
        %4426 = vmatpush1.msra.mxu0 0.0
        %4427 = vmatprep.subr.mxu0 0.0
        %4428 = vmatpush1.msra.mxu0 0.0
        %4429 = vmatprep.subr.mxu0 0.0
        %4430 = vmatpush1.msra.mxu0 0.0
        %4431 = vmatprep.subr.mxu0 0.0
        %4432 = vmatpush1.msra.mxu0 0.0
        %4433 = vmatprep.subr.mxu0 0.0
        %4434 = vmatpush1.msra.mxu0 0.0
        %4435 = vmatprep.subr.mxu0 0.0
        %4436 = vmatpush1.msra.mxu0 0.0
        %4437 = vmatprep.subr.mxu0 0.0
        %4438 = vmatpush1.msra.mxu0 0.0
        %4439 = vmatprep.subr.mxu0 0.0
        %4440 = vmatpush1.msra.mxu0 0.0
        %4441 = vmatprep.subr.mxu0 0.0
        %4442 = vmatpush1.msra.mxu0 0.0
        %4443 = vmatprep.subr.mxu0 0.0
        %4444 = vmatpush1.msra.mxu0 0.0
        %4445 = vmatprep.subr.mxu0 0.0
        %4446 = vmatpush1.msra.mxu0 0.0
        %4447 = vmatprep.subr.mxu0 0.0
        %4448 = vmatpush1.msra.mxu0 0.0
        %4449 = vmatprep.subr.mxu0 0.0
        %4450 = vmatpush1.msra.mxu0 0.0
        %4451 = vmatprep.subr.mxu0 0.0
        %4452 = vmatpush1.msra.mxu0 0.0
        %4453 = vmatprep.subr.mxu0 0.0
        %4454 = vmatpush1.msra.mxu0 0.0
        %4455 = vmatprep.subr.mxu0 0.0
        %4456 = vmatpush1.msra.mxu0 0.0
        %4457 = vmatprep.subr.mxu0 0.0
        %4458 = vmatpush1.msra.mxu0 0.0
        %4459 = vmatprep.subr.mxu0 0.0
        %4460 = vmatpush1.msra.mxu0 0.0
        %4461 = vmatprep.mubr.f32.mxu0 0.0
        %v4462 = vand.u32 %v4056, 4294901760
        %4463 = vmatmul.mubr.f32.gmra.mrb[0].mxu0 %v4462
        %v4464 = vpop.f32.mrb[0].mxu0
        %v4465 = vadd.f32 %v4382, %v4464
        %v4466 = vpop.f32.mrb[0].mxu0
        %4467 = vdwg.mxu0
        %4468 = vmatprep.subr.mxu0 0.0
        %v4469 = vand.u32 %v4044, 4294901760
        %4470 = vmatpush1.msra.mxu0 %v4469
        %4471 = vmatprep.subr.mxu0 0.0
        %v4472 = vand.u32 %v4046, 4294901760
        %4473 = vmatpush1.msra.mxu0 %v4472
        %4474 = vmatprep.subr.mxu0 0.0
        %v4475 = vand.u32 %v4048, 4294901760
        %4476 = vmatpush1.msra.mxu0 %v4475
        %4477 = vmatprep.subr.mxu0 0.0
        %v4478 = vand.u32 %v4050, 4294901760
        %4479 = vmatpush1.msra.mxu0 %v4478
        %4480 = vmatprep.subr.mxu0 0.0
        %4481 = vmatpush1.msra.mxu0 0.0
        %4482 = vmatprep.subr.mxu0 0.0
        %4483 = vmatpush1.msra.mxu0 0.0
        %4484 = vmatprep.subr.mxu0 0.0
        %4485 = vmatpush1.msra.mxu0 0.0
        %4486 = vmatprep.subr.mxu0 0.0
        %4487 = vmatpush1.msra.mxu0 0.0
        %4488 = vmatprep.subr.mxu0 0.0
        %4489 = vmatpush1.msra.mxu0 0.0
        %4490 = vmatprep.subr.mxu0 0.0
        %4491 = vmatpush1.msra.mxu0 0.0
        %4492 = vmatprep.subr.mxu0 0.0
        %4493 = vmatpush1.msra.mxu0 0.0
        %4494 = vmatprep.subr.mxu0 0.0
        %4495 = vmatpush1.msra.mxu0 0.0
        %4496 = vmatprep.subr.mxu0 0.0
        %4497 = vmatpush1.msra.mxu0 0.0
        %4498 = vmatprep.subr.mxu0 0.0
        %4499 = vmatpush1.msra.mxu0 0.0
        %4500 = vmatprep.subr.mxu0 0.0
        %4501 = vmatpush1.msra.mxu0 0.0
        %4502 = vmatprep.subr.mxu0 0.0
        %4503 = vmatpush1.msra.mxu0 0.0
        %4504 = vmatprep.subr.mxu0 0.0
        %4505 = vmatpush1.msra.mxu0 0.0
        %4506 = vmatprep.subr.mxu0 0.0
        %4507 = vmatpush1.msra.mxu0 0.0
        %4508 = vmatprep.subr.mxu0 0.0
        %4509 = vmatpush1.msra.mxu0 0.0
        %4510 = vmatprep.subr.mxu0 0.0
        %4511 = vmatpush1.msra.mxu0 0.0
        %4512 = vmatprep.subr.mxu0 0.0
        %4513 = vmatpush1.msra.mxu0 0.0
        %4514 = vmatprep.subr.mxu0 0.0
        %4515 = vmatpush1.msra.mxu0 0.0
        %4516 = vmatprep.subr.mxu0 0.0
        %4517 = vmatpush1.msra.mxu0 0.0
        %4518 = vmatprep.subr.mxu0 0.0
        %4519 = vmatpush1.msra.mxu0 0.0
        %4520 = vmatprep.subr.mxu0 0.0
        %4521 = vmatpush1.msra.mxu0 0.0
        %4522 = vmatprep.subr.mxu0 0.0
        %4523 = vmatpush1.msra.mxu0 0.0
        %4524 = vmatprep.subr.mxu0 0.0
        %4525 = vmatpush1.msra.mxu0 0.0
        %4526 = vmatprep.subr.mxu0 0.0
        %4527 = vmatpush1.msra.mxu0 0.0
        %4528 = vmatprep.subr.mxu0 0.0
        %4529 = vmatpush1.msra.mxu0 0.0
        %4530 = vmatprep.subr.mxu0 0.0
        %4531 = vmatpush1.msra.mxu0 0.0
        %4532 = vmatprep.subr.mxu0 0.0
        %4533 = vmatpush1.msra.mxu0 0.0
        %4534 = vmatprep.subr.mxu0 0.0
        %4535 = vmatpush1.msra.mxu0 0.0
        %4536 = vmatprep.mubr.f32.mxu0 0.0
        %v4537 = vand.u32 %v4056, 4294901760
        %4538 = vmatmul.mubr.f32.gmra.mrb[0].mxu0 %v4537
        %v4539 = vpop.f32.mrb[0].mxu0
        %v4540 = vadd.f32 %v4465, %v4539
        %v4541 = vpop.f32.mrb[0].mxu0
        %4542 = vdwg.mxu0
        %v4543 = vrcp.pop %v4042
        %v4544 = vmul.f32 %v4540, %v4543
        %4546 = vrot.lane.b32.xlu0 %v4544, 16
        %v4547 = vpop.permute.xlu0 %4546
        %v4549 = vsel %vm1606, %v2919, %v4547
        %v4550 = vld [vmem:[%s4] sm:$0xff]
        %v4551 = vld [vmem:[%s4 + $0x8] sm:$0xff]
        %v4552 = vld [vmem:[%s4 + $0x10] sm:$0xff]
        %v4553 = vld [vmem:[%s4 + $0x18] sm:$0xff]
        %v4555 = vsel %vm272, %v4549, 0
        %4557 = vmatprep.subr.mxu0 0.0
        %v4558 = vand.u32 %v4550, 4294901760
        %4559 = vmatpush1.msra.mxu0 %v4558
        %4560 = vmatprep.subr.mxu0 0.0
        %v4561 = vand.u32 %v4551, 4294901760
        %4562 = vmatpush1.msra.mxu0 %v4561
        %4563 = vmatprep.subr.mxu0 0.0
        %v4564 = vand.u32 %v4552, 4294901760
        %4565 = vmatpush1.msra.mxu0 %v4564
        %4566 = vmatprep.subr.mxu0 0.0
        %v4567 = vand.u32 %v4553, 4294901760
        %4568 = vmatpush1.msra.mxu0 %v4567
        %4569 = vmatprep.subr.mxu0 0.0
        %4570 = vmatpush1.msra.mxu0 0.0
        %4571 = vmatprep.subr.mxu0 0.0
        %4572 = vmatpush1.msra.mxu0 0.0
        %4573 = vmatprep.subr.mxu0 0.0
        %4574 = vmatpush1.msra.mxu0 0.0
        %4575 = vmatprep.subr.mxu0 0.0
        %4576 = vmatpush1.msra.mxu0 0.0
        %4577 = vmatprep.subr.mxu0 0.0
        %4578 = vmatpush1.msra.mxu0 0.0
        %4579 = vmatprep.subr.mxu0 0.0
        %4580 = vmatpush1.msra.mxu0 0.0
        %4581 = vmatprep.subr.mxu0 0.0
        %4582 = vmatpush1.msra.mxu0 0.0
        %4583 = vmatprep.subr.mxu0 0.0
        %4584 = vmatpush1.msra.mxu0 0.0
        %4585 = vmatprep.subr.mxu0 0.0
        %4586 = vmatpush1.msra.mxu0 0.0
        %4587 = vmatprep.subr.mxu0 0.0
        %4588 = vmatpush1.msra.mxu0 0.0
        %4589 = vmatprep.subr.mxu0 0.0
        %4590 = vmatpush1.msra.mxu0 0.0
        %4591 = vmatprep.subr.mxu0 0.0
        %4592 = vmatpush1.msra.mxu0 0.0
        %4593 = vmatprep.subr.mxu0 0.0
        %4594 = vmatpush1.msra.mxu0 0.0
        %4595 = vmatprep.subr.mxu0 0.0
        %4596 = vmatpush1.msra.mxu0 0.0
        %4597 = vmatprep.subr.mxu0 0.0
        %4598 = vmatpush1.msra.mxu0 0.0
        %4599 = vmatprep.subr.mxu0 0.0
        %4600 = vmatpush1.msra.mxu0 0.0
        %4601 = vmatprep.subr.mxu0 0.0
        %4602 = vmatpush1.msra.mxu0 0.0
        %4603 = vmatprep.subr.mxu0 0.0
        %4604 = vmatpush1.msra.mxu0 0.0
        %4605 = vmatprep.subr.mxu0 0.0
        %4606 = vmatpush1.msra.mxu0 0.0
        %4607 = vmatprep.subr.mxu0 0.0
        %4608 = vmatpush1.msra.mxu0 0.0
        %4609 = vmatprep.subr.mxu0 0.0
        %4610 = vmatpush1.msra.mxu0 0.0
        %4611 = vmatprep.subr.mxu0 0.0
        %4612 = vmatpush1.msra.mxu0 0.0
        %4613 = vmatprep.subr.mxu0 0.0
        %4614 = vmatpush1.msra.mxu0 0.0
        %4615 = vmatprep.subr.mxu0 0.0
        %4616 = vmatpush1.msra.mxu0 0.0
        %4617 = vmatprep.subr.mxu0 0.0
        %4618 = vmatpush1.msra.mxu0 0.0
        %4619 = vmatprep.subr.mxu0 0.0
        %4620 = vmatpush1.msra.mxu0 0.0
        %4621 = vmatprep.subr.mxu0 0.0
        %4622 = vmatpush1.msra.mxu0 0.0
        %4623 = vmatprep.subr.mxu0 0.0
        %4624 = vmatpush1.msra.mxu0 0.0
        %4625 = vmatprep.mubr.f32.mxu0 0.0
        %v4626 = vand.u32 %v4555, 4294901760
        %v4627 = vsub.f32 %v4555, %v4626
        %v4628 = vand.u32 %v4627, 4294901760
        %v4629 = vsub.f32 %v4627, %v4628
        %v4630 = vand.u32 %v4629, 4294901760
        %4631 = vmatmul.mubr.f32.gmra.mrb[0].mxu0 %v4630
        %v4632 = vpop.f32.mrb[0].mxu0
        %v4633 = vadd.f32 0.0, %v4632
        %v4634 = vpop.f32.mrb[0].mxu0
        %4635 = vdwg.mxu0
        %4636 = vmatprep.subr.mxu0 0.0
        %v4637 = vand.u32 %v4550, 4294901760
        %v4638 = vsub.f32 %v4550, %v4637
        %v4639 = vand.u32 %v4638, 4294901760
        %v4640 = vsub.f32 %v4638, %v4639
        %v4641 = vand.u32 %v4640, 4294901760
        %4642 = vmatpush1.msra.mxu0 %v4641
        %4643 = vmatprep.subr.mxu0 0.0
        %v4644 = vand.u32 %v4551, 4294901760
        %v4645 = vsub.f32 %v4551, %v4644
        %v4646 = vand.u32 %v4645, 4294901760
        %v4647 = vsub.f32 %v4645, %v4646
        %v4648 = vand.u32 %v4647, 4294901760
        %4649 = vmatpush1.msra.mxu0 %v4648
        %4650 = vmatprep.subr.mxu0 0.0
        %v4651 = vand.u32 %v4552, 4294901760
        %v4652 = vsub.f32 %v4552, %v4651
        %v4653 = vand.u32 %v4652, 4294901760
        %v4654 = vsub.f32 %v4652, %v4653
        %v4655 = vand.u32 %v4654, 4294901760
        %4656 = vmatpush1.msra.mxu0 %v4655
        %4657 = vmatprep.subr.mxu0 0.0
        %v4658 = vand.u32 %v4553, 4294901760
        %v4659 = vsub.f32 %v4553, %v4658
        %v4660 = vand.u32 %v4659, 4294901760
        %v4661 = vsub.f32 %v4659, %v4660
        %v4662 = vand.u32 %v4661, 4294901760
        %4663 = vmatpush1.msra.mxu0 %v4662
        %4664 = vmatprep.subr.mxu0 0.0
        %4665 = vmatpush1.msra.mxu0 0.0
        %4666 = vmatprep.subr.mxu0 0.0
        %4667 = vmatpush1.msra.mxu0 0.0
        %4668 = vmatprep.subr.mxu0 0.0
        %4669 = vmatpush1.msra.mxu0 0.0
        %4670 = vmatprep.subr.mxu0 0.0
        %4671 = vmatpush1.msra.mxu0 0.0
        %4672 = vmatprep.subr.mxu0 0.0
        %4673 = vmatpush1.msra.mxu0 0.0
        %4674 = vmatprep.subr.mxu0 0.0
        %4675 = vmatpush1.msra.mxu0 0.0
        %4676 = vmatprep.subr.mxu0 0.0
        %4677 = vmatpush1.msra.mxu0 0.0
        %4678 = vmatprep.subr.mxu0 0.0
        %4679 = vmatpush1.msra.mxu0 0.0
        %4680 = vmatprep.subr.mxu0 0.0
        %4681 = vmatpush1.msra.mxu0 0.0
        %4682 = vmatprep.subr.mxu0 0.0
        %4683 = vmatpush1.msra.mxu0 0.0
        %4684 = vmatprep.subr.mxu0 0.0
        %4685 = vmatpush1.msra.mxu0 0.0
        %4686 = vmatprep.subr.mxu0 0.0
        %4687 = vmatpush1.msra.mxu0 0.0
        %4688 = vmatprep.subr.mxu0 0.0
        %4689 = vmatpush1.msra.mxu0 0.0
        %4690 = vmatprep.subr.mxu0 0.0
        %4691 = vmatpush1.msra.mxu0 0.0
        %4692 = vmatprep.subr.mxu0 0.0
        %4693 = vmatpush1.msra.mxu0 0.0
        %4694 = vmatprep.subr.mxu0 0.0
        %4695 = vmatpush1.msra.mxu0 0.0
        %4696 = vmatprep.subr.mxu0 0.0
        %4697 = vmatpush1.msra.mxu0 0.0
        %4698 = vmatprep.subr.mxu0 0.0
        %4699 = vmatpush1.msra.mxu0 0.0
        %4700 = vmatprep.subr.mxu0 0.0
        %4701 = vmatpush1.msra.mxu0 0.0
        %4702 = vmatprep.subr.mxu0 0.0
        %4703 = vmatpush1.msra.mxu0 0.0
        %4704 = vmatprep.subr.mxu0 0.0
        %4705 = vmatpush1.msra.mxu0 0.0
        %4706 = vmatprep.subr.mxu0 0.0
        %4707 = vmatpush1.msra.mxu0 0.0
        %4708 = vmatprep.subr.mxu0 0.0
        %4709 = vmatpush1.msra.mxu0 0.0
        %4710 = vmatprep.subr.mxu0 0.0
        %4711 = vmatpush1.msra.mxu0 0.0
        %4712 = vmatprep.subr.mxu0 0.0
        %4713 = vmatpush1.msra.mxu0 0.0
        %4714 = vmatprep.subr.mxu0 0.0
        %4715 = vmatpush1.msra.mxu0 0.0
        %4716 = vmatprep.subr.mxu0 0.0
        %4717 = vmatpush1.msra.mxu0 0.0
        %4718 = vmatprep.subr.mxu0 0.0
        %4719 = vmatpush1.msra.mxu0 0.0
        %4720 = vmatprep.mubr.f32.mxu0 0.0
        %v4721 = vand.u32 %v4555, 4294901760
        %4722 = vmatmul.mubr.f32.gmra.mrb[0].mxu0 %v4721
        %v4723 = vpop.f32.mrb[0].mxu0
        %v4724 = vadd.f32 %v4633, %v4723
        %v4725 = vpop.f32.mrb[0].mxu0
        %4726 = vdwg.mxu0
        %4727 = vmatprep.subr.mxu0 0.0
        %v4728 = vand.u32 %v4550, 4294901760
        %v4729 = vsub.f32 %v4550, %v4728
        %4730 = vmatpush1.msra.mxu0 %v4729
        %4731 = vmatprep.subr.mxu0 0.0
        %v4732 = vand.u32 %v4551, 4294901760
        %v4733 = vsub.f32 %v4551, %v4732
        %4734 = vmatpush1.msra.mxu0 %v4733
        %4735 = vmatprep.subr.mxu0 0.0
        %v4736 = vand.u32 %v4552, 4294901760
        %v4737 = vsub.f32 %v4552, %v4736
        %4738 = vmatpush1.msra.mxu0 %v4737
        %4739 = vmatprep.subr.mxu0 0.0
        %v4740 = vand.u32 %v4553, 4294901760
        %v4741 = vsub.f32 %v4553, %v4740
        %4742 = vmatpush1.msra.mxu0 %v4741
        %4743 = vmatprep.subr.mxu0 0.0
        %4744 = vmatpush1.msra.mxu0 0.0
        %4745 = vmatprep.subr.mxu0 0.0
        %4746 = vmatpush1.msra.mxu0 0.0
        %4747 = vmatprep.subr.mxu0 0.0
        %4748 = vmatpush1.msra.mxu0 0.0
        %4749 = vmatprep.subr.mxu0 0.0
        %4750 = vmatpush1.msra.mxu0 0.0
        %4751 = vmatprep.subr.mxu0 0.0
        %4752 = vmatpush1.msra.mxu0 0.0
        %4753 = vmatprep.subr.mxu0 0.0
        %4754 = vmatpush1.msra.mxu0 0.0
        %4755 = vmatprep.subr.mxu0 0.0
        %4756 = vmatpush1.msra.mxu0 0.0
        %4757 = vmatprep.subr.mxu0 0.0
        %4758 = vmatpush1.msra.mxu0 0.0
        %4759 = vmatprep.subr.mxu0 0.0
        %4760 = vmatpush1.msra.mxu0 0.0
        %4761 = vmatprep.subr.mxu0 0.0
        %4762 = vmatpush1.msra.mxu0 0.0
        %4763 = vmatprep.subr.mxu0 0.0
        %4764 = vmatpush1.msra.mxu0 0.0
        %4765 = vmatprep.subr.mxu0 0.0
        %4766 = vmatpush1.msra.mxu0 0.0
        %4767 = vmatprep.subr.mxu0 0.0
        %4768 = vmatpush1.msra.mxu0 0.0
        %4769 = vmatprep.subr.mxu0 0.0
        %4770 = vmatpush1.msra.mxu0 0.0
        %4771 = vmatprep.subr.mxu0 0.0
        %4772 = vmatpush1.msra.mxu0 0.0
        %4773 = vmatprep.subr.mxu0 0.0
        %4774 = vmatpush1.msra.mxu0 0.0
        %4775 = vmatprep.subr.mxu0 0.0
        %4776 = vmatpush1.msra.mxu0 0.0
        %4777 = vmatprep.subr.mxu0 0.0
        %4778 = vmatpush1.msra.mxu0 0.0
        %4779 = vmatprep.subr.mxu0 0.0
        %4780 = vmatpush1.msra.mxu0 0.0
        %4781 = vmatprep.subr.mxu0 0.0
        %4782 = vmatpush1.msra.mxu0 0.0
        %4783 = vmatprep.subr.mxu0 0.0
        %4784 = vmatpush1.msra.mxu0 0.0
        %4785 = vmatprep.subr.mxu0 0.0
        %4786 = vmatpush1.msra.mxu0 0.0
        %4787 = vmatprep.subr.mxu0 0.0
        %4788 = vmatpush1.msra.mxu0 0.0
        %4789 = vmatprep.subr.mxu0 0.0
        %4790 = vmatpush1.msra.mxu0 0.0
        %4791 = vmatprep.subr.mxu0 0.0
        %4792 = vmatpush1.msra.mxu0 0.0
        %4793 = vmatprep.subr.mxu0 0.0
        %4794 = vmatpush1.msra.mxu0 0.0
        %4795 = vmatprep.subr.mxu0 0.0
        %4796 = vmatpush1.msra.mxu0 0.0
        %4797 = vmatprep.subr.mxu0 0.0
        %4798 = vmatpush1.msra.mxu0 0.0
        %4799 = vmatprep.mubr.f32.mxu0 0.0
        %v4800 = vand.u32 %v4555, 4294901760
        %v4801 = vsub.f32 %v4555, %v4800
        %4802 = vmatmul.mubr.f32.gmra.mrb[0].mxu0 %v4801
        %v4803 = vpop.f32.mrb[0].mxu0
        %v4804 = vadd.f32 %v4724, %v4803
        %v4805 = vpop.f32.mrb[0].mxu0
        %4806 = vdwg.mxu0
        %4807 = vmatprep.subr.mxu0 0.0
        %v4808 = vand.u32 %v4550, 4294901760
        %4809 = vmatpush1.msra.mxu0 %v4808
        %4810 = vmatprep.subr.mxu0 0.0
        %v4811 = vand.u32 %v4551, 4294901760
        %4812 = vmatpush1.msra.mxu0 %v4811
        %4813 = vmatprep.subr.mxu0 0.0
        %v4814 = vand.u32 %v4552, 4294901760
        %4815 = vmatpush1.msra.mxu0 %v4814
        %4816 = vmatprep.subr.mxu0 0.0
        %v4817 = vand.u32 %v4553, 4294901760
        %4818 = vmatpush1.msra.mxu0 %v4817
        %4819 = vmatprep.subr.mxu0 0.0
        %4820 = vmatpush1.msra.mxu0 0.0
        %4821 = vmatprep.subr.mxu0 0.0
        %4822 = vmatpush1.msra.mxu0 0.0
        %4823 = vmatprep.subr.mxu0 0.0
        %4824 = vmatpush1.msra.mxu0 0.0
        %4825 = vmatprep.subr.mxu0 0.0
        %4826 = vmatpush1.msra.mxu0 0.0
        %4827 = vmatprep.subr.mxu0 0.0
        %4828 = vmatpush1.msra.mxu0 0.0
        %4829 = vmatprep.subr.mxu0 0.0
        %4830 = vmatpush1.msra.mxu0 0.0
        %4831 = vmatprep.subr.mxu0 0.0
        %4832 = vmatpush1.msra.mxu0 0.0
        %4833 = vmatprep.subr.mxu0 0.0
        %4834 = vmatpush1.msra.mxu0 0.0
        %4835 = vmatprep.subr.mxu0 0.0
        %4836 = vmatpush1.msra.mxu0 0.0
        %4837 = vmatprep.subr.mxu0 0.0
        %4838 = vmatpush1.msra.mxu0 0.0
        %4839 = vmatprep.subr.mxu0 0.0
        %4840 = vmatpush1.msra.mxu0 0.0
        %4841 = vmatprep.subr.mxu0 0.0
        %4842 = vmatpush1.msra.mxu0 0.0
        %4843 = vmatprep.subr.mxu0 0.0
        %4844 = vmatpush1.msra.mxu0 0.0
        %4845 = vmatprep.subr.mxu0 0.0
        %4846 = vmatpush1.msra.mxu0 0.0
        %4847 = vmatprep.subr.mxu0 0.0
        %4848 = vmatpush1.msra.mxu0 0.0
        %4849 = vmatprep.subr.mxu0 0.0
        %4850 = vmatpush1.msra.mxu0 0.0
        %4851 = vmatprep.subr.mxu0 0.0
        %4852 = vmatpush1.msra.mxu0 0.0
        %4853 = vmatprep.subr.mxu0 0.0
        %4854 = vmatpush1.msra.mxu0 0.0
        %4855 = vmatprep.subr.mxu0 0.0
        %4856 = vmatpush1.msra.mxu0 0.0
        %4857 = vmatprep.subr.mxu0 0.0
        %4858 = vmatpush1.msra.mxu0 0.0
        %4859 = vmatprep.subr.mxu0 0.0
        %4860 = vmatpush1.msra.mxu0 0.0
        %4861 = vmatprep.subr.mxu0 0.0
        %4862 = vmatpush1.msra.mxu0 0.0
        %4863 = vmatprep.subr.mxu0 0.0
        %4864 = vmatpush1.msra.mxu0 0.0
        %4865 = vmatprep.subr.mxu0 0.0
        %4866 = vmatpush1.msra.mxu0 0.0
        %4867 = vmatprep.subr.mxu0 0.0
        %4868 = vmatpush1.msra.mxu0 0.0
        %4869 = vmatprep.subr.mxu0 0.0
        %4870 = vmatpush1.msra.mxu0 0.0
        %4871 = vmatprep.subr.mxu0 0.0
        %4872 = vmatpush1.msra.mxu0 0.0
        %4873 = vmatprep.subr.mxu0 0.0
        %4874 = vmatpush1.msra.mxu0 0.0
        %4875 = vmatprep.mubr.f32.mxu0 0.0
        %v4876 = vand.u32 %v4555, 4294901760
        %v4877 = vsub.f32 %v4555, %v4876
        %v4878 = vand.u32 %v4877, 4294901760
        %4879 = vmatmul.mubr.f32.gmra.mrb[0].mxu0 %v4878
        %v4880 = vpop.f32.mrb[0].mxu0
        %v4881 = vadd.f32 %v4804, %v4880
        %v4882 = vpop.f32.mrb[0].mxu0
        %4883 = vdwg.mxu0
        %4884 = vmatprep.subr.mxu0 0.0
        %v4885 = vand.u32 %v4550, 4294901760
        %v4886 = vsub.f32 %v4550, %v4885
        %v4887 = vand.u32 %v4886, 4294901760
        %4888 = vmatpush1.msra.mxu0 %v4887
        %4889 = vmatprep.subr.mxu0 0.0
        %v4890 = vand.u32 %v4551, 4294901760
        %v4891 = vsub.f32 %v4551, %v4890
        %v4892 = vand.u32 %v4891, 4294901760
        %4893 = vmatpush1.msra.mxu0 %v4892
        %4894 = vmatprep.subr.mxu0 0.0
        %v4895 = vand.u32 %v4552, 4294901760
        %v4896 = vsub.f32 %v4552, %v4895
        %v4897 = vand.u32 %v4896, 4294901760
        %4898 = vmatpush1.msra.mxu0 %v4897
        %4899 = vmatprep.subr.mxu0 0.0
        %v4900 = vand.u32 %v4553, 4294901760
        %v4901 = vsub.f32 %v4553, %v4900
        %v4902 = vand.u32 %v4901, 4294901760
        %4903 = vmatpush1.msra.mxu0 %v4902
        %4904 = vmatprep.subr.mxu0 0.0
        %4905 = vmatpush1.msra.mxu0 0.0
        %4906 = vmatprep.subr.mxu0 0.0
        %4907 = vmatpush1.msra.mxu0 0.0
        %4908 = vmatprep.subr.mxu0 0.0
        %4909 = vmatpush1.msra.mxu0 0.0
        %4910 = vmatprep.subr.mxu0 0.0
        %4911 = vmatpush1.msra.mxu0 0.0
        %4912 = vmatprep.subr.mxu0 0.0
        %4913 = vmatpush1.msra.mxu0 0.0
        %4914 = vmatprep.subr.mxu0 0.0
        %4915 = vmatpush1.msra.mxu0 0.0
        %4916 = vmatprep.subr.mxu0 0.0
        %4917 = vmatpush1.msra.mxu0 0.0
        %4918 = vmatprep.subr.mxu0 0.0
        %4919 = vmatpush1.msra.mxu0 0.0
        %4920 = vmatprep.subr.mxu0 0.0
        %4921 = vmatpush1.msra.mxu0 0.0
        %4922 = vmatprep.subr.mxu0 0.0
        %4923 = vmatpush1.msra.mxu0 0.0
        %4924 = vmatprep.subr.mxu0 0.0
        %4925 = vmatpush1.msra.mxu0 0.0
        %4926 = vmatprep.subr.mxu0 0.0
        %4927 = vmatpush1.msra.mxu0 0.0
        %4928 = vmatprep.subr.mxu0 0.0
        %4929 = vmatpush1.msra.mxu0 0.0
        %4930 = vmatprep.subr.mxu0 0.0
        %4931 = vmatpush1.msra.mxu0 0.0
        %4932 = vmatprep.subr.mxu0 0.0
        %4933 = vmatpush1.msra.mxu0 0.0
        %4934 = vmatprep.subr.mxu0 0.0
        %4935 = vmatpush1.msra.mxu0 0.0
        %4936 = vmatprep.subr.mxu0 0.0
        %4937 = vmatpush1.msra.mxu0 0.0
        %4938 = vmatprep.subr.mxu0 0.0
        %4939 = vmatpush1.msra.mxu0 0.0
        %4940 = vmatprep.subr.mxu0 0.0
        %4941 = vmatpush1.msra.mxu0 0.0
        %4942 = vmatprep.subr.mxu0 0.0
        %4943 = vmatpush1.msra.mxu0 0.0
        %4944 = vmatprep.subr.mxu0 0.0
        %4945 = vmatpush1.msra.mxu0 0.0
        %4946 = vmatprep.subr.mxu0 0.0
        %4947 = vmatpush1.msra.mxu0 0.0
        %4948 = vmatprep.subr.mxu0 0.0
        %4949 = vmatpush1.msra.mxu0 0.0
        %4950 = vmatprep.subr.mxu0 0.0
        %4951 = vmatpush1.msra.mxu0 0.0
        %4952 = vmatprep.subr.mxu0 0.0
        %4953 = vmatpush1.msra.mxu0 0.0
        %4954 = vmatprep.subr.mxu0 0.0
        %4955 = vmatpush1.msra.mxu0 0.0
        %4956 = vmatprep.subr.mxu0 0.0
        %4957 = vmatpush1.msra.mxu0 0.0
        %4958 = vmatprep.subr.mxu0 0.0
        %4959 = vmatpush1.msra.mxu0 0.0
        %4960 = vmatprep.mubr.f32.mxu0 0.0
        %v4961 = vand.u32 %v4555, 4294901760
        %4962 = vmatmul.mubr.f32.gmra.mrb[0].mxu0 %v4961
        %v4963 = vpop.f32.mrb[0].mxu0
        %v4964 = vadd.f32 %v4881, %v4963
        %v4965 = vpop.f32.mrb[0].mxu0
        %4966 = vdwg.mxu0
        %4967 = vmatprep.subr.mxu0 0.0
        %v4968 = vand.u32 %v4550, 4294901760
        %4969 = vmatpush1.msra.mxu0 %v4968
        %4970 = vmatprep.subr.mxu0 0.0
        %v4971 = vand.u32 %v4551, 4294901760
        %4972 = vmatpush1.msra.mxu0 %v4971
        %4973 = vmatprep.subr.mxu0 0.0
        %v4974 = vand.u32 %v4552, 4294901760
        %4975 = vmatpush1.msra.mxu0 %v4974
        %4976 = vmatprep.subr.mxu0 0.0
        %v4977 = vand.u32 %v4553, 4294901760
        %4978 = vmatpush1.msra.mxu0 %v4977
        %4979 = vmatprep.subr.mxu0 0.0
        %4980 = vmatpush1.msra.mxu0 0.0
        %4981 = vmatprep.subr.mxu0 0.0
        %4982 = vmatpush1.msra.mxu0 0.0
        %4983 = vmatprep.subr.mxu0 0.0
        %4984 = vmatpush1.msra.mxu0 0.0
        %4985 = vmatprep.subr.mxu0 0.0
        %4986 = vmatpush1.msra.mxu0 0.0
        %4987 = vmatprep.subr.mxu0 0.0
        %4988 = vmatpush1.msra.mxu0 0.0
        %4989 = vmatprep.subr.mxu0 0.0
        %4990 = vmatpush1.msra.mxu0 0.0
        %4991 = vmatprep.subr.mxu0 0.0
        %4992 = vmatpush1.msra.mxu0 0.0
        %4993 = vmatprep.subr.mxu0 0.0
        %4994 = vmatpush1.msra.mxu0 0.0
        %4995 = vmatprep.subr.mxu0 0.0
        %4996 = vmatpush1.msra.mxu0 0.0
        %4997 = vmatprep.subr.mxu0 0.0
        %4998 = vmatpush1.msra.mxu0 0.0
        %4999 = vmatprep.subr.mxu0 0.0
        %5000 = vmatpush1.msra.mxu0 0.0
        %5001 = vmatprep.subr.mxu0 0.0
        %5002 = vmatpush1.msra.mxu0 0.0
        %5003 = vmatprep.subr.mxu0 0.0
        %5004 = vmatpush1.msra.mxu0 0.0
        %5005 = vmatprep.subr.mxu0 0.0
        %5006 = vmatpush1.msra.mxu0 0.0
        %5007 = vmatprep.subr.mxu0 0.0
        %5008 = vmatpush1.msra.mxu0 0.0
        %5009 = vmatprep.subr.mxu0 0.0
        %5010 = vmatpush1.msra.mxu0 0.0
        %5011 = vmatprep.subr.mxu0 0.0
        %5012 = vmatpush1.msra.mxu0 0.0
        %5013 = vmatprep.subr.mxu0 0.0
        %5014 = vmatpush1.msra.mxu0 0.0
        %5015 = vmatprep.subr.mxu0 0.0
        %5016 = vmatpush1.msra.mxu0 0.0
        %5017 = vmatprep.subr.mxu0 0.0
        %5018 = vmatpush1.msra.mxu0 0.0
        %5019 = vmatprep.subr.mxu0 0.0
        %5020 = vmatpush1.msra.mxu0 0.0
        %5021 = vmatprep.subr.mxu0 0.0
        %5022 = vmatpush1.msra.mxu0 0.0
        %5023 = vmatprep.subr.mxu0 0.0
        %5024 = vmatpush1.msra.mxu0 0.0
        %5025 = vmatprep.subr.mxu0 0.0
        %5026 = vmatpush1.msra.mxu0 0.0
        %5027 = vmatprep.subr.mxu0 0.0
        %5028 = vmatpush1.msra.mxu0 0.0
        %5029 = vmatprep.subr.mxu0 0.0
        %5030 = vmatpush1.msra.mxu0 0.0
        %5031 = vmatprep.subr.mxu0 0.0
        %5032 = vmatpush1.msra.mxu0 0.0
        %5033 = vmatprep.subr.mxu0 0.0
        %5034 = vmatpush1.msra.mxu0 0.0
        %5035 = vmatprep.mubr.f32.mxu0 0.0
        %v5036 = vand.u32 %v4555, 4294901760
        %5037 = vmatmul.mubr.f32.gmra.mrb[0].mxu0 %v5036
        %v5038 = vpop.f32.mrb[0].mxu0
        %v5039 = vadd.f32 %v4964, %v5038
        %v5040 = vpop.f32.mrb[0].mxu0
        %5041 = vdwg.mxu0
        %5042 = vst.msk [vmem:[%s257] sm:$0xff] %vm272, %v5039
        %s5043 = sand.u32 %s164, 1
        %s5044 = scalar_lea.sflag [#allocation3], %s5043
        %s5045 = sand.u32 %s164, 1
        %s5046 = smul.addr %s5045, 8
        %s5047 = scalar_lea.vmem [#allocation2], %s5046
        // Predicated region
        $region45: #{tpu_custom_call.1} parent=43 // pred_check
          %p5048 = pneg %p174
        $region46: #{tpu_custom_call.1} parent=43 // pred_check_branch
          %5050 = sbr.rel (%p5048) target = $region48
        $region47: #{tpu_custom_call.1} parent=43 // pred_region
          %s5052 = ssub.s32 128, 128
          %5053 = vsyncadd %s5044, %s5052
          %s5054 = smul.addr %s20, 128
          %s5055 = scalar_lea.hbm %s6, %s5054
          %s5057 = sshll.u32 %s5047, 4
          %s5058 = int_to_ptr.vmem [resolvable:$true] %s5057
          %5060 = dma.vmem_to_hbm [thread:$0]  %s5058, 128, %s5055, %s5044
        $region48: #{tpu_custom_call.1} parent=43 // pred_fallthru
          _
      $region44: #{tpu_custom_call.1} parent=5 // pred_fallthru
        _
      %p5061 = scmp.le.s32.totalorder 2, %s15
      // Predicated region
      $region49: #{tpu_custom_call.1} parent=5 // pred_check
        %p5062 = pneg %p5061
      $region50: #{tpu_custom_call.1} parent=5 // pred_check_branch
        %5064 = sbr.rel (%p5062) target = $region52
      $region51: #{tpu_custom_call.1} parent=5 // pred_region
        %s5065 = ssub.s32 %s15, 2
        // Predicated region
        $region53: #{tpu_custom_call.1} parent=51 // pred_check
          %p5066 = pneg %p180
        $region54: #{tpu_custom_call.1} parent=51 // pred_check_branch
          %5068 = sbr.rel (%p5066) target = $region56
        $region55: #{tpu_custom_call.1} parent=51 // pred_region
          %s5069 = sand.u32 %s165, 1
          %s5070 = scalar_lea.sflag [#allocation3], %s5069
          %s5071 = sand.u32 %s165, 1
          %s5072 = smul.addr %s5071, 8
          %s5073 = scalar_lea.vmem [#allocation2], %s5072
          %5074 = dma.done %s5070, 128
        $region56: #{tpu_custom_call.1} parent=51 // pred_fallthru
          _
      $region52: #{tpu_custom_call.1} parent=5 // pred_fallthru
        _
    $region6: #{tpu_custom_call.1} parent=1 // loop_footer
      %s19 = sadd.s32 1, %s15
    $region7: #{tpu_custom_call.1} parent=1 // loop_footer_branch
      %14 = sbr.rel target = $region3
    $region8: #{tpu_custom_call.1} parent=1 // loop_exit
      _
    %5075 = vsyncpa [#allocation3], 1
    %s5076 = scalar_lea.sflag [#allocation3], 1
    %5077 = vsyncpa %s5076, 1

</llo_original>
